<compile_context>
chip_gen: v7x
topology: tpu7x:2x2x1
jax: 0.10.0
libtpu: 0.0.40
codegen_flags: <defaults>
</compile_context>

<pallas_src>
import functools

import jax
import jax.numpy as jnp
from jax import lax
from jax.experimental import pallas as pl
from jax.experimental.pallas import tpu as pltpu

VMEM = pltpu.MemorySpace.VMEM
SMEM = pltpu.MemorySpace.SMEM
BF16 = jnp.bfloat16


def _round_up(x, m):
    return ((x + m - 1) // m) * m


# ----------------------------------------------------------------------------
# Generation-aware sizing (VMEM budget, block sizes) from the hardware info.
# ----------------------------------------------------------------------------
@functools.lru_cache(maxsize=None)
def _hw_config():
    try:
        vmem_cap = int(pltpu.get_tpu_info().vmem_capacity_bytes)
    except Exception:
        vmem_cap = 128 * 1024 * 1024
    if vmem_cap <= 64 * 1024 * 1024:
        # v7x-class: 64 MiB physical VMEM per TensorCore, 2 TCs per chip.
        # Leave headroom (48 MiB scoped), small batch blocks, >=2-step parallel grids.
        return {'vmem_limit': 48 * 1024 * 1024, 'block_m': 512,
                'lstm_bb': 128, 'tda_bb': 16}
    # v5e / v6e: 128 MiB VMEM, single TC -> larger tiles, ~96 MiB scoped budget.
    return {'vmem_limit': 96 * 1024 * 1024, 'block_m': 1024,
            'lstm_bb': 256, 'tda_bb': 64}


# ----------------------------------------------------------------------------
# Single-buffering of grid-invariant (weight) blocks: probe pl.Buffered(1) support once,
# OUTSIDE jit (triggered from prepare_params), and fall back gracefully.
# ----------------------------------------------------------------------------
_SINGLE_BUFFER = None


def _copy_probe_kernel(x_ref, o_ref):
    o_ref[...] = x_ref[...]


def _probe_single_buffering():
    global _SINGLE_BUFFER
    if _SINGLE_BUFFER is None:
        try:
            spec = pl.BlockSpec((8, 128), lambda i: (0, 0), pipeline_mode=pl.Buffered(1))
            out = pl.pallas_call(
                _copy_probe_kernel,
                out_shape=jax.ShapeDtypeStruct((8, 128), jnp.float32),
                grid=(2,),
                in_specs=[spec],
                out_specs=pl.BlockSpec((8, 128), lambda i: (0, 0)),
            )(jnp.zeros((8, 128), jnp.float32))
            jax.block_until_ready(out)
            _SINGLE_BUFFER = True
        except Exception:
            _SINGLE_BUFFER = False
    return _SINGLE_BUFFER


def _invariant_spec(shape, index_map):
    """BlockSpec for a grid-invariant operand; single-buffered when supported."""
    if _SINGLE_BUFFER:  # None (unprobed) or False -> plain (default-buffered) spec
        return pl.BlockSpec(shape, index_map, pipeline_mode=pl.Buffered(1))
    return pl.BlockSpec(shape, index_map)


# ----------------------------------------------------------------------------
# Kernel 1: M-tiled linear. bf16 operands, f32 accumulation, selectable output dtype.
# Used for the hoisted LSTM gate projection (bf16 out) and for fc1 (f32 out).
# ----------------------------------------------------------------------------
def linear_kernel(x_ref, w_ref, b_ref, o_ref, *, relu):
    y = jnp.dot(x_ref[...].astype(BF16), w_ref[...],
                preferred_element_type=jnp.float32) + b_ref[...]
    if relu:
        y = jnp.maximum(y, 0.0)
    o_ref[...] = y.astype(o_ref.dtype)


def pallas_linear(x, w, b, *, block_m, vmem_limit, out_dtype=jnp.float32, relu=False):
    M, K = x.shape
    N = w.shape[1]
    bm = min(block_m, M)
    return pl.pallas_call(
        functools.partial(linear_kernel, relu=relu),
        out_shape=jax.ShapeDtypeStruct((M, N), out_dtype),
        grid=(pl.cdiv(M, bm),),
        in_specs=[pl.BlockSpec((bm, K), lambda i: (i, 0)),
                  _invariant_spec((K, N), lambda i: (0, 0)),
                  _invariant_spec((1, N), lambda i: (0, 0))],
        out_specs=pl.BlockSpec((bm, N), lambda i: (i, 0)),
        compiler_params=pltpu.CompilerParams(
            dimension_semantics=("parallel",),
            vmem_limit_bytes=vmem_limit),
    )(x, w, b)


# ----------------------------------------------------------------------------
# Kernel 2: LSTM recurrence (input projection hoisted out), gridded over batch blocks.
#   gx_ref : (T, bB, 4H) bf16  precomputed  x @ W_ih + b  (gate order i, f, g, o)
#   whh_ref: (H, 4H)     bf16  recurrent weights (single fused dot per timestep)
# Returns the last hidden state h_T for the batch block.
# ----------------------------------------------------------------------------
def lstm_last_kernel(gx_ref, whh_ref, h_ref):
    T, bB, H4 = gx_ref.shape
    H = H4 // 4
    whh = whh_ref[...]                                                   # (H, 4H) bf16

    def step(t, carry):
        h, c = carry                                                     # f32 state (bB, H)
        gates = gx_ref[t].astype(jnp.float32) + jnp.dot(
            h.astype(BF16), whh, preferred_element_type=jnp.float32)     # (bB, 4H)
        i = jax.nn.sigmoid(gates[:, 0 * H:1 * H])
        f = jax.nn.sigmoid(gates[:, 1 * H:2 * H])
        g = jnp.tanh(gates[:, 2 * H:3 * H])
        o = jax.nn.sigmoid(gates[:, 3 * H:4 * H])
        c_new = f * c + i * g
        h_new = o * jnp.tanh(c_new)
        return (h_new, c_new)

    h0 = jnp.zeros((bB, H), jnp.float32)
    c0 = jnp.zeros((bB, H), jnp.float32)
    h_last, _ = lax.fori_loop(0, T, step, (h0, c0), unroll=True)         # T static, fully unrolled
    h_ref[...] = h_last


# ----------------------------------------------------------------------------
# Kernel 3: fused VQAAdapter + TDA backbone, gridded over batch blocks.
#   frcn is passed flattened as (B*Nobj_pad, Fimg) f32 (cast to bf16 per block in-kernel);
#   img_feat is written out (model output) and consumed in-register.  All dots are 2-D
#   (M = bb * Nobj_pad).  Padded objects are masked with -inf before the softmax.
# ----------------------------------------------------------------------------
def tda_kernel(q_ref, frcn_ref, wa_ref, ba_ref,
               wq_ref, bq_ref, wv_ref, bv_ref,
               wnv_ref, wnq_ref, bn_ref,
               watt_ref, batt_ref,
               wqn_ref, bqn_ref, wvn_ref, bvn_ref,
               img_ref, joint_ref, *, nobj, nobj_real):
    bb, H = q_ref.shape
    q_b = q_ref[...].astype(BF16)

    # VQAAdapter: weight_norm Linear on frcn rows (weight_norm == plain Linear at init)
    img2d = (jnp.dot(frcn_ref[...].astype(BF16), wa_ref[...],
                     preferred_element_type=jnp.float32) + ba_ref[...])  # (bb*nobj, H) f32
    img_ref[...] = img2d
    img_b = img2d.astype(BF16)

    # AttnMap projections (flattened 2-D dots instead of batched einsum)
    qp = jnp.dot(q_b, wq_ref[...], preferred_element_type=jnp.float32) + bq_ref[...]    # (bb, H)
    vp = jnp.dot(img_b, wv_ref[...], preferred_element_type=jnp.float32) + bv_ref[...]  # (bb*nobj, H)

    # nonlinear MLP over cat([v', q'], -1): weight split into v-part and q-part
    h1 = (jnp.dot(vp.astype(BF16), wnv_ref[...],
                  preferred_element_type=jnp.float32).reshape(bb, nobj, H)
          + jnp.dot(qp.astype(BF16), wnq_ref[...],
                    preferred_element_type=jnp.float32)[:, None, :]
          + bn_ref[...])
    h1 = jnp.maximum(h1, 0.0)                                            # ReLU; dropout = identity

    # attention logits (Linear H->1, weight as (1,H) row) + masked softmax over objects
    logits = jnp.sum(h1 * watt_ref[...], axis=-1) + batt_ref[0, 0]       # (bb, nobj)
    if nobj_real != nobj:
        obj_ix = lax.broadcasted_iota(jnp.int32, (bb, nobj), 1)
        logits = jnp.where(obj_ix < nobj_real, logits, -jnp.inf)
    att = jax.nn.softmax(logits, axis=1)

    atted_v = jnp.sum(att[:, :, None] * img2d.reshape(bb, nobj, H), axis=1)   # (bb, H) f32

    q_repr = jnp.maximum(
        jnp.dot(q_b, wqn_ref[...], preferred_element_type=jnp.float32) + bqn_ref[...], 0.0)
    v_repr = jnp.maximum(
        jnp.dot(atted_v.astype(BF16), wvn_ref[...], preferred_element_type=jnp.float32)
        + bvn_ref[...], 0.0)
    joint_ref[...] = q_repr * v_repr                                     # (bb, H)


# ----------------------------------------------------------------------------
# Kernel 4: classifier tail -- relu(fc1) @ W_clf + b, single ungridded call on the
# pre-padded (lane-dense) classifier weight.
# ----------------------------------------------------------------------------
def relu_linear_kernel(x_ref, w_ref, b_ref, o_ref):
    h = jnp.maximum(x_ref[...], 0.0).astype(BF16)                        # ReLU; Dropout identity
    o_ref[...] = (jnp.dot(h, w_ref[...], preferred_element_type=jnp.float32)
                  + b_ref[...])


def classifier_logits(fc1, w_clf_padded, b_clf_padded, answer_size, vmem_limit):
    M = fc1.shape[0]
    n_pad = w_clf_padded.shape[1]
    out = pl.pallas_call(
        relu_linear_kernel,
        out_shape=jax.ShapeDtypeStruct((M, n_pad), jnp.float32),
        in_specs=[pl.BlockSpec(memory_space=VMEM)] * 3,
        out_specs=pl.BlockSpec(memory_space=VMEM),
        compiler_params=pltpu.CompilerParams(vmem_limit_bytes=vmem_limit),
    )(fc1, w_clf_padded, b_clf_padded)
    return out[:, :answer_size] if n_pad != answer_size else out


# ----------------------------------------------------------------------------
# One-time parameter preparation (call OUTSIDE jit).
#   * casts all matmul weights + embedding table to bf16 (no per-forward cast traffic)
#   * pads classifier weight/bias to a lane-dense multiple of 128 columns
#   * normalizes bias shapes to (1, N) f32
#   * probes pl.Buffered(1) support for single-buffered grid-invariant weights
# ----------------------------------------------------------------------------
def prepare_params(params):
    _probe_single_buffering()
    f32 = jnp.float32
    n_ans = params['w_clf'].shape[1]
    n_pad = _round_up(n_ans, 128)
    w_clf = params['w_clf']
    b_clf = params['b_clf'].reshape(1, -1)
    if n_pad != n_ans:
        w_clf = jnp.pad(w_clf, ((0, 0), (0, n_pad - n_ans)))
        b_clf = jnp.pad(b_clf, ((0, 0), (0, n_pad - n_ans)))
    return {
        'emb': params['emb'].astype(BF16),
        'w_ih': params['w_ih'].astype(BF16),
        'w_hh': params['w_hh'].astype(BF16),                     # (H, 4H), gate order i,f,g,o
        'b_lstm': params['b_lstm'].reshape(1, -1).astype(f32),
        'w_adapt': params['w_adapt'].astype(BF16),
        'b_adapt': params['b_adapt'].reshape(1, -1).astype(f32),
        'w_att_q': params['w_att_q'].astype(BF16),
        'b_att_q': params['b_att_q'].reshape(1, -1).astype(f32),
        'w_att_v': params['w_att_v'].astype(BF16),
        'b_att_v': params['b_att_v'].reshape(1, -1).astype(f32),
        'w_nl_v': params['w_nl_v'].astype(BF16),
        'w_nl_q': params['w_nl_q'].astype(BF16),
        'b_nl': params['b_nl'].reshape(1, -1).astype(f32),
        'w_att': params['w_att'].reshape(1, -1).astype(f32),     # VPU multiply, keep f32
        'b_att': params['b_att'].reshape(1, 1).astype(f32),
        'w_qnet': params['w_qnet'].astype(BF16),
        'b_qnet': params['b_qnet'].reshape(1, -1).astype(f32),
        'w_vnet': params['w_vnet'].astype(BF16),
        'b_vnet': params['b_vnet'].reshape(1, -1).astype(f32),
        'w_fc1': params['w_fc1'].astype(BF16),
        'b_fc1': params['b_fc1'].reshape(1, -1).astype(f32),
        'w_clf': w_clf.astype(BF16),
        'b_clf': b_clf.astype(f32),
    }


# ----------------------------------------------------------------------------
# Forward wrapper
# ----------------------------------------------------------------------------
def updn_forward(params, frcn_feat, bbox_feat, question_token_ixs, *, answer_size):
    # bbox_feat is accepted but unused -- matches the OpenVQA BUTD/UpDn VQA adapter,
    # which only applies a weight_norm Linear to frcn_feat.
    del bbox_feat
    cfg = _hw_config()
    B, T = question_token_ixs.shape
    H = params['w_hh'].shape[0]

    # 1) Embedding lookup (glue: gather in plain JAX, bf16 table), small time-major
    #    transpose of the pre-projection tensor only (the big gate tensor is never transposed).
    lang = jnp.take(params['emb'], question_token_ixs, axis=0)            # (B, T, E) bf16
    E = lang.shape[-1]
    lang_tbe = jnp.transpose(lang, (1, 0, 2)).reshape(T * B, E)

    # 2a) Hoisted LSTM input projection: one big MXU matmul, emitted in bf16,
    #     reshaped (free) to (T, B, 4H) -- no HBM transpose.
    gx = pallas_linear(lang_tbe, params['w_ih'], params['b_lstm'],
                       block_m=cfg['block_m'], out_dtype=BF16,
                       vmem_limit=cfg['vmem_limit']).reshape(T, B, 4 * H)

    # 2b) LSTM recurrence, gridded over batch -> last hidden state == lang_feat[:, -1]
    bB = min(B, cfg['lstm_bb'])
    q_feat = pl.pallas_call(
        lstm_last_kernel,
        out_shape=jax.ShapeDtypeStruct((B, H), jnp.float32),
        grid=(pl.cdiv(B, bB),),
        in_specs=[pl.BlockSpec((T, bB, 4 * H), lambda i: (0, i, 0)),      # gx streamed per block
                  _invariant_spec((H, 4 * H), lambda i: (0, 0))],         # whh resident
        out_specs=pl.BlockSpec((bB, H), lambda i: (i, 0)),
        compiler_params=pltpu.CompilerParams(
            dimension_semantics=("parallel",),
            vmem_limit_bytes=cfg['vmem_limit']),
    )(gx, params['w_hh'])

    # 3+4) Fused VQAAdapter + TDA backbone, gridded over batch blocks.
    Bn, Nobj, Fimg = frcn_feat.shape
    nobj_pad = _round_up(Nobj, 8)                                         # sublane-aligned reshapes
    if nobj_pad != Nobj:
        frcn_feat = jnp.pad(frcn_feat, ((0, 0), (0, nobj_pad - Nobj), (0, 0)))
    frcn_flat = frcn_feat.reshape(Bn * nobj_pad, Fimg)                    # f32, no standalone cast

    bb = min(B, cfg['tda_bb'])
    nb = pl.cdiv(B, bb)
    inv = lambda shape: _invariant_spec(shape, lambda i: (0, 0))

    img_flat, joint = pl.pallas_call(
        functools.partial(tda_kernel, nobj=nobj_pad, nobj_real=Nobj),
        out_shape=(jax.ShapeDtypeStruct((B * nobj_pad, H), jnp.float32),
                   jax.ShapeDtypeStruct((B, H), jnp.float32)),
        grid=(nb,),
        in_specs=[
            pl.BlockSpec((bb, H), lambda i: (i, 0)),                      # q_feat
            pl.BlockSpec((bb * nobj_pad, Fimg), lambda i: (i, 0)),        # frcn rows (batch-major)
            inv((Fimg, H)), inv((1, H)),                                  # adapter W, b
            inv((H, H)), inv((1, H)),                                     # AttnMap.linear_q
            inv((H, H)), inv((1, H)),                                     # AttnMap.linear_v
            inv((H, H)), inv((H, H)), inv((1, H)),                        # AttnMap.nonlinear (v/q)
            inv((1, H)),                                                  # attention row vector
            pl.BlockSpec((1, 1), lambda i: (0, 0), memory_space=SMEM),    # scalar attention bias
            inv((H, H)), inv((1, H)),                                     # TDA.q_net
            inv((H, H)), inv((1, H)),                                     # TDA.v_net
        ],
        out_specs=(pl.BlockSpec((bb * nobj_pad, H), lambda i: (i, 0)),
                   pl.BlockSpec((bb, H), lambda i: (i, 0))),
        compiler_params=pltpu.CompilerParams(
            dimension_semantics=("parallel",),
            vmem_limit_bytes=cfg['vmem_limit']),
    )(q_feat, frcn_flat,
      params['w_adapt'], params['b_adapt'],
      params['w_att_q'], params['b_att_q'], params['w_att_v'], params['b_att_v'],
      params['w_nl_v'], params['w_nl_q'], params['b_nl'],
      params['w_att'], params['b_att'],
      params['w_qnet'], params['b_qnet'], params['w_vnet'], params['b_vnet'])

    img_feat = img_flat.reshape(Bn, nobj_pad, H)
    if nobj_pad != Nobj:
        img_feat = img_feat[:, :Nobj]

    # 5) classifier head: fc1 (M-tiled linear) then a single relu+classifier call
    fc1 = pallas_linear(joint, params['w_fc1'], params['b_fc1'],
                        block_m=cfg['block_m'], vmem_limit=cfg['vmem_limit'])  # 'before_logits'
    logits = classifier_logits(fc1, params['w_clf'], params['b_clf'],
                               answer_size, cfg['vmem_limit'])

    return {'logits': logits,
            'before_logits': fc1,
            'question_features': q_feat,
            'visual_features': img_feat,
            'joint_features': joint}


# ----------------------------------------------------------------------------
# Deterministic synthetic parameter init (shapes follow the module's __init__)
# ----------------------------------------------------------------------------
def init_params(key, *, token_size, word_embed, hidden, img_feat_size, flat_out, answer_size):
    ks = jax.random.split(key, 20)

    def w(k, shape, scale=0.08):
        return jax.random.normal(k, shape, jnp.float32) * scale

    H = hidden
    return {
        'emb': w(ks[0], (token_size, word_embed), 0.1),          # nn.Embedding (GloVe stand-in)
        'w_ih': w(ks[1], (word_embed, 4 * H)),                   # LSTM W_ih^T (gate order i,f,g,o)
        'w_hh': w(ks[2], (H, 4 * H)),                            # LSTM W_hh^T
        'b_lstm': w(ks[3], (1, 4 * H), 0.01),                    # b_ih + b_hh combined
        'w_adapt': w(ks[4], (img_feat_size, H)),                 # VQAAdapter frcn linear
        'b_adapt': jnp.zeros((H,), jnp.float32),
        'w_att_q': w(ks[5], (H, H)),                             # AttnMap.linear_q
        'b_att_q': w(ks[6], (1, H), 0.01),
        'w_att_v': w(ks[7], (H, H)),                             # AttnMap.linear_v
        'b_att_v': w(ks[8], (1, H), 0.01),
        'w_nl_v': w(ks[9], (H, H)),                              # AttnMap.nonlinear (v part)
        'w_nl_q': w(ks[10], (H, H)),                             # AttnMap.nonlinear (q part)
        'b_nl': w(ks[11], (1, H), 0.01),
        'w_att': w(ks[12], (1, H)),                              # AttnMap.linear (H -> 1), as row
        'b_att': w(ks[13], (1, 1), 0.01),
        'w_qnet': w(ks[14], (H, H)),                             # TDA.q_net
        'b_qnet': w(ks[15], (1, H), 0.01),
        'w_vnet': w(ks[16], (H, H)),                             # TDA.v_net
        'b_vnet': w(ks[17], (1, H), 0.01),
        'w_fc1': w(ks[18], (H, flat_out)),                       # fc1 (weight_norm Linear)
        'b_fc1': jnp.zeros((1, flat_out), jnp.float32),
        'w_clf': w(ks[19], (flat_out, answer_size)),             # classifier
        'b_clf': jnp.zeros((1, answer_size), jnp.float32),
    }


if __name__ == "__main__":
    key = jax.random.PRNGKey(0)
    B, T, NOBJ = 2, 8, 8
    TOKEN_SIZE, WORD_EMBED, HIDDEN = 50, 16, 32
    IMG_FEAT, FLAT_OUT, ANSWER = 24, 64, 10

    kp, kf, kb, kq = jax.random.split(key, 4)
    params = init_params(kp, token_size=TOKEN_SIZE, word_embed=WORD_EMBED, hidden=HIDDEN,
                         img_feat_size=IMG_FEAT, flat_out=FLAT_OUT, answer_size=ANSWER)
    prepped = prepare_params(params)                              # one-time, outside jit

    frcn_feat = jax.random.normal(kf, (B, NOBJ, IMG_FEAT), jnp.float32)
    bbox_feat = jax.random.normal(kb, (B, NOBJ, 5), jnp.float32)
    question_token_ixs = jax.random.randint(kq, (B, T), 0, TOKEN_SIZE)

    fwd = jax.jit(functools.partial(updn_forward, answer_size=ANSWER))
    out = fwd(prepped, frcn_feat, bbox_feat, question_token_ixs)
    jax.block_until_ready(out)

    assert out['logits'].shape == (B, ANSWER)
    assert out['before_logits'].shape == (B, FLAT_OUT)
    assert out['question_features'].shape == (B, HIDDEN)
    assert out['visual_features'].shape == (B, NOBJ, HIDDEN)
    assert out['joint_features'].shape == (B, HIDDEN)
    assert all(bool(jnp.all(jnp.isfinite(v))) for v in out.values())
    print("KERNEL_OK")
</pallas_src>

<mosaic_0001>
module attributes {stable_mosaic.version = 11 : i64} {
  func.func @_copy_probe_kernel(%arg0: i32, %arg1: memref<8x128xf32, #tpu.memory_space<vmem>>, %arg2: memref<8x128xf32, #tpu.memory_space<vmem>>) attributes {dimension_semantics = [#tpu.dimension_semantics<arbitrary>], iteration_bounds = array<i64: 2>, scalar_prefetch = 0 : i64, scratch_operands = 0 : i64, tpu.core_type = #tpu.core_type<tc>, window_params = [{pipeline_mode = #tpu.pipeline_mode<synchronous>, transform_indices = @transform_0, window_bounds = array<i64: 8, 128>}, {pipeline_mode = #tpu.pipeline_mode<synchronous>, transform_indices = @transform_1, window_bounds = array<i64: 8, 128>}]} {
    %c0 = arith.constant 0 : index
    %c0_0 = arith.constant 0 : index
    %0 = vector.load %arg1[%c0, %c0_0] : memref<8x128xf32, #tpu.memory_space<vmem>>, vector<8x128xf32>
    %c0_1 = arith.constant 0 : index
    %c0_2 = arith.constant 0 : index
    %1 = vector.load %arg2[%c0_1, %c0_2] : memref<8x128xf32, #tpu.memory_space<vmem>>, vector<8x128xf32>
    tpu.vector_store %arg2[%c0_1, %c0_2], %0 {strides = array<i32>} : memref<8x128xf32, #tpu.memory_space<vmem>>, vector<8x128xf32>,
    return
  }
  func.func @transform_0(%arg0: i32) -> (i32, i32) {
    %c0_i32 = arith.constant 0 : i32
    %c0_i32_0 = arith.constant 0 : i32
    %c0_i32_1 = arith.constant 0 : i32
    return %c0_i32, %c0_i32_0 : i32, i32
  }
  func.func @transform_1(%arg0: i32) -> (i32, i32) {
    %c0_i32 = arith.constant 0 : i32
    %c0_i32_0 = arith.constant 0 : i32
    %c0_i32_1 = arith.constant 0 : i32
    return %c0_i32, %c0_i32_0 : i32, i32
  }
}

module attributes {stable_mosaic.version = 11 : i64} {
  func.func @lstm_last_kernel(%arg0: i32, %arg1: memref<8x2x128xbf16, #tpu.memory_space<vmem>>, %arg2: memref<32x128xbf16, #tpu.memory_space<vmem>>, %arg3: memref<2x32xf32, #tpu.memory_space<vmem>>) attributes {dimension_semantics = [#tpu.dimension_semantics<parallel>], iteration_bounds = array<i64: 1>, scalar_prefetch = 0 : i64, scratch_operands = 0 : i64, tpu.core_type = #tpu.core_type<tc>, window_params = [{transform_indices = @transform_0, window_bounds = array<i64: 8, 2, 128>}, {pipeline_mode = #tpu.pipeline_mode<synchronous>, transform_indices = @transform_1, window_bounds = array<i64: 32, 128>}, {transform_indices = @transform_2, window_bounds = array<i64: 2, 32>}]} {
    %c0 = arith.constant 0 : index
    %c0_0 = arith.constant 0 : index
    %0 = vector.load %arg2[%c0, %c0_0] : memref<32x128xbf16, #tpu.memory_space<vmem>>, vector<32x128xbf16>
    %cst = arith.constant 0.000000e+00 : f32
    %1 = vector.broadcast %cst : f32 to vector<2x32xf32>
    %cst_1 = arith.constant 0.000000e+00 : f32
    %2 = vector.broadcast %cst_1 : f32 to vector<2x32xf32>
    %c0_i32 = arith.constant 0 : i32
    %3 = arith.index_cast %c0_i32 : i32 to index
    %c0_2 = arith.constant 0 : index
    %c0_3 = arith.constant 0 : index
    %4 = vector.load %arg1[%3, %c0_2, %c0_3] : memref<8x2x128xbf16, #tpu.memory_space<vmem>>, vector<1x2x128xbf16>
    %5 = vector.shape_cast %4 : vector<1x2x128xbf16> to vector<2x128xbf16>
    %6 = arith.extf %5 : vector<2x128xbf16> to vector<2x128xf32>
    %7 = arith.truncf %1 : vector<2x32xf32> to vector<2x32xbf16>
    %cst_4 = arith.constant dense<0.000000e+00> : vector<2x128xf32>
    %8 = tpu.matmul %7, %0, %cst_4 {dimension_numbers = #tpu.dot_dimension_numbers<[1], [0], [0], [1], [0, 0, 1, 1], [], []>} : vector<2x32xbf16>, vector<32x128xbf16>, vector<2x128xf32> -> vector<2x128xf32>
    %9 = arith.addf %6, %8 : vector<2x128xf32>
    %10 = vector.extract_strided_slice %9 {offsets = [0, 0], sizes = [2, 32], strides = [1, 1]} : vector<2x128xf32> to vector<2x32xf32>
    %11 = arith.negf %10 : vector<2x32xf32>
    %12 = math.exp %11 : vector<2x32xf32>
    %cst_5 = arith.constant 1.000000e+00 : f32
    %13 = vector.broadcast %cst_5 : f32 to vector<2x32xf32>
    %14 = arith.addf %13, %12 : vector<2x32xf32>
    %15 = arith.divf %13, %14 : vector<2x32xf32>
    %16 = vector.extract_strided_slice %9 {offsets = [0, 32], sizes = [2, 32], strides = [1, 1]} : vector<2x128xf32> to vector<2x32xf32>
    %17 = arith.negf %16 : vector<2x32xf32>
    %18 = math.exp %17 : vector<2x32xf32>
    %cst_6 = arith.constant 1.000000e+00 : f32
    %19 = vector.broadcast %cst_6 : f32 to vector<2x32xf32>
    %20 = arith.addf %19, %18 : vector<2x32xf32>
    %21 = arith.divf %19, %20 : vector<2x32xf32>
    %22 = vector.extract_strided_slice %9 {offsets = [0, 64], sizes = [2, 32], strides = [1, 1]} : vector<2x128xf32> to vector<2x32xf32>
    %23 = math.tanh %22 : vector<2x32xf32>
    %24 = vector.extract_strided_slice %9 {offsets = [0, 96], sizes = [2, 32], strides = [1, 1]} : vector<2x128xf32> to vector<2x32xf32>
    %25 = arith.negf %24 : vector<2x32xf32>
    %26 = math.exp %25 : vector<2x32xf32>
    %cst_7 = arith.constant 1.000000e+00 : f32
    %27 = vector.broadcast %cst_7 : f32 to vector<2x32xf32>
    %28 = arith.addf %27, %26 : vector<2x32xf32>
    %29 = arith.divf %27, %28 : vector<2x32xf32>
    %30 = arith.mulf %21, %2 : vector<2x32xf32>
    %31 = arith.mulf %15, %23 : vector<2x32xf32>
    %32 = arith.addf %30, %31 : vector<2x32xf32>
    %33 = math.tanh %32 : vector<2x32xf32>
    %34 = arith.mulf %29, %33 : vector<2x32xf32>
    %c1_i32 = arith.constant 1 : i32
    %35 = arith.index_cast %c1_i32 : i32 to index
    %c0_8 = arith.constant 0 : index
    %c0_9 = arith.constant 0 : index
    %36 = vector.load %arg1[%35, %c0_8, %c0_9] : memref<8x2x128xbf16, #tpu.memory_space<vmem>>, vector<1x2x128xbf16>
    %37 = vector.shape_cast %36 : vector<1x2x128xbf16> to vector<2x128xbf16>
    %38 = arith.extf %37 : vector<2x128xbf16> to vector<2x128xf32>
    %39 = arith.truncf %34 : vector<2x32xf32> to vector<2x32xbf16>
    %cst_10 = arith.constant dense<0.000000e+00> : vector<2x128xf32>
    %40 = tpu.matmul %39, %0, %cst_10 {dimension_numbers = #tpu.dot_dimension_numbers<[1], [0], [0], [1], [0, 0, 1, 1], [], []>} : vector<2x32xbf16>, vector<32x128xbf16>, vector<2x128xf32> -> vector<2x128xf32>
    %41 = arith.addf %38, %40 : vector<2x128xf32>
    %42 = vector.extract_strided_slice %41 {offsets = [0, 0], sizes = [2, 32], strides = [1, 1]} : vector<2x128xf32> to vector<2x32xf32>
    %43 = arith.negf %42 : vector<2x32xf32>
    %44 = math.exp %43 : vector<2x32xf32>
    %cst_11 = arith.constant 1.000000e+00 : f32
    %45 = vector.broadcast %cst_11 : f32 to vector<2x32xf32>
    %46 = arith.addf %45, %44 : vector<2x32xf32>
    %47 = arith.divf %45, %46 : vector<2x32xf32>
    %48 = vector.extract_strided_slice %41 {offsets = [0, 32], sizes = [2, 32], strides = [1, 1]} : vector<2x128xf32> to vector<2x32xf32>
    %49 = arith.negf %48 : vector<2x32xf32>
    %50 = math.exp %49 : vector<2x32xf32>
    %cst_12 = arith.constant 1.000000e+00 : f32
    %51 = vector.broadcast %cst_12 : f32 to vector<2x32xf32>
    %52 = arith.addf %51, %50 : vector<2x32xf32>
    %53 = arith.divf %51, %52 : vector<2x32xf32>
    %54 = vector.extract_strided_slice %41 {offsets = [0, 64], sizes = [2, 32], strides = [1, 1]} : vector<2x128xf32> to vector<2x32xf32>
    %55 = math.tanh %54 : vector<2x32xf32>
    %56 = vector.extract_strided_slice %41 {offsets = [0, 96], sizes = [2, 32], strides = [1, 1]} : vector<2x128xf32> to vector<2x32xf32>
    %57 = arith.negf %56 : vector<2x32xf32>
    %58 = math.exp %57 : vector<2x32xf32>
    %cst_13 = arith.constant 1.000000e+00 : f32
    %59 = vector.broadcast %cst_13 : f32 to vector<2x32xf32>
    %60 = arith.addf %59, %58 : vector<2x32xf32>
    %61 = arith.divf %59, %60 : vector<2x32xf32>
    %62 = arith.mulf %53, %32 : vector<2x32xf32>
    %63 = arith.mulf %47, %55 : vector<2x32xf32>
    %64 = arith.addf %62, %63 : vector<2x32xf32>
    %65 = math.tanh %64 : vector<2x32xf32>
    %66 = arith.mulf %61, %65 : vector<2x32xf32>
    %c2_i32 = arith.constant 2 : i32
    %67 = arith.index_cast %c2_i32 : i32 to index
    %c0_14 = arith.constant 0 : index
    %c0_15 = arith.constant 0 : index
    %68 = vector.load %arg1[%67, %c0_14, %c0_15] : memref<8x2x128xbf16, #tpu.memory_space<vmem>>, vector<1x2x128xbf16>
    %69 = vector.shape_cast %68 : vector<1x2x128xbf16> to vector<2x128xbf16>
    %70 = arith.extf %69 : vector<2x128xbf16> to vector<2x128xf32>
    %71 = arith.truncf %66 : vector<2x32xf32> to vector<2x32xbf16>
    %cst_16 = arith.constant dense<0.000000e+00> : vector<2x128xf32>
    %72 = tpu.matmul %71, %0, %cst_16 {dimension_numbers = #tpu.dot_dimension_numbers<[1], [0], [0], [1], [0, 0, 1, 1], [], []>} : vector<2x32xbf16>, vector<32x128xbf16>, vector<2x128xf32> -> vector<2x128xf32>
    %73 = arith.addf %70, %72 : vector<2x128xf32>
    %74 = vector.extract_strided_slice %73 {offsets = [0, 0], sizes = [2, 32], strides = [1, 1]} : vector<2x128xf32> to vector<2x32xf32>
    %75 = arith.negf %74 : vector<2x32xf32>
    %76 = math.exp %75 : vector<2x32xf32>
    %cst_17 = arith.constant 1.000000e+00 : f32
    %77 = vector.broadcast %cst_17 : f32 to vector<2x32xf32>
    %78 = arith.addf %77, %76 : vector<2x32xf32>
    %79 = arith.divf %77, %78 : vector<2x32xf32>
    %80 = vector.extract_strided_slice %73 {offsets = [0, 32], sizes = [2, 32], strides = [1, 1]} : vector<2x128xf32> to vector<2x32xf32>
    %81 = arith.negf %80 : vector<2x32xf32>
    %82 = math.exp %81 : vector<2x32xf32>
    %cst_18 = arith.constant 1.000000e+00 : f32
    %83 = vector.broadcast %cst_18 : f32 to vector<2x32xf32>
    %84 = arith.addf %83, %82 : vector<2x32xf32>
    %85 = arith.divf %83, %84 : vector<2x32xf32>
    %86 = vector.extract_strided_slice %73 {offsets = [0, 64], sizes = [2, 32], strides = [1, 1]} : vector<2x128xf32> to vector<2x32xf32>
    %87 = math.tanh %86 : vector<2x32xf32>
    %88 = vector.extract_strided_slice %73 {offsets = [0, 96], sizes = [2, 32], strides = [1, 1]} : vector<2x128xf32> to vector<2x32xf32>
    %89 = arith.negf %88 : vector<2x32xf32>
    %90 = math.exp %89 : vector<2x32xf32>
    %cst_19 = arith.constant 1.000000e+00 : f32
    %91 = vector.broadcast %cst_19 : f32 to vector<2x32xf32>
    %92 = arith.addf %91, %90 : vector<2x32xf32>
    %93 = arith.divf %91, %92 : vector<2x32xf32>
    %94 = arith.mulf %85, %64 : vector<2x32xf32>
    %95 = arith.mulf %79, %87 : vector<2x32xf32>
    %96 = arith.addf %94, %95 : vector<2x32xf32>
    %97 = math.tanh %96 : vector<2x32xf32>
    %98 = arith.mulf %93, %97 : vector<2x32xf32>
    %c3_i32 = arith.constant 3 : i32
    %99 = arith.index_cast %c3_i32 : i32 to index
    %c0_20 = arith.constant 0 : index
    %c0_21 = arith.constant 0 : index
    %100 = vector.load %arg1[%99, %c0_20, %c0_21] : memref<8x2x128xbf16, #tpu.memory_space<vmem>>, vector<1x2x128xbf16>
    %101 = vector.shape_cast %100 : vector<1x2x128xbf16> to vector<2x128xbf16>
    %102 = arith.extf %101 : vector<2x128xbf16> to vector<2x128xf32>
    %103 = arith.truncf %98 : vector<2x32xf32> to vector<2x32xbf16>
    %cst_22 = arith.constant dense<0.000000e+00> : vector<2x128xf32>
    %104 = tpu.matmul %103, %0, %cst_22 {dimension_numbers = #tpu.dot_dimension_numbers<[1], [0], [0], [1], [0, 0, 1, 1], [], []>} : vector<2x32xbf16>, vector<32x128xbf16>, vector<2x128xf32> -> vector<2x128xf32>
    %105 = arith.addf %102, %104 : vector<2x128xf32>
    %106 = vector.extract_strided_slice %105 {offsets = [0, 0], sizes = [2, 32], strides = [1, 1]} : vector<2x128xf32> to vector<2x32xf32>
    %107 = arith.negf %106 : vector<2x32xf32>
    %108 = math.exp %107 : vector<2x32xf32>
    %cst_23 = arith.constant 1.000000e+00 : f32
    %109 = vector.broadcast %cst_23 : f32 to vector<2x32xf32>
    %110 = arith.addf %109, %108 : vector<2x32xf32>
    %111 = arith.divf %109, %110 : vector<2x32xf32>
    %112 = vector.extract_strided_slice %105 {offsets = [0, 32], sizes = [2, 32], strides = [1, 1]} : vector<2x128xf32> to vector<2x32xf32>
    %113 = arith.negf %112 : vector<2x32xf32>
    %114 = math.exp %113 : vector<2x32xf32>
    %cst_24 = arith.constant 1.000000e+00 : f32
    %115 = vector.broadcast %cst_24 : f32 to vector<2x32xf32>
    %116 = arith.addf %115, %114 : vector<2x32xf32>
    %117 = arith.divf %115, %116 : vector<2x32xf32>
    %118 = vector.extract_strided_slice %105 {offsets = [0, 64], sizes = [2, 32], strides = [1, 1]} : vector<2x128xf32> to vector<2x32xf32>
    %119 = math.tanh %118 : vector<2x32xf32>
    %120 = vector.extract_strided_slice %105 {offsets = [0, 96], sizes = [2, 32], strides = [1, 1]} : vector<2x128xf32> to vector<2x32xf32>
    %121 = arith.negf %120 : vector<2x32xf32>
    %122 = math.exp %121 : vector<2x32xf32>
    %cst_25 = arith.constant 1.000000e+00 : f32
    %123 = vector.broadcast %cst_25 : f32 to vector<2x32xf32>
    %124 = arith.addf %123, %122 : vector<2x32xf32>
    %125 = arith.divf %123, %124 : vector<2x32xf32>
    %126 = arith.mulf %117, %96 : vector<2x32xf32>
    %127 = arith.mulf %111, %119 : vector<2x32xf32>
    %128 = arith.addf %126, %127 : vector<2x32xf32>
    %129 = math.tanh %128 : vector<2x32xf32>
    %130 = arith.mulf %125, %129 : vector<2x32xf32>
    %c4_i32 = arith.constant 4 : i32
    %131 = arith.index_cast %c4_i32 : i32 to index
    %c0_26 = arith.constant 0 : index
    %c0_27 = arith.constant 0 : index
    %132 = vector.load %arg1[%131, %c0_26, %c0_27] : memref<8x2x128xbf16, #tpu.memory_space<vmem>>, vector<1x2x128xbf16>
    %133 = vector.shape_cast %132 : vector<1x2x128xbf16> to vector<2x128xbf16>
    %134 = arith.extf %133 : vector<2x128xbf16> to vector<2x128xf32>
    %135 = arith.truncf %130 : vector<2x32xf32> to vector<2x32xbf16>
    %cst_28 = arith.constant dense<0.000000e+00> : vector<2x128xf32>
    %136 = tpu.matmul %135, %0, %cst_28 {dimension_numbers = #tpu.dot_dimension_numbers<[1], [0], [0], [1], [0, 0, 1, 1], [], []>} : vector<2x32xbf16>, vector<32x128xbf16>, vector<2x128xf32> -> vector<2x128xf32>
    %137 = arith.addf %134, %136 : vector<2x128xf32>
    %138 = vector.extract_strided_slice %137 {offsets = [0, 0], sizes = [2, 32], strides = [1, 1]} : vector<2x128xf32> to vector<2x32xf32>
    %139 = arith.negf %138 : vector<2x32xf32>
    %140 = math.exp %139 : vector<2x32xf32>
    %cst_29 = arith.constant 1.000000e+00 : f32
    %141 = vector.broadcast %cst_29 : f32 to vector<2x32xf32>
    %142 = arith.addf %141, %140 : vector<2x32xf32>
    %143 = arith.divf %141, %142 : vector<2x32xf32>
    %144 = vector.extract_strided_slice %137 {offsets = [0, 32], sizes = [2, 32], strides = [1, 1]} : vector<2x128xf32> to vector<2x32xf32>
    %145 = arith.negf %144 : vector<2x32xf32>
    %146 = math.exp %145 : vector<2x32xf32>
    %cst_30 = arith.constant 1.000000e+00 : f32
    %147 = vector.broadcast %cst_30 : f32 to vector<2x32xf32>
    %148 = arith.addf %147, %146 : vector<2x32xf32>
    %149 = arith.divf %147, %148 : vector<2x32xf32>
    %150 = vector.extract_strided_slice %137 {offsets = [0, 64], sizes = [2, 32], strides = [1, 1]} : vector<2x128xf32> to vector<2x32xf32>
    %151 = math.tanh %150 : vector<2x32xf32>
    %152 = vector.extract_strided_slice %137 {offsets = [0, 96], sizes = [2, 32], strides = [1, 1]} : vector<2x128xf32> to vector<2x32xf32>
    %153 = arith.negf %152 : vector<2x32xf32>
    %154 = math.exp %153 : vector<2x32xf32>
    %cst_31 = arith.constant 1.000000e+00 : f32
    %155 = vector.broadcast %cst_31 : f32 to vector<2x32xf32>
    %156 = arith.addf %155, %154 : vector<2x32xf32>
    %157 = arith.divf %155, %156 : vector<2x32xf32>
    %158 = arith.mulf %149, %128 : vector<2x32xf32>
    %159 = arith.mulf %143, %151 : vector<2x32xf32>
    %160 = arith.addf %158, %159 : vector<2x32xf32>
    %161 = math.tanh %160 : vector<2x32xf32>
    %162 = arith.mulf %157, %161 : vector<2x32xf32>
    %c5_i32 = arith.constant 5 : i32
    %163 = arith.index_cast %c5_i32 : i32 to index
    %c0_32 = arith.constant 0 : index
    %c0_33 = arith.constant 0 : index
    %164 = vector.load %arg1[%163, %c0_32, %c0_33] : memref<8x2x128xbf16, #tpu.memory_space<vmem>>, vector<1x2x128xbf16>
    %165 = vector.shape_cast %164 : vector<1x2x128xbf16> to vector<2x128xbf16>
    %166 = arith.extf %165 : vector<2x128xbf16> to vector<2x128xf32>
    %167 = arith.truncf %162 : vector<2x32xf32> to vector<2x32xbf16>
    %cst_34 = arith.constant dense<0.000000e+00> : vector<2x128xf32>
    %168 = tpu.matmul %167, %0, %cst_34 {dimension_numbers = #tpu.dot_dimension_numbers<[1], [0], [0], [1], [0, 0, 1, 1], [], []>} : vector<2x32xbf16>, vector<32x128xbf16>, vector<2x128xf32> -> vector<2x128xf32>
    %169 = arith.addf %166, %168 : vector<2x128xf32>
    %170 = vector.extract_strided_slice %169 {offsets = [0, 0], sizes = [2, 32], strides = [1, 1]} : vector<2x128xf32> to vector<2x32xf32>
    %171 = arith.negf %170 : vector<2x32xf32>
    %172 = math.exp %171 : vector<2x32xf32>
    %cst_35 = arith.constant 1.000000e+00 : f32
    %173 = vector.broadcast %cst_35 : f32 to vector<2x32xf32>
    %174 = arith.addf %173, %172 : vector<2x32xf32>
    %175 = arith.divf %173, %174 : vector<2x32xf32>
    %176 = vector.extract_strided_slice %169 {offsets = [0, 32], sizes = [2, 32], strides = [1, 1]} : vector<2x128xf32> to vector<2x32xf32>
    %177 = arith.negf %176 : vector<2x32xf32>
    %178 = math.exp %177 : vector<2x32xf32>
    %cst_36 = arith.constant 1.000000e+00 : f32
    %179 = vector.broadcast %cst_36 : f32 to vector<2x32xf32>
    %180 = arith.addf %179, %178 : vector<2x32xf32>
    %181 = arith.divf %179, %180 : vector<2x32xf32>
    %182 = vector.extract_strided_slice %169 {offsets = [0, 64], sizes = [2, 32], strides = [1, 1]} : vector<2x128xf32> to vector<2x32xf32>
    %183 = math.tanh %182 : vector<2x32xf32>
    %184 = vector.extract_strided_slice %169 {offsets = [0, 96], sizes = [2, 32], strides = [1, 1]} : vector<2x128xf32> to vector<2x32xf32>
    %185 = arith.negf %184 : vector<2x32xf32>
    %186 = math.exp %185 : vector<2x32xf32>
    %cst_37 = arith.constant 1.000000e+00 : f32
    %187 = vector.broadcast %cst_37 : f32 to vector<2x32xf32>
    %188 = arith.addf %187, %186 : vector<2x32xf32>
    %189 = arith.divf %187, %188 : vector<2x32xf32>
    %190 = arith.mulf %181, %160 : vector<2x32xf32>
    %191 = arith.mulf %175, %183 : vector<2x32xf32>
    %192 = arith.addf %190, %191 : vector<2x32xf32>
    %193 = math.tanh %192 : vector<2x32xf32>
    %194 = arith.mulf %189, %193 : vector<2x32xf32>
    %c6_i32 = arith.constant 6 : i32
    %195 = arith.index_cast %c6_i32 : i32 to index
    %c0_38 = arith.constant 0 : index
    %c0_39 = arith.constant 0 : index
    %196 = vector.load %arg1[%195, %c0_38, %c0_39] : memref<8x2x128xbf16, #tpu.memory_space<vmem>>, vector<1x2x128xbf16>
    %197 = vector.shape_cast %196 : vector<1x2x128xbf16> to vector<2x128xbf16>
    %198 = arith.extf %197 : vector<2x128xbf16> to vector<2x128xf32>
    %199 = arith.truncf %194 : vector<2x32xf32> to vector<2x32xbf16>
    %cst_40 = arith.constant dense<0.000000e+00> : vector<2x128xf32>
    %200 = tpu.matmul %199, %0, %cst_40 {dimension_numbers = #tpu.dot_dimension_numbers<[1], [0], [0], [1], [0, 0, 1, 1], [], []>} : vector<2x32xbf16>, vector<32x128xbf16>, vector<2x128xf32> -> vector<2x128xf32>
    %201 = arith.addf %198, %200 : vector<2x128xf32>
    %202 = vector.extract_strided_slice %201 {offsets = [0, 0], sizes = [2, 32], strides = [1, 1]} : vector<2x128xf32> to vector<2x32xf32>
    %203 = arith.negf %202 : vector<2x32xf32>
    %204 = math.exp %203 : vector<2x32xf32>
    %cst_41 = arith.constant 1.000000e+00 : f32
    %205 = vector.broadcast %cst_41 : f32 to vector<2x32xf32>
    %206 = arith.addf %205, %204 : vector<2x32xf32>
    %207 = arith.divf %205, %206 : vector<2x32xf32>
    %208 = vector.extract_strided_slice %201 {offsets = [0, 32], sizes = [2, 32], strides = [1, 1]} : vector<2x128xf32> to vector<2x32xf32>
    %209 = arith.negf %208 : vector<2x32xf32>
    %210 = math.exp %209 : vector<2x32xf32>
    %cst_42 = arith.constant 1.000000e+00 : f32
    %211 = vector.broadcast %cst_42 : f32 to vector<2x32xf32>
    %212 = arith.addf %211, %210 : vector<2x32xf32>
    %213 = arith.divf %211, %212 : vector<2x32xf32>
    %214 = vector.extract_strided_slice %201 {offsets = [0, 64], sizes = [2, 32], strides = [1, 1]} : vector<2x128xf32> to vector<2x32xf32>
    %215 = math.tanh %214 : vector<2x32xf32>
    %216 = vector.extract_strided_slice %201 {offsets = [0, 96], sizes = [2, 32], strides = [1, 1]} : vector<2x128xf32> to vector<2x32xf32>
    %217 = arith.negf %216 : vector<2x32xf32>
    %218 = math.exp %217 : vector<2x32xf32>
    %cst_43 = arith.constant 1.000000e+00 : f32
    %219 = vector.broadcast %cst_43 : f32 to vector<2x32xf32>
    %220 = arith.addf %219, %218 : vector<2x32xf32>
    %221 = arith.divf %219, %220 : vector<2x32xf32>
    %222 = arith.mulf %213, %192 : vector<2x32xf32>
    %223 = arith.mulf %207, %215 : vector<2x32xf32>
    %224 = arith.addf %222, %223 : vector<2x32xf32>
    %225 = math.tanh %224 : vector<2x32xf32>
    %226 = arith.mulf %221, %225 : vector<2x32xf32>
    %c7_i32 = arith.constant 7 : i32
    %227 = arith.index_cast %c7_i32 : i32 to index
    %c0_44 = arith.constant 0 : index
    %c0_45 = arith.constant 0 : index
    %228 = vector.load %arg1[%227, %c0_44, %c0_45] : memref<8x2x128xbf16, #tpu.memory_space<vmem>>, vector<1x2x128xbf16>
    %229 = vector.shape_cast %228 : vector<1x2x128xbf16> to vector<2x128xbf16>
    %230 = arith.extf %229 : vector<2x128xbf16> to vector<2x128xf32>
    %231 = arith.truncf %226 : vector<2x32xf32> to vector<2x32xbf16>
    %cst_46 = arith.constant dense<0.000000e+00> : vector<2x128xf32>
    %232 = tpu.matmul %231, %0, %cst_46 {dimension_numbers = #tpu.dot_dimension_numbers<[1], [0], [0], [1], [0, 0, 1, 1], [], []>} : vector<2x32xbf16>, vector<32x128xbf16>, vector<2x128xf32> -> vector<2x128xf32>
    %233 = arith.addf %230, %232 : vector<2x128xf32>
    %234 = vector.extract_strided_slice %233 {offsets = [0, 0], sizes = [2, 32], strides = [1, 1]} : vector<2x128xf32> to vector<2x32xf32>
    %235 = arith.negf %234 : vector<2x32xf32>
    %236 = math.exp %235 : vector<2x32xf32>
    %cst_47 = arith.constant 1.000000e+00 : f32
    %237 = vector.broadcast %cst_47 : f32 to vector<2x32xf32>
    %238 = arith.addf %237, %236 : vector<2x32xf32>
    %239 = arith.divf %237, %238 : vector<2x32xf32>
    %240 = vector.extract_strided_slice %233 {offsets = [0, 32], sizes = [2, 32], strides = [1, 1]} : vector<2x128xf32> to vector<2x32xf32>
    %241 = arith.negf %240 : vector<2x32xf32>
    %242 = math.exp %241 : vector<2x32xf32>
    %cst_48 = arith.constant 1.000000e+00 : f32
    %243 = vector.broadcast %cst_48 : f32 to vector<2x32xf32>
    %244 = arith.addf %243, %242 : vector<2x32xf32>
    %245 = arith.divf %243, %244 : vector<2x32xf32>
    %246 = vector.extract_strided_slice %233 {offsets = [0, 64], sizes = [2, 32], strides = [1, 1]} : vector<2x128xf32> to vector<2x32xf32>
    %247 = math.tanh %246 : vector<2x32xf32>
    %248 = vector.extract_strided_slice %233 {offsets = [0, 96], sizes = [2, 32], strides = [1, 1]} : vector<2x128xf32> to vector<2x32xf32>
    %249 = arith.negf %248 : vector<2x32xf32>
    %250 = math.exp %249 : vector<2x32xf32>
    %cst_49 = arith.constant 1.000000e+00 : f32
    %251 = vector.broadcast %cst_49 : f32 to vector<2x32xf32>
    %252 = arith.addf %251, %250 : vector<2x32xf32>
    %253 = arith.divf %251, %252 : vector<2x32xf32>
    %254 = arith.mulf %245, %224 : vector<2x32xf32>
    %255 = arith.mulf %239, %247 : vector<2x32xf32>
    %256 = arith.addf %254, %255 : vector<2x32xf32>
    %257 = math.tanh %256 : vector<2x32xf32>
    %258 = arith.mulf %253, %257 : vector<2x32xf32>
    %c8_i32 = arith.constant 8 : i32
    %c0_50 = arith.constant 0 : index
    %c0_51 = arith.constant 0 : index
    %259 = vector.load %arg3[%c0_50, %c0_51] : memref<2x32xf32, #tpu.memory_space<vmem>>, vector<2x32xf32>
    tpu.vector_store %arg3[%c0_50, %c0_51], %258 {strides = array<i32>} : memref<2x32xf32, #tpu.memory_space<vmem>>, vector<2x32xf32>,
    return
  }
  func.func @transform_0(%arg0: i32) -> (i32, i32, i32) {
    %c0_i32 = arith.constant 0 : i32
    %c0_i32_0 = arith.constant 0 : i32
    %c0_i32_1 = arith.constant 0 : i32
    return %c0_i32, %arg0, %c0_i32_0 : i32, i32, i32
  }
  func.func @transform_1(%arg0: i32) -> (i32, i32) {
    %c0_i32 = arith.constant 0 : i32
    %c0_i32_0 = arith.constant 0 : i32
    %c0_i32_1 = arith.constant 0 : i32
    return %c0_i32, %c0_i32_0 : i32, i32
  }
  func.func @transform_2(%arg0: i32) -> (i32, i32) {
    %c0_i32 = arith.constant 0 : i32
    %c0_i32_0 = arith.constant 0 : i32
    return %arg0, %c0_i32 : i32, i32
  }
}

module attributes {stable_mosaic.version = 11 : i64} {
  func.func @tda_kernel(%arg0: i32, %arg1: memref<2x32xf32, #tpu.memory_space<vmem>>, %arg2: memref<16x24xf32, #tpu.memory_space<vmem>>, %arg3: memref<24x32xbf16, #tpu.memory_space<vmem>>, %arg4: memref<1x32xf32, #tpu.memory_space<vmem>>, %arg5: memref<32x32xbf16, #tpu.memory_space<vmem>>, %arg6: memref<1x32xf32, #tpu.memory_space<vmem>>, %arg7: memref<32x32xbf16, #tpu.memory_space<vmem>>, %arg8: memref<1x32xf32, #tpu.memory_space<vmem>>, %arg9: memref<32x32xbf16, #tpu.memory_space<vmem>>, %arg10: memref<32x32xbf16, #tpu.memory_space<vmem>>, %arg11: memref<1x32xf32, #tpu.memory_space<vmem>>, %arg12: memref<1x32xf32, #tpu.memory_space<vmem>>, %arg13: memref<1x1xf32, #tpu.memory_space<smem>>, %arg14: memref<32x32xbf16, #tpu.memory_space<vmem>>, %arg15: memref<1x32xf32, #tpu.memory_space<vmem>>, %arg16: memref<32x32xbf16, #tpu.memory_space<vmem>>, %arg17: memref<1x32xf32, #tpu.memory_space<vmem>>, %arg18: memref<16x32xf32, #tpu.memory_space<vmem>>, %arg19: memref<2x32xf32, #tpu.memory_space<vmem>>) attributes {dimension_semantics = [#tpu.dimension_semantics<parallel>], iteration_bounds = array<i64: 1>, scalar_prefetch = 0 : i64, scratch_operands = 0 : i64, tpu.core_type = #tpu.core_type<tc>, window_params = [{transform_indices = @transform_0, window_bounds = array<i64: 2, 32>}, {transform_indices = @transform_1, window_bounds = array<i64: 16, 24>}, {pipeline_mode = #tpu.pipeline_mode<synchronous>, transform_indices = @transform_2, window_bounds = array<i64: 24, 32>}, {pipeline_mode = #tpu.pipeline_mode<synchronous>, transform_indices = @transform_3, window_bounds = array<i64: 1, 32>}, {pipeline_mode = #tpu.pipeline_mode<synchronous>, transform_indices = @transform_4, window_bounds = array<i64: 32, 32>}, {pipeline_mode = #tpu.pipeline_mode<synchronous>, transform_indices = @transform_5, window_bounds = array<i64: 1, 32>}, {pipeline_mode = #tpu.pipeline_mode<synchronous>, transform_indices = @transform_6, window_bounds = array<i64: 32, 32>}, {pipeline_mode = #tpu.pipeline_mode<synchronous>, transform_indices = @transform_7, window_bounds = array<i64: 1, 32>}, {pipeline_mode = #tpu.pipeline_mode<synchronous>, transform_indices = @transform_8, window_bounds = array<i64: 32, 32>}, {pipeline_mode = #tpu.pipeline_mode<synchronous>, transform_indices = @transform_9, window_bounds = array<i64: 32, 32>}, {pipeline_mode = #tpu.pipeline_mode<synchronous>, transform_indices = @transform_10, window_bounds = array<i64: 1, 32>}, {pipeline_mode = #tpu.pipeline_mode<synchronous>, transform_indices = @transform_11, window_bounds = array<i64: 1, 32>}, {transform_indices = @transform_12, window_bounds = array<i64: 1, 1>}, {pipeline_mode = #tpu.pipeline_mode<synchronous>, transform_indices = @transform_13, window_bounds = array<i64: 32, 32>}, {pipeline_mode = #tpu.pipeline_mode<synchronous>, transform_indices = @transform_14, window_bounds = array<i64: 1, 32>}, {pipeline_mode = #tpu.pipeline_mode<synchronous>, transform_indices = @transform_15, window_bounds = array<i64: 32, 32>}, {pipeline_mode = #tpu.pipeline_mode<synchronous>, transform_indices = @transform_16, window_bounds = array<i64: 1, 32>}, {transform_indices = @transform_17, window_bounds = array<i64: 16, 32>}, {transform_indices = @transform_18, window_bounds = array<i64: 2, 32>}]} {
    %c0 = arith.constant 0 : index
    %c0_0 = arith.constant 0 : index
    %0 = vector.load %arg1[%c0, %c0_0] : memref<2x32xf32, #tpu.memory_space<vmem>>, vector<2x32xf32>
    %1 = arith.truncf %0 : vector<2x32xf32> to vector<2x32xbf16>
    %c0_1 = arith.constant 0 : index
    %c0_2 = arith.constant 0 : index
    %2 = vector.load %arg2[%c0_1, %c0_2] : memref<16x24xf32, #tpu.memory_space<vmem>>, vector<16x24xf32>
    %3 = arith.truncf %2 : vector<16x24xf32> to vector<16x24xbf16>
    %c0_3 = arith.constant 0 : index
    %c0_4 = arith.constant 0 : index
    %4 = vector.load %arg3[%c0_3, %c0_4] : memref<24x32xbf16, #tpu.memory_space<vmem>>, vector<24x32xbf16>
    %cst = arith.constant dense<0.000000e+00> : vector<16x32xf32>
    %5 = tpu.matmul %3, %4, %cst {dimension_numbers = #tpu.dot_dimension_numbers<[1], [0], [0], [1], [0, 0, 1, 1], [], []>} : vector<16x24xbf16>, vector<24x32xbf16>, vector<16x32xf32> -> vector<16x32xf32>
    %c0_5 = arith.constant 0 : index
    %c0_6 = arith.constant 0 : index
    %6 = vector.load %arg4[%c0_5, %c0_6] : memref<1x32xf32, #tpu.memory_space<vmem>>, vector<1x32xf32>
    %7 = vector.broadcast %6 : vector<1x32xf32> to vector<16x32xf32>
    %8 = arith.addf %5, %7 : vector<16x32xf32>
    %c0_7 = arith.constant 0 : index
    %c0_8 = arith.constant 0 : index
    %9 = vector.load %arg18[%c0_7, %c0_8] : memref<16x32xf32, #tpu.memory_space<vmem>>, vector<16x32xf32>
    tpu.vector_store %arg18[%c0_7, %c0_8], %8 {strides = array<i32>} : memref<16x32xf32, #tpu.memory_space<vmem>>, vector<16x32xf32>,
    %10 = arith.truncf %8 : vector<16x32xf32> to vector<16x32xbf16>
    %c0_9 = arith.constant 0 : index
    %c0_10 = arith.constant 0 : index
    %11 = vector.load %arg5[%c0_9, %c0_10] : memref<32x32xbf16, #tpu.memory_space<vmem>>, vector<32x32xbf16>
    %cst_11 = arith.constant dense<0.000000e+00> : vector<2x32xf32>
    %12 = tpu.matmul %1, %11, %cst_11 {dimension_numbers = #tpu.dot_dimension_numbers<[1], [0], [0], [1], [0, 0, 1, 1], [], []>} : vector<2x32xbf16>, vector<32x32xbf16>, vector<2x32xf32> -> vector<2x32xf32>
    %c0_12 = arith.constant 0 : index
    %c0_13 = arith.constant 0 : index
    %13 = vector.load %arg6[%c0_12, %c0_13] : memref<1x32xf32, #tpu.memory_space<vmem>>, vector<1x32xf32>
    %14 = vector.broadcast %13 : vector<1x32xf32> to vector<2x32xf32>
    %15 = arith.addf %12, %14 : vector<2x32xf32>
    %c0_14 = arith.constant 0 : index
    %c0_15 = arith.constant 0 : index
    %16 = vector.load %arg7[%c0_14, %c0_15] : memref<32x32xbf16, #tpu.memory_space<vmem>>, vector<32x32xbf16>
    %cst_16 = arith.constant dense<0.000000e+00> : vector<16x32xf32>
    %17 = tpu.matmul %10, %16, %cst_16 {dimension_numbers = #tpu.dot_dimension_numbers<[1], [0], [0], [1], [0, 0, 1, 1], [], []>} : vector<16x32xbf16>, vector<32x32xbf16>, vector<16x32xf32> -> vector<16x32xf32>
    %c0_17 = arith.constant 0 : index
    %c0_18 = arith.constant 0 : index
    %18 = vector.load %arg8[%c0_17, %c0_18] : memref<1x32xf32, #tpu.memory_space<vmem>>, vector<1x32xf32>
    %19 = vector.broadcast %18 : vector<1x32xf32> to vector<16x32xf32>
    %20 = arith.addf %17, %19 : vector<16x32xf32>
    %21 = arith.truncf %20 : vector<16x32xf32> to vector<16x32xbf16>
    %c0_19 = arith.constant 0 : index
    %c0_20 = arith.constant 0 : index
    %22 = vector.load %arg9[%c0_19, %c0_20] : memref<32x32xbf16, #tpu.memory_space<vmem>>, vector<32x32xbf16>
    %cst_21 = arith.constant dense<0.000000e+00> : vector<16x32xf32>
    %23 = tpu.matmul %21, %22, %cst_21 {dimension_numbers = #tpu.dot_dimension_numbers<[1], [0], [0], [1], [0, 0, 1, 1], [], []>} : vector<16x32xbf16>, vector<32x32xbf16>, vector<16x32xf32> -> vector<16x32xf32>
    %24 = vector.shape_cast %23 : vector<16x32xf32> to vector<2x8x32xf32>
    %25 = arith.truncf %15 : vector<2x32xf32> to vector<2x32xbf16>
    %c0_22 = arith.constant 0 : index
    %c0_23 = arith.constant 0 : index
    %26 = vector.load %arg10[%c0_22, %c0_23] : memref<32x32xbf16, #tpu.memory_space<vmem>>, vector<32x32xbf16>
    %cst_24 = arith.constant dense<0.000000e+00> : vector<2x32xf32>
    %27 = tpu.matmul %25, %26, %cst_24 {dimension_numbers = #tpu.dot_dimension_numbers<[1], [0], [0], [1], [0, 0, 1, 1], [], []>} : vector<2x32xbf16>, vector<32x32xbf16>, vector<2x32xf32> -> vector<2x32xf32>
    %28 = vector.shape_cast %27 : vector<2x32xf32> to vector<2x1x32xf32>
    %29 = vector.broadcast %28 : vector<2x1x32xf32> to vector<2x8x32xf32>
    %30 = arith.addf %24, %29 : vector<2x8x32xf32>
    %c0_25 = arith.constant 0 : index
    %c0_26 = arith.constant 0 : index
    %31 = vector.load %arg11[%c0_25, %c0_26] : memref<1x32xf32, #tpu.memory_space<vmem>>, vector<1x32xf32>
    %32 = vector.shape_cast %31 : vector<1x32xf32> to vector<1x1x32xf32>
    %33 = vector.broadcast %32 : vector<1x1x32xf32> to vector<2x8x32xf32>
    %34 = arith.addf %30, %33 : vector<2x8x32xf32>
    %cst_27 = arith.constant 0.000000e+00 : f32
    %35 = vector.broadcast %cst_27 : f32 to vector<2x8x32xf32>
    %36 = arith.maximumf %34, %35 : vector<2x8x32xf32>
    %c0_28 = arith.constant 0 : index
    %c0_29 = arith.constant 0 : index
    %37 = vector.load %arg12[%c0_28, %c0_29] : memref<1x32xf32, #tpu.memory_space<vmem>>, vector<1x32xf32>
    %38 = vector.shape_cast %37 : vector<1x32xf32> to vector<1x1x32xf32>
    %39 = vector.broadcast %38 : vector<1x1x32xf32> to vector<2x8x32xf32>
    %40 = arith.mulf %36, %39 : vector<2x8x32xf32>
    %cst_30 = arith.constant dense<0.000000e+00> : vector<2x8xf32>
    %41 = vector.multi_reduction <add>, %40, %cst_30 [2] : vector<2x8x32xf32> to vector<2x8xf32>
    %c0_31 = arith.constant 0 : index
    %c0_32 = arith.constant 0 : index
    %42 = memref.load %arg13[%c0_31, %c0_32] : memref<1x1xf32, #tpu.memory_space<smem>>
    %43 = vector.broadcast %42 : f32 to vector<2x8xf32>
    %44 = arith.addf %41, %43 : vector<2x8xf32>
    %cst_33 = arith.constant dense<0xFF800000> : vector<2xf32>
    %45 = vector.multi_reduction <maximumf>, %44, %cst_33 [1] : vector<2x8xf32> to vector<2xf32>
    %cst_34 = arith.constant 0xFF800000 : f32
    %46 = vector.broadcast %cst_34 : f32 to vector<2xf32>
    %47 = arith.maximumf %46, %45 : vector<2xf32>
    %48 = vector.shape_cast %47 : vector<2xf32> to vector<2x1xf32>
    %49 = vector.broadcast %48 : vector<2x1xf32> to vector<2x8xf32>
    %50 = arith.subf %44, %49 : vector<2x8xf32>
    %51 = math.exp %50 : vector<2x8xf32>
    %cst_35 = arith.constant dense<0.000000e+00> : vector<2xf32>
    %52 = vector.multi_reduction <add>, %51, %cst_35 [1] : vector<2x8xf32> to vector<2xf32>
    %53 = vector.shape_cast %52 : vector<2xf32> to vector<2x1xf32>
    %54 = vector.broadcast %53 : vector<2x1xf32> to vector<2x8xf32>
    %55 = arith.divf %51, %54 : vector<2x8xf32>
    %56 = vector.shape_cast %55 : vector<2x8xf32> to vector<2x8x1xf32>
    %57 = vector.shape_cast %8 : vector<16x32xf32> to vector<2x8x32xf32>
    %58 = vector.broadcast %56 : vector<2x8x1xf32> to vector<2x8x32xf32>
    %59 = arith.mulf %58, %57 : vector<2x8x32xf32>
    %cst_36 = arith.constant dense<0.000000e+00> : vector<2x32xf32>
    %60 = vector.multi_reduction <add>, %59, %cst_36 [1] : vector<2x8x32xf32> to vector<2x32xf32>
    %c0_37 = arith.constant 0 : index
    %c0_38 = arith.constant 0 : index
    %61 = vector.load %arg14[%c0_37, %c0_38] : memref<32x32xbf16, #tpu.memory_space<vmem>>, vector<32x32xbf16>
    %cst_39 = arith.constant dense<0.000000e+00> : vector<2x32xf32>
    %62 = tpu.matmul %1, %61, %cst_39 {dimension_numbers = #tpu.dot_dimension_numbers<[1], [0], [0], [1], [0, 0, 1, 1], [], []>} : vector<2x32xbf16>, vector<32x32xbf16>, vector<2x32xf32> -> vector<2x32xf32>
    %c0_40 = arith.constant 0 : index
    %c0_41 = arith.constant 0 : index
    %63 = vector.load %arg15[%c0_40, %c0_41] : memref<1x32xf32, #tpu.memory_space<vmem>>, vector<1x32xf32>
    %64 = vector.broadcast %63 : vector<1x32xf32> to vector<2x32xf32>
    %65 = arith.addf %62, %64 : vector<2x32xf32>
    %cst_42 = arith.constant 0.000000e+00 : f32
    %66 = vector.broadcast %cst_42 : f32 to vector<2x32xf32>
    %67 = arith.maximumf %65, %66 : vector<2x32xf32>
    %68 = arith.truncf %60 : vector<2x32xf32> to vector<2x32xbf16>
    %c0_43 = arith.constant 0 : index
    %c0_44 = arith.constant 0 : index
    %69 = vector.load %arg16[%c0_43, %c0_44] : memref<32x32xbf16, #tpu.memory_space<vmem>>, vector<32x32xbf16>
    %cst_45 = arith.constant dense<0.000000e+00> : vector<2x32xf32>
    %70 = tpu.matmul %68, %69, %cst_45 {dimension_numbers = #tpu.dot_dimension_numbers<[1], [0], [0], [1], [0, 0, 1, 1], [], []>} : vector<2x32xbf16>, vector<32x32xbf16>, vector<2x32xf32> -> vector<2x32xf32>
    %c0_46 = arith.constant 0 : index
    %c0_47 = arith.constant 0 : index
    %71 = vector.load %arg17[%c0_46, %c0_47] : memref<1x32xf32, #tpu.memory_space<vmem>>, vector<1x32xf32>
    %72 = vector.broadcast %71 : vector<1x32xf32> to vector<2x32xf32>
    %73 = arith.addf %70, %72 : vector<2x32xf32>
    %cst_48 = arith.constant 0.000000e+00 : f32
    %74 = vector.broadcast %cst_48 : f32 to vector<2x32xf32>
    %75 = arith.maximumf %73, %74 : vector<2x32xf32>
    %76 = arith.mulf %67, %75 : vector<2x32xf32>
    %c0_49 = arith.constant 0 : index
    %c0_50 = arith.constant 0 : index
    %77 = vector.load %arg19[%c0_49, %c0_50] : memref<2x32xf32, #tpu.memory_space<vmem>>, vector<2x32xf32>
    tpu.vector_store %arg19[%c0_49, %c0_50], %76 {strides = array<i32>} : memref<2x32xf32, #tpu.memory_space<vmem>>, vector<2x32xf32>,
    return
  }
  func.func @transform_0(%arg0: i32) -> (i32, i32) {
    %c0_i32 = arith.constant 0 : i32
    %c0_i32_0 = arith.constant 0 : i32
    return %arg0, %c0_i32 : i32, i32
  }
  func.func @transform_1(%arg0: i32) -> (i32, i32) {
    %c0_i32 = arith.constant 0 : i32
    %c0_i32_0 = arith.constant 0 : i32
    return %arg0, %c0_i32 : i32, i32
  }
  func.func @transform_2(%arg0: i32) -> (i32, i32) {
    %c0_i32 = arith.constant 0 : i32
    %c0_i32_0 = arith.constant 0 : i32
    %c0_i32_1 = arith.constant 0 : i32
    return %c0_i32, %c0_i32_0 : i32, i32
  }
  func.func @transform_3(%arg0: i32) -> (i32, i32) {
    %c0_i32 = arith.constant 0 : i32
    %c0_i32_0 = arith.constant 0 : i32
    %c0_i32_1 = arith.constant 0 : i32
    return %c0_i32, %c0_i32_0 : i32, i32
  }
  func.func @transform_4(%arg0: i32) -> (i32, i32) {
    %c0_i32 = arith.constant 0 : i32
    %c0_i32_0 = arith.constant 0 : i32
    %c0_i32_1 = arith.constant 0 : i32
    return %c0_i32, %c0_i32_0 : i32, i32
  }
  func.func @transform_5(%arg0: i32) -> (i32, i32) {
    %c0_i32 = arith.constant 0 : i32
    %c0_i32_0 = arith.constant 0 : i32
    %c0_i32_1 = arith.constant 0 : i32
    return %c0_i32, %c0_i32_0 : i32, i32
  }
  func.func @transform_6(%arg0: i32) -> (i32, i32) {
    %c0_i32 = arith.constant 0 : i32
    %c0_i32_0 = arith.constant 0 : i32
    %c0_i32_1 = arith.constant 0 : i32
    return %c0_i32, %c0_i32_0 : i32, i32
  }
  func.func @transform_7(%arg0: i32) -> (i32, i32) {
    %c0_i32 = arith.constant 0 : i32
    %c0_i32_0 = arith.constant 0 : i32
    %c0_i32_1 = arith.constant 0 : i32
    return %c0_i32, %c0_i32_0 : i32, i32
  }
  func.func @transform_8(%arg0: i32) -> (i32, i32) {
    %c0_i32 = arith.constant 0 : i32
    %c0_i32_0 = arith.constant 0 : i32
    %c0_i32_1 = arith.constant 0 : i32
    return %c0_i32, %c0_i32_0 : i32, i32
  }
  func.func @transform_9(%arg0: i32) -> (i32, i32) {
    %c0_i32 = arith.constant 0 : i32
    %c0_i32_0 = arith.constant 0 : i32
    %c0_i32_1 = arith.constant 0 : i32
    return %c0_i32, %c0_i32_0 : i32, i32
  }
  func.func @transform_10(%arg0: i32) -> (i32, i32) {
    %c0_i32 = arith.constant 0 : i32
    %c0_i32_0 = arith.constant 0 : i32
    %c0_i32_1 = arith.constant 0 : i32
    return %c0_i32, %c0_i32_0 : i32, i32
  }
  func.func @transform_11(%arg0: i32) -> (i32, i32) {
    %c0_i32 = arith.constant 0 : i32
    %c0_i32_0 = arith.constant 0 : i32
    %c0_i32_1 = arith.constant 0 : i32
    return %c0_i32, %c0_i32_0 : i32, i32
  }
  func.func @transform_12(%arg0: i32) -> (i32, i32) {
    %c0_i32 = arith.constant 0 : i32
    %c0_i32_0 = arith.constant 0 : i32
    %c0_i32_1 = arith.constant 0 : i32
    return %c0_i32, %c0_i32_0 : i32, i32
  }
  func.func @transform_13(%arg0: i32) -> (i32, i32) {
    %c0_i32 = arith.constant 0 : i32
    %c0_i32_0 = arith.constant 0 : i32
    %c0_i32_1 = arith.constant 0 : i32
    return %c0_i32, %c0_i32_0 : i32, i32
  }
  func.func @transform_14(%arg0: i32) -> (i32, i32) {
    %c0_i32 = arith.constant 0 : i32
    %c0_i32_0 = arith.constant 0 : i32
    %c0_i32_1 = arith.constant 0 : i32
    return %c0_i32, %c0_i32_0 : i32, i32
  }
  func.func @transform_15(%arg0: i32) -> (i32, i32) {
    %c0_i32 = arith.constant 0 : i32
    %c0_i32_0 = arith.constant 0 : i32
    %c0_i32_1 = arith.constant 0 : i32
    return %c0_i32, %c0_i32_0 : i32, i32
  }
  func.func @transform_16(%arg0: i32) -> (i32, i32) {
    %c0_i32 = arith.constant 0 : i32
    %c0_i32_0 = arith.constant 0 : i32
    %c0_i32_1 = arith.constant 0 : i32
    return %c0_i32, %c0_i32_0 : i32, i32
  }
  func.func @transform_17(%arg0: i32) -> (i32, i32) {
    %c0_i32 = arith.constant 0 : i32
    %c0_i32_0 = arith.constant 0 : i32
    return %arg0, %c0_i32 : i32, i32
  }
  func.func @transform_18(%arg0: i32) -> (i32, i32) {
    %c0_i32 = arith.constant 0 : i32
    %c0_i32_0 = arith.constant 0 : i32
    return %arg0, %c0_i32 : i32, i32
  }
}

module attributes {stable_mosaic.version = 11 : i64} {
  func.func @linear_kernel(%arg0: i32, %arg1: memref<2x32xf32, #tpu.memory_space<vmem>>, %arg2: memref<32x64xbf16, #tpu.memory_space<vmem>>, %arg3: memref<1x64xf32, #tpu.memory_space<vmem>>, %arg4: memref<2x64xf32, #tpu.memory_space<vmem>>) attributes {dimension_semantics = [#tpu.dimension_semantics<parallel>], iteration_bounds = array<i64: 1>, scalar_prefetch = 0 : i64, scratch_operands = 0 : i64, tpu.core_type = #tpu.core_type<tc>, window_params = [{transform_indices = @transform_0, window_bounds = array<i64: 2, 32>}, {pipeline_mode = #tpu.pipeline_mode<synchronous>, transform_indices = @transform_1, window_bounds = array<i64: 32, 64>}, {pipeline_mode = #tpu.pipeline_mode<synchronous>, transform_indices = @transform_2, window_bounds = array<i64: 1, 64>}, {transform_indices = @transform_3, window_bounds = array<i64: 2, 64>}]} {
    %c0 = arith.constant 0 : index
    %c0_0 = arith.constant 0 : index
    %0 = vector.load %arg1[%c0, %c0_0] : memref<2x32xf32, #tpu.memory_space<vmem>>, vector<2x32xf32>
    %1 = arith.truncf %0 : vector<2x32xf32> to vector<2x32xbf16>
    %c0_1 = arith.constant 0 : index
    %c0_2 = arith.constant 0 : index
    %2 = vector.load %arg2[%c0_1, %c0_2] : memref<32x64xbf16, #tpu.memory_space<vmem>>, vector<32x64xbf16>
    %cst = arith.constant dense<0.000000e+00> : vector<2x64xf32>
    %3 = tpu.matmul %1, %2, %cst {dimension_numbers = #tpu.dot_dimension_numbers<[1], [0], [0], [1], [0, 0, 1, 1], [], []>} : vector<2x32xbf16>, vector<32x64xbf16>, vector<2x64xf32> -> vector<2x64xf32>
    %c0_3 = arith.constant 0 : index
    %c0_4 = arith.constant 0 : index
    %4 = vector.load %arg3[%c0_3, %c0_4] : memref<1x64xf32, #tpu.memory_space<vmem>>, vector<1x64xf32>
    %5 = vector.broadcast %4 : vector<1x64xf32> to vector<2x64xf32>
    %6 = arith.addf %3, %5 : vector<2x64xf32>
    %c0_5 = arith.constant 0 : index
    %c0_6 = arith.constant 0 : index
    %7 = vector.load %arg4[%c0_5, %c0_6] : memref<2x64xf32, #tpu.memory_space<vmem>>, vector<2x64xf32>
    tpu.vector_store %arg4[%c0_5, %c0_6], %6 {strides = array<i32>} : memref<2x64xf32, #tpu.memory_space<vmem>>, vector<2x64xf32>,
    return
  }
  func.func @transform_0(%arg0: i32) -> (i32, i32) {
    %c0_i32 = arith.constant 0 : i32
    %c0_i32_0 = arith.constant 0 : i32
    return %arg0, %c0_i32 : i32, i32
  }
  func.func @transform_1(%arg0: i32) -> (i32, i32) {
    %c0_i32 = arith.constant 0 : i32
    %c0_i32_0 = arith.constant 0 : i32
    %c0_i32_1 = arith.constant 0 : i32
    return %c0_i32, %c0_i32_0 : i32, i32
  }
  func.func @transform_2(%arg0: i32) -> (i32, i32) {
    %c0_i32 = arith.constant 0 : i32
    %c0_i32_0 = arith.constant 0 : i32
    %c0_i32_1 = arith.constant 0 : i32
    return %c0_i32, %c0_i32_0 : i32, i32
  }
  func.func @transform_3(%arg0: i32) -> (i32, i32) {
    %c0_i32 = arith.constant 0 : i32
    %c0_i32_0 = arith.constant 0 : i32
    return %arg0, %c0_i32 : i32, i32
  }
}

module attributes {stable_mosaic.version = 11 : i64} {
  func.func @linear_kernel(%arg0: i32, %arg1: memref<16x16xbf16, #tpu.memory_space<vmem>>, %arg2: memref<16x128xbf16, #tpu.memory_space<vmem>>, %arg3: memref<1x128xf32, #tpu.memory_space<vmem>>, %arg4: memref<16x128xbf16, #tpu.memory_space<vmem>>) attributes {dimension_semantics = [#tpu.dimension_semantics<parallel>], iteration_bounds = array<i64: 1>, scalar_prefetch = 0 : i64, scratch_operands = 0 : i64, tpu.core_type = #tpu.core_type<tc>, window_params = [{transform_indices = @transform_0, window_bounds = array<i64: 16, 16>}, {pipeline_mode = #tpu.pipeline_mode<synchronous>, transform_indices = @transform_1, window_bounds = array<i64: 16, 128>}, {pipeline_mode = #tpu.pipeline_mode<synchronous>, transform_indices = @transform_2, window_bounds = array<i64: 1, 128>}, {transform_indices = @transform_3, window_bounds = array<i64: 16, 128>}]} {
    %c0 = arith.constant 0 : index
    %c0_0 = arith.constant 0 : index
    %0 = vector.load %arg1[%c0, %c0_0] : memref<16x16xbf16, #tpu.memory_space<vmem>>, vector<16x16xbf16>
    %c0_1 = arith.constant 0 : index
    %c0_2 = arith.constant 0 : index
    %1 = vector.load %arg2[%c0_1, %c0_2] : memref<16x128xbf16, #tpu.memory_space<vmem>>, vector<16x128xbf16>
    %cst = arith.constant dense<0.000000e+00> : vector<16x128xf32>
    %2 = tpu.matmul %0, %1, %cst {dimension_numbers = #tpu.dot_dimension_numbers<[1], [0], [0], [1], [0, 0, 1, 1], [], []>} : vector<16x16xbf16>, vector<16x128xbf16>, vector<16x128xf32> -> vector<16x128xf32>
    %c0_3 = arith.constant 0 : index
    %c0_4 = arith.constant 0 : index
    %3 = vector.load %arg3[%c0_3, %c0_4] : memref<1x128xf32, #tpu.memory_space<vmem>>, vector<1x128xf32>
    %4 = vector.broadcast %3 : vector<1x128xf32> to vector<16x128xf32>
    %5 = arith.addf %2, %4 : vector<16x128xf32>
    %6 = arith.truncf %5 : vector<16x128xf32> to vector<16x128xbf16>
    %c0_5 = arith.constant 0 : index
    %c0_6 = arith.constant 0 : index
    %7 = vector.load %arg4[%c0_5, %c0_6] : memref<16x128xbf16, #tpu.memory_space<vmem>>, vector<16x128xbf16>
    tpu.vector_store %arg4[%c0_5, %c0_6], %6 {strides = array<i32>} : memref<16x128xbf16, #tpu.memory_space<vmem>>, vector<16x128xbf16>,
    return
  }
  func.func @transform_0(%arg0: i32) -> (i32, i32) {
    %c0_i32 = arith.constant 0 : i32
    %c0_i32_0 = arith.constant 0 : i32
    return %arg0, %c0_i32 : i32, i32
  }
  func.func @transform_1(%arg0: i32) -> (i32, i32) {
    %c0_i32 = arith.constant 0 : i32
    %c0_i32_0 = arith.constant 0 : i32
    %c0_i32_1 = arith.constant 0 : i32
    return %c0_i32, %c0_i32_0 : i32, i32
  }
  func.func @transform_2(%arg0: i32) -> (i32, i32) {
    %c0_i32 = arith.constant 0 : i32
    %c0_i32_0 = arith.constant 0 : i32
    %c0_i32_1 = arith.constant 0 : i32
    return %c0_i32, %c0_i32_0 : i32, i32
  }
  func.func @transform_3(%arg0: i32) -> (i32, i32) {
    %c0_i32 = arith.constant 0 : i32
    %c0_i32_0 = arith.constant 0 : i32
    return %arg0, %c0_i32 : i32, i32
  }
}

module attributes {stable_mosaic.version = 11 : i64} {
  func.func @relu_linear_kernel(%arg0: memref<2x64xf32, #tpu.memory_space<vmem>>, %arg1: memref<64x128xbf16, #tpu.memory_space<vmem>>, %arg2: memref<1x128xf32, #tpu.memory_space<vmem>>, %arg3: memref<2x128xf32, #tpu.memory_space<vmem>>) attributes {dimension_semantics = [], scalar_prefetch = 0 : i64, scratch_operands = 0 : i64, tpu.core_type = #tpu.core_type<tc>} {
    %c0 = arith.constant 0 : index
    %c0_0 = arith.constant 0 : index
    %0 = vector.load %arg0[%c0, %c0_0] : memref<2x64xf32, #tpu.memory_space<vmem>>, vector<2x64xf32>
    %cst = arith.constant 0.000000e+00 : f32
    %1 = vector.broadcast %cst : f32 to vector<2x64xf32>
    %2 = arith.maximumf %0, %1 : vector<2x64xf32>
    %3 = arith.truncf %2 : vector<2x64xf32> to vector<2x64xbf16>
    %c0_1 = arith.constant 0 : index
    %c0_2 = arith.constant 0 : index
    %4 = vector.load %arg1[%c0_1, %c0_2] : memref<64x128xbf16, #tpu.memory_space<vmem>>, vector<64x128xbf16>
    %cst_3 = arith.constant dense<0.000000e+00> : vector<2x128xf32>
    %5 = tpu.matmul %3, %4, %cst_3 {dimension_numbers = #tpu.dot_dimension_numbers<[1], [0], [0], [1], [0, 0, 1, 1], [], []>} : vector<2x64xbf16>, vector<64x128xbf16>, vector<2x128xf32> -> vector<2x128xf32>
    %c0_4 = arith.constant 0 : index
    %c0_5 = arith.constant 0 : index
    %6 = vector.load %arg2[%c0_4, %c0_5] : memref<1x128xf32, #tpu.memory_space<vmem>>, vector<1x128xf32>
    %7 = vector.broadcast %6 : vector<1x128xf32> to vector<2x128xf32>
    %8 = arith.addf %5, %7 : vector<2x128xf32>
    %c0_6 = arith.constant 0 : index
    %c0_7 = arith.constant 0 : index
    %9 = vector.load %arg3[%c0_6, %c0_7] : memref<2x128xf32, #tpu.memory_space<vmem>>, vector<2x128xf32>
    tpu.vector_store %arg3[%c0_6, %c0_7], %8 {strides = array<i32>} : memref<2x128xf32, #tpu.memory_space<vmem>>, vector<2x128xf32>,
    return
  }
}

</mosaic_0001>

<llo_original>
// kernel: tpu_custom_call.1
$region0: #{tpu_custom_call.1}
  #allocation0 [shape = 'u32[]', space=smem, size = 0x4, offset = 0x4, fixed_abs, tag = 'smem constant byte address 0x4 - core index']
  #allocation1 [shape = 'u32[144,128]{1,0:T(1,128)}', space=vmem, size = 0x12000, scoped, tag = 'internal scratch']
  %s0 = inlined_call_operand.hbm [shape: f32[8,128], index: 0, kind: input, shape index: {}]
  %s1 = inlined_call_operand.hbm [shape: f32[8,128], index: 1, kind: output, shape index: {}]
  %s2 = sld [smem:[#allocation0]]
  $region41: #{tpu_custom_call.1} parent=0
    _
  %s4 = ssub.s32 1, %s2
  %s5 = scalar_select 0, %s4, %s2
  $region1: #{tpu_custom_call.1} parent=0
    #allocation2 [shape = 'u8[4096]{0}', space=vmem, size = 0x1000, scoped, tag = 'input window, operand 0, single buffered']
    #allocation3 [shape = 's32[2]{0}', space=sflag, size = 0x8, scoped, tag = 'scoped memory for tpu_custom_call.1']
    #allocation4 [shape = 's32[2]{0}', space=sflag, size = 0x8, scoped, tag = 'scoped memory for tpu_custom_call.1']
    #allocation5 [shape = 'u8[4096]{0}', space=vmem, size = 0x1000, scoped, tag = 'output window, operand 0, single buffered']
    %6 = vsyncpa [#allocation3], 0
    %7 = vsyncpa [#allocation4], 0
    loop: start=0, step=1, limit=4
    $region2: #{tpu_custom_call.1} parent=1 // loop_pre_header
      _
    $region3: #{tpu_custom_call.1} parent=1 // loop_header
      %s9 = sphi 0, %s13
      %p10 = scmp.ge.s32.totalorder %s9, 4
      %s17 = sphi 0, %s17
      %s19 = sphi 0, %s17
      %s20 = sphi 0, %s19
      %s34 = sphi 0, %s20
      %s38 = sphi 0, %s38
      %s40 = sphi 0, %s38
      %s41 = sphi 0, %s40
      %s55 = sphi 0, %s41
    $region4: #{tpu_custom_call.1} parent=1 // loop_header_branch
      %12 = sbr.rel (%p10) target = $region8
    $region5: #{tpu_custom_call.1} parent=1 // loop_body
      %s14 = ssub.s32 %s9, 1
      %s15 = ssub.s32 %s9, 2
      %s16 = sadd.s32 %s9, 1
      %s18 = sadd.s32 %s17, 1
      %p21 = scmp.eq.s32.totalorder %s9, 1
      %p22 = scmp.ne.s32.totalorder %s17, %s19
      %p23 = scmp.eq.s32.totalorder %s9, 0
      %p24 = por %p22, %p23
      %p25 = scmp.ne.s32.totalorder %s17, %s19
      %p26 = scmp.eq.s32.totalorder %s14, 1
      %p27 = por %p25, %p26
      %p28 = scmp.ne.s32.totalorder %s19, %s20
      %p29 = scmp.eq.s32.totalorder %s14, 0
      %p30 = por %p28, %p29
      %p31 = scmp.ne.s32.totalorder %s19, %s20
      %p32 = scmp.eq.s32.totalorder %s15, 1
      %p33 = por %p31, %p32
      %p35 = scmp.ne.s32.totalorder %s20, %s34
      %p36 = scmp.eq.s32.totalorder %s15, 0
      %p37 = por %p35, %p36
      %s39 = sadd.s32 %s38, 1
      %p42 = scmp.eq.s32.totalorder %s9, 1
      %p43 = scmp.ne.s32.totalorder %s38, %s40
      %p44 = scmp.eq.s32.totalorder %s9, 0
      %p45 = por %p43, %p44
      %p46 = scmp.ne.s32.totalorder %s38, %s40
      %p47 = scmp.eq.s32.totalorder %s14, 1
      %p48 = por %p46, %p47
      %p49 = scmp.ne.s32.totalorder %s40, %s41
      %p50 = scmp.eq.s32.totalorder %s14, 0
      %p51 = por %p49, %p50
      %p52 = scmp.ne.s32.totalorder %s40, %s41
      %p53 = scmp.eq.s32.totalorder %s15, 1
      %p54 = por %p52, %p53
      %p56 = scmp.ne.s32.totalorder %s41, %s55
      %p57 = scmp.eq.s32.totalorder %s15, 0
      %p58 = por %p56, %p57
      %p59 = scmp.le.s32.totalorder 1, %s9
      %p60 = scmp.lt.s32.totalorder %s9, 3
      %p61 = pnand %p59, %p60
      %p62 = pneg %p61
      // Predicated region
      $region9: #{tpu_custom_call.1} parent=5 // pred_check
        _
      $region10: #{tpu_custom_call.1} parent=5 // pred_check_branch
        %64 = sbr.rel (%p61) target = $region12
      $region11: #{tpu_custom_call.1} parent=5 // pred_region
        %s65 = ssub.s32 %s9, 1
        // Predicated region
        $region13: #{tpu_custom_call.1} parent=11 // pred_check
          %p66 = pneg %p30
        $region14: #{tpu_custom_call.1} parent=11 // pred_check_branch
          %68 = sbr.rel (%p66) target = $region16
        $region15: #{tpu_custom_call.1} parent=11 // pred_region
          %s70 = ssub.s32 128, 128
          %71 = vsyncadd [#allocation3], %s70
          %s73 = sshll.u32 [#allocation2], 4
          %s74 = int_to_ptr.vmem [resolvable:$true] %s73
          %76 = dma.hbm_to_vmem [thread:$0]  %s0, 128, %s74, [#allocation3]
        $region16: #{tpu_custom_call.1} parent=11 // pred_fallthru
          _
      $region12: #{tpu_custom_call.1} parent=5 // pred_fallthru
        _
      %p77 = scmp.lt.s32.totalorder %s9, 2
      // Predicated region
      $region17: #{tpu_custom_call.1} parent=5 // pred_check
        %p78 = pneg %p77
      $region18: #{tpu_custom_call.1} parent=5 // pred_check_branch
        %80 = sbr.rel (%p78) target = $region20
      $region19: #{tpu_custom_call.1} parent=5 // pred_region
        _
      $region20: #{tpu_custom_call.1} parent=5 // pred_fallthru
        _
      %p81 = scmp.le.s32.totalorder 1, %s9
      %p82 = scmp.lt.s32.totalorder %s9, 3
      %p83 = pnand %p81, %p82
      %p84 = pneg %p83
      // Predicated region
      $region21: #{tpu_custom_call.1} parent=5 // pred_check
        _
      $region22: #{tpu_custom_call.1} parent=5 // pred_check_branch
        %86 = sbr.rel (%p83) target = $region24
      $region23: #{tpu_custom_call.1} parent=5 // pred_region
        %s87 = ssub.s32 %s9, 1
        // Predicated region
        $region25: #{tpu_custom_call.1} parent=23 // pred_check
          %p88 = pneg %p30
        $region26: #{tpu_custom_call.1} parent=23 // pred_check_branch
          %90 = sbr.rel (%p88) target = $region28
        $region27: #{tpu_custom_call.1} parent=23 // pred_region
          %91 = dma.done [#allocation3], 128
        $region28: #{tpu_custom_call.1} parent=23 // pred_fallthru
          _
        %p92 = pneg %p30
        %p93 = pneg %p27
        %p94 = pneg %p51
        %p95 = pneg %p48
        %v96 = vld [vmem:[#allocation2] sm:$0xff]
        %97 = vst [vmem:[#allocation5] sm:$0xff] %v96
        // Predicated region
        $region29: #{tpu_custom_call.1} parent=23 // pred_check
          %p98 = pneg %p48
        $region30: #{tpu_custom_call.1} parent=23 // pred_check_branch
          %100 = sbr.rel (%p98) target = $region32
        $region31: #{tpu_custom_call.1} parent=23 // pred_region
          %s102 = ssub.s32 128, 128
          %103 = vsyncadd [#allocation4], %s102
          %s105 = sshll.u32 [#allocation5], 4
          %s106 = int_to_ptr.vmem [resolvable:$true] %s105
          %108 = dma.vmem_to_hbm [thread:$0]  %s106, 128, %s1, [#allocation4]
        $region32: #{tpu_custom_call.1} parent=23 // pred_fallthru
          _
        // Predicated region
        $region33: #{tpu_custom_call.1} parent=23 // pred_check
          %p109 = pneg %p48
        $region34: #{tpu_custom_call.1} parent=23 // pred_check_branch
          %111 = sbr.rel (%p109) target = $region36
        $region35: #{tpu_custom_call.1} parent=23 // pred_region
          %112 = dma.done [#allocation4], 128
        $region36: #{tpu_custom_call.1} parent=23 // pred_fallthru
          _
      $region24: #{tpu_custom_call.1} parent=5 // pred_fallthru
        _
      %p113 = scmp.le.s32.totalorder 2, %s9
      // Predicated region
      $region37: #{tpu_custom_call.1} parent=5 // pred_check
        %p114 = pneg %p113
      $region38: #{tpu_custom_call.1} parent=5 // pred_check_branch
        %116 = sbr.rel (%p114) target = $region40
      $region39: #{tpu_custom_call.1} parent=5 // pred_region
        %s117 = ssub.s32 %s9, 2
      $region40: #{tpu_custom_call.1} parent=5 // pred_fallthru
        _
    $region6: #{tpu_custom_call.1} parent=1 // loop_footer
      %s13 = sadd.s32 1, %s9
    $region7: #{tpu_custom_call.1} parent=1 // loop_footer_branch
      %8 = sbr.rel target = $region3
    $region8: #{tpu_custom_call.1} parent=1 // loop_exit
      _
    %118 = vsyncpa [#allocation3], 1
    %s119 = scalar_lea.sflag [#allocation3], 1
    %120 = vsyncpa %s119, 1
    %121 = vsyncpa [#allocation4], 1
    %s122 = scalar_lea.sflag [#allocation4], 1
    %123 = vsyncpa %s122, 1

// kernel: updn_forward.6
$region0: #{updn_forward.6}
  #allocation0 [shape = 'u32[]', space=smem, size = 0x4, offset = 0x4, fixed_abs, tag = 'smem constant byte address 0x4 - core index']
  #allocation1 [shape = 'u32[144,128]{1,0:T(1,128)}', space=vmem, size = 0x12000, scoped, tag = 'internal scratch']
  %s0 = inlined_call_operand.hbm [shape: bf16[8,2,128], index: 0, kind: input, shape index: {}]
  %s1 = inlined_call_operand.hbm [shape: bf16[32,128], index: 1, kind: input, shape index: {}]
  %s2 = inlined_call_operand.hbm [shape: f32[2,32], index: 2, kind: output, shape index: {}]
  %s3 = sld [smem:[#allocation0]]
  $region26: #{updn_forward.6} parent=0
    _
  %s5 = ssub.s32 1, %s3
  %s6 = scalar_select 0, %s5, %s3
  $region1: #{updn_forward.6} parent=0
    #allocation2 [shape = 'u8[4096]{0}', space=vmem, size = 0x1000, scoped, tag = 'input window, operand 0, single buffered']
    #allocation3 [shape = 's32[1]{0}', space=sflag, size = 0x4, scoped, tag = 'scoped memory for updn_forward.6']
    #allocation4 [shape = 's32[1]{0}', space=sflag, size = 0x4, scoped, tag = 'scoped memory for updn_forward.6']
    #allocation5 [shape = 'u8[8192]{0}', space=vmem, size = 0x2000, scoped, tag = 'input window, operand 1, single buffered']
    #allocation6 [shape = 's32[1]{0}', space=sflag, size = 0x4, scoped, tag = 'scoped memory for updn_forward.6']
    #allocation7 [shape = 'u8[1024]{0}', space=vmem, size = 0x400, scoped, tag = 'output window, operand 0, single buffered']
    %7 = vsyncpa [#allocation3], 0
    %8 = vsyncpa [#allocation6], 0
    %9 = vsyncpa [#allocation4], 0
    // Predicated region
    $region2: #{updn_forward.6} parent=1 // pred_check
      _
    $region3: #{updn_forward.6} parent=1 // pred_check_branch
      %11 = sbr.rel (0) target = $region5
    $region4: #{updn_forward.6} parent=1 // pred_region
      %s13 = ssub.s32 128, 128
      %14 = vsyncadd [#allocation3], %s13
      %s15 = sshll.u32 [#allocation2], 4
      %s16 = int_to_ptr.vmem [resolvable:$true] %s15
      %21 = dma.hbm_to_vmem [thread:$0]  %s0, 128, %s16, [#allocation3], 16, 16, 1
    $region5: #{updn_forward.6} parent=1 // pred_fallthru
      _
    // Predicated region
    $region6: #{updn_forward.6} parent=1 // pred_check
      _
    $region7: #{updn_forward.6} parent=1 // pred_check_branch
      %23 = sbr.rel (0) target = $region9
    $region8: #{updn_forward.6} parent=1 // pred_region
      %s25 = ssub.s32 256, 256
      %26 = vsyncadd [#allocation6], %s25
      %s27 = sshll.u32 [#allocation5], 4
      %s28 = int_to_ptr.vmem [resolvable:$true] %s27
      %33 = dma.hbm_to_vmem [thread:$0]  %s1, 256, %s28, [#allocation6], 64, 64, 4
    $region9: #{updn_forward.6} parent=1 // pred_fallthru
      _
    // Predicated region
    $region10: #{updn_forward.6} parent=1 // pred_check
      _
    $region11: #{updn_forward.6} parent=1 // pred_check_branch
      %35 = sbr.rel (0) target = $region13
    $region12: #{updn_forward.6} parent=1 // pred_region
      %36 = dma.done [#allocation3], 128
    $region13: #{updn_forward.6} parent=1 // pred_fallthru
      _
    // Predicated region
    $region14: #{updn_forward.6} parent=1 // pred_check
      _
    $region15: #{updn_forward.6} parent=1 // pred_check_branch
      %38 = sbr.rel (0) target = $region17
    $region16: #{updn_forward.6} parent=1 // pred_region
      %39 = dma.done [#allocation6], 256
    $region17: #{updn_forward.6} parent=1 // pred_fallthru
      _
    %v41 = vld [vmem:[#allocation5] sm:$0xf]
    %v42 = vld [vmem:[#allocation5 + $0x4] sm:$0xf]
    %v43 = vld [vmem:[#allocation5 + $0x8] sm:$0xf]
    %v44 = vld [vmem:[#allocation5 + $0xc] sm:$0xf]
    %v45 = vld [vmem:[#allocation2] sm:$0x1]
    %v46 = vunpack.c.l.bf16 %v45
    %v51 = vunpack.c.l.b16 %v41
    %v52 = vunpack.c.l.b16 %v42
    %v53 = vunpack.c.l.b16 %v43
    %v54 = vunpack.c.l.b16 %v44
    %v55 = vpack.c.b16 %v52, %v51
    %v56 = vpack.c.b16 %v54, %v53
    %vm59 = vcmask 261120
    %v61 = vsel %vm59, 0, 0
    %63 = vmatprep.subr.bf16.mxu0 0
    %64 = vmatpush1.bf16.msra.mxu0 %v55
    %65 = vmatprep.subr.bf16.mxu0 0
    %66 = vmatpush1.bf16.msra.mxu0 %v56
    %67 = vmatprep.subr.bf16.mxu0 0
    %68 = vmatpush1.bf16.msra.mxu0 0
    %69 = vmatprep.subr.bf16.mxu0 0
    %70 = vmatpush1.bf16.msra.mxu0 0
    %71 = vmatprep.subr.bf16.mxu0 0
    %72 = vmatpush1.bf16.msra.mxu0 0
    %73 = vmatprep.subr.bf16.mxu0 0
    %74 = vmatpush1.bf16.msra.mxu0 0
    %75 = vmatprep.subr.bf16.mxu0 0
    %76 = vmatpush1.bf16.msra.mxu0 0
    %77 = vmatprep.subr.bf16.mxu0 0
    %78 = vmatpush1.bf16.msra.mxu0 0
    %79 = vmatprep.subr.bf16.mxu0 0
    %80 = vmatpush1.bf16.msra.mxu0 0
    %81 = vmatprep.subr.bf16.mxu0 0
    %82 = vmatpush1.bf16.msra.mxu0 0
    %83 = vmatprep.subr.bf16.mxu0 0
    %84 = vmatpush1.bf16.msra.mxu0 0
    %85 = vmatprep.subr.bf16.mxu0 0
    %86 = vmatpush1.bf16.msra.mxu0 0
    %87 = vmatprep.subr.bf16.mxu0 0
    %88 = vmatpush1.bf16.msra.mxu0 0
    %89 = vmatprep.subr.bf16.mxu0 0
    %90 = vmatpush1.bf16.msra.mxu0 0
    %91 = vmatprep.subr.bf16.mxu0 0
    %92 = vmatpush1.bf16.msra.mxu0 0
    %93 = vmatprep.subr.bf16.mxu0 0
    %94 = vmatpush1.bf16.msra.mxu0 0
    %95 = vmatprep.mubr.bf16.mxu0 0
    %96 = vmatmul.mubr.bf16.gmra.mrb[0].mxu0 %v61
    %v97 = vpop.f32.mrb[0].mxu0
    %v98 = vadd.f32 0.0, %v97
    %v99 = vpop.f32.mrb[0].mxu0
    %v100 = vpop.f32.mrb[0].mxu0
    %v101 = vpop.f32.mrb[0].mxu0
    %102 = vdwg.mxu0
    %v103 = vadd.f32 %v46, %v98
    %v104 = vxor.u32 %v103, 2147483648
    %v105 = vmul.f32 %v104, 1.442695
    %v106 = vpow.pop %v105
    %v107 = vadd.f32 %v106, 1.0
    %v108 = vrcp.pop %v107
    %v109 = vmul.f32 1.0, %v108
    %v110 = vtanh.pop %v103
    %v111 = vmul.f32 %v109, 0.0
    %113 = vrot.lane.b32.xlu0 %v110, 64
    %v114 = vpop.permute.xlu0 %113
    %v116 = vmul.f32 %v109, %v114
    %118 = vrot.lane.b32.xlu0 %v116, 32
    %v119 = vpop.permute.xlu0 %118
    %v121 = vadd.f32 %v111, %v119
    %v122 = vtanh.pop %v121
    %124 = vrot.lane.b32.xlu0 %v122, 64
    %v125 = vpop.permute.xlu0 %124
    %v127 = vmul.f32 %v109, %v125
    %s128 = scalar_lea.vmem [#allocation2], 1
    %v129 = vld [vmem:[%s128] sm:$0x1]
    %v130 = vunpack.c.l.bf16 %v129
    %v131 = vpack.c.bf16 %v127, %v127
    %133 = vrot.lane.b32.xlu0 %v131, 32
    %v134 = vpop.permute.xlu0 %133
    %v136 = vsel %vm59, %v134, 0
    %138 = vmatprep.subr.bf16.mxu0 0
    %139 = vmatpush1.bf16.msra.mxu0 %v55
    %140 = vmatprep.subr.bf16.mxu0 0
    %141 = vmatpush1.bf16.msra.mxu0 %v56
    %142 = vmatprep.subr.bf16.mxu0 0
    %143 = vmatpush1.bf16.msra.mxu0 0
    %144 = vmatprep.subr.bf16.mxu0 0
    %145 = vmatpush1.bf16.msra.mxu0 0
    %146 = vmatprep.subr.bf16.mxu0 0
    %147 = vmatpush1.bf16.msra.mxu0 0
    %148 = vmatprep.subr.bf16.mxu0 0
    %149 = vmatpush1.bf16.msra.mxu0 0
    %150 = vmatprep.subr.bf16.mxu0 0
    %151 = vmatpush1.bf16.msra.mxu0 0
    %152 = vmatprep.subr.bf16.mxu0 0
    %153 = vmatpush1.bf16.msra.mxu0 0
    %154 = vmatprep.subr.bf16.mxu0 0
    %155 = vmatpush1.bf16.msra.mxu0 0
    %156 = vmatprep.subr.bf16.mxu0 0
    %157 = vmatpush1.bf16.msra.mxu0 0
    %158 = vmatprep.subr.bf16.mxu0 0
    %159 = vmatpush1.bf16.msra.mxu0 0
    %160 = vmatprep.subr.bf16.mxu0 0
    %161 = vmatpush1.bf16.msra.mxu0 0
    %162 = vmatprep.subr.bf16.mxu0 0
    %163 = vmatpush1.bf16.msra.mxu0 0
    %164 = vmatprep.subr.bf16.mxu0 0
    %165 = vmatpush1.bf16.msra.mxu0 0
    %166 = vmatprep.subr.bf16.mxu0 0
    %167 = vmatpush1.bf16.msra.mxu0 0
    %168 = vmatprep.subr.bf16.mxu0 0
    %169 = vmatpush1.bf16.msra.mxu0 0
    %170 = vmatprep.mubr.bf16.mxu0 0
    %171 = vmatmul.mubr.bf16.gmra.mrb[0].mxu0 %v136
    %v172 = vpop.f32.mrb[0].mxu0
    %v173 = vadd.f32 0.0, %v172
    %v174 = vpop.f32.mrb[0].mxu0
    %v175 = vpop.f32.mrb[0].mxu0
    %v176 = vpop.f32.mrb[0].mxu0
    %177 = vdwg.mxu0
    %v178 = vadd.f32 %v130, %v173
    %v179 = vxor.u32 %v178, 2147483648
    %v180 = vmul.f32 %v179, 1.442695
    %v181 = vpow.pop %v180
    %v182 = vadd.f32 %v181, 1.0
    %v183 = vrcp.pop %v182
    %v184 = vmul.f32 1.0, %v183
    %v185 = vtanh.pop %v178
    %v186 = vmul.f32 %v184, %v121
    %188 = vrot.lane.b32.xlu0 %v185, 64
    %v189 = vpop.permute.xlu0 %188
    %v191 = vmul.f32 %v184, %v189
    %193 = vrot.lane.b32.xlu0 %v191, 32
    %v194 = vpop.permute.xlu0 %193
    %v196 = vadd.f32 %v186, %v194
    %v197 = vtanh.pop %v196
    %199 = vrot.lane.b32.xlu0 %v197, 64
    %v200 = vpop.permute.xlu0 %199
    %v202 = vmul.f32 %v184, %v200
    %s203 = scalar_lea.vmem [#allocation2], 2
    %v204 = vld [vmem:[%s203] sm:$0x1]
    %v205 = vunpack.c.l.bf16 %v204
    %v206 = vpack.c.bf16 %v202, %v202
    %208 = vrot.lane.b32.xlu0 %v206, 32
    %v209 = vpop.permute.xlu0 %208
    %v211 = vsel %vm59, %v209, 0
    %213 = vmatprep.subr.bf16.mxu0 0
    %214 = vmatpush1.bf16.msra.mxu0 %v55
    %215 = vmatprep.subr.bf16.mxu0 0
    %216 = vmatpush1.bf16.msra.mxu0 %v56
    %217 = vmatprep.subr.bf16.mxu0 0
    %218 = vmatpush1.bf16.msra.mxu0 0
    %219 = vmatprep.subr.bf16.mxu0 0
    %220 = vmatpush1.bf16.msra.mxu0 0
    %221 = vmatprep.subr.bf16.mxu0 0
    %222 = vmatpush1.bf16.msra.mxu0 0
    %223 = vmatprep.subr.bf16.mxu0 0
    %224 = vmatpush1.bf16.msra.mxu0 0
    %225 = vmatprep.subr.bf16.mxu0 0
    %226 = vmatpush1.bf16.msra.mxu0 0
    %227 = vmatprep.subr.bf16.mxu0 0
    %228 = vmatpush1.bf16.msra.mxu0 0
    %229 = vmatprep.subr.bf16.mxu0 0
    %230 = vmatpush1.bf16.msra.mxu0 0
    %231 = vmatprep.subr.bf16.mxu0 0
    %232 = vmatpush1.bf16.msra.mxu0 0
    %233 = vmatprep.subr.bf16.mxu0 0
    %234 = vmatpush1.bf16.msra.mxu0 0
    %235 = vmatprep.subr.bf16.mxu0 0
    %236 = vmatpush1.bf16.msra.mxu0 0
    %237 = vmatprep.subr.bf16.mxu0 0
    %238 = vmatpush1.bf16.msra.mxu0 0
    %239 = vmatprep.subr.bf16.mxu0 0
    %240 = vmatpush1.bf16.msra.mxu0 0
    %241 = vmatprep.subr.bf16.mxu0 0
    %242 = vmatpush1.bf16.msra.mxu0 0
    %243 = vmatprep.subr.bf16.mxu0 0
    %244 = vmatpush1.bf16.msra.mxu0 0
    %245 = vmatprep.mubr.bf16.mxu0 0
    %246 = vmatmul.mubr.bf16.gmra.mrb[0].mxu0 %v211
    %v247 = vpop.f32.mrb[0].mxu0
    %v248 = vadd.f32 0.0, %v247
    %v249 = vpop.f32.mrb[0].mxu0
    %v250 = vpop.f32.mrb[0].mxu0
    %v251 = vpop.f32.mrb[0].mxu0
    %252 = vdwg.mxu0
    %v253 = vadd.f32 %v205, %v248
    %v254 = vxor.u32 %v253, 2147483648
    %v255 = vmul.f32 %v254, 1.442695
    %v256 = vpow.pop %v255
    %v257 = vadd.f32 %v256, 1.0
    %v258 = vrcp.pop %v257
    %v259 = vmul.f32 1.0, %v258
    %v260 = vtanh.pop %v253
    %v261 = vmul.f32 %v259, %v196
    %263 = vrot.lane.b32.xlu0 %v260, 64
    %v264 = vpop.permute.xlu0 %263
    %v266 = vmul.f32 %v259, %v264
    %268 = vrot.lane.b32.xlu0 %v266, 32
    %v269 = vpop.permute.xlu0 %268
    %v271 = vadd.f32 %v261, %v269
    %v272 = vtanh.pop %v271
    %274 = vrot.lane.b32.xlu0 %v272, 64
    %v275 = vpop.permute.xlu0 %274
    %v277 = vmul.f32 %v259, %v275
    %s278 = scalar_lea.vmem [#allocation2], 3
    %v279 = vld [vmem:[%s278] sm:$0x1]
    %v280 = vunpack.c.l.bf16 %v279
    %v281 = vpack.c.bf16 %v277, %v277
    %283 = vrot.lane.b32.xlu0 %v281, 32
    %v284 = vpop.permute.xlu0 %283
    %v286 = vsel %vm59, %v284, 0
    %288 = vmatprep.subr.bf16.mxu0 0
    %289 = vmatpush1.bf16.msra.mxu0 %v55
    %290 = vmatprep.subr.bf16.mxu0 0
    %291 = vmatpush1.bf16.msra.mxu0 %v56
    %292 = vmatprep.subr.bf16.mxu0 0
    %293 = vmatpush1.bf16.msra.mxu0 0
    %294 = vmatprep.subr.bf16.mxu0 0
    %295 = vmatpush1.bf16.msra.mxu0 0
    %296 = vmatprep.subr.bf16.mxu0 0
    %297 = vmatpush1.bf16.msra.mxu0 0
    %298 = vmatprep.subr.bf16.mxu0 0
    %299 = vmatpush1.bf16.msra.mxu0 0
    %300 = vmatprep.subr.bf16.mxu0 0
    %301 = vmatpush1.bf16.msra.mxu0 0
    %302 = vmatprep.subr.bf16.mxu0 0
    %303 = vmatpush1.bf16.msra.mxu0 0
    %304 = vmatprep.subr.bf16.mxu0 0
    %305 = vmatpush1.bf16.msra.mxu0 0
    %306 = vmatprep.subr.bf16.mxu0 0
    %307 = vmatpush1.bf16.msra.mxu0 0
    %308 = vmatprep.subr.bf16.mxu0 0
    %309 = vmatpush1.bf16.msra.mxu0 0
    %310 = vmatprep.subr.bf16.mxu0 0
    %311 = vmatpush1.bf16.msra.mxu0 0
    %312 = vmatprep.subr.bf16.mxu0 0
    %313 = vmatpush1.bf16.msra.mxu0 0
    %314 = vmatprep.subr.bf16.mxu0 0
    %315 = vmatpush1.bf16.msra.mxu0 0
    %316 = vmatprep.subr.bf16.mxu0 0
    %317 = vmatpush1.bf16.msra.mxu0 0
    %318 = vmatprep.subr.bf16.mxu0 0
    %319 = vmatpush1.bf16.msra.mxu0 0
    %320 = vmatprep.mubr.bf16.mxu0 0
    %321 = vmatmul.mubr.bf16.gmra.mrb[0].mxu0 %v286
    %v322 = vpop.f32.mrb[0].mxu0
    %v323 = vadd.f32 0.0, %v322
    %v324 = vpop.f32.mrb[0].mxu0
    %v325 = vpop.f32.mrb[0].mxu0
    %v326 = vpop.f32.mrb[0].mxu0
    %327 = vdwg.mxu0
    %v328 = vadd.f32 %v280, %v323
    %v329 = vxor.u32 %v328, 2147483648
    %v330 = vmul.f32 %v329, 1.442695
    %v331 = vpow.pop %v330
    %v332 = vadd.f32 %v331, 1.0
    %v333 = vrcp.pop %v332
    %v334 = vmul.f32 1.0, %v333
    %v335 = vtanh.pop %v328
    %v336 = vmul.f32 %v334, %v271
    %338 = vrot.lane.b32.xlu0 %v335, 64
    %v339 = vpop.permute.xlu0 %338
    %v341 = vmul.f32 %v334, %v339
    %343 = vrot.lane.b32.xlu0 %v341, 32
    %v344 = vpop.permute.xlu0 %343
    %v346 = vadd.f32 %v336, %v344
    %v347 = vtanh.pop %v346
    %349 = vrot.lane.b32.xlu0 %v347, 64
    %v350 = vpop.permute.xlu0 %349
    %v352 = vmul.f32 %v334, %v350
    %s353 = scalar_lea.vmem [#allocation2], 4
    %v354 = vld [vmem:[%s353] sm:$0x1]
    %v355 = vunpack.c.l.bf16 %v354
    %v356 = vpack.c.bf16 %v352, %v352
    %358 = vrot.lane.b32.xlu0 %v356, 32
    %v359 = vpop.permute.xlu0 %358
    %v361 = vsel %vm59, %v359, 0
    %363 = vmatprep.subr.bf16.mxu0 0
    %364 = vmatpush1.bf16.msra.mxu0 %v55
    %365 = vmatprep.subr.bf16.mxu0 0
    %366 = vmatpush1.bf16.msra.mxu0 %v56
    %367 = vmatprep.subr.bf16.mxu0 0
    %368 = vmatpush1.bf16.msra.mxu0 0
    %369 = vmatprep.subr.bf16.mxu0 0
    %370 = vmatpush1.bf16.msra.mxu0 0
    %371 = vmatprep.subr.bf16.mxu0 0
    %372 = vmatpush1.bf16.msra.mxu0 0
    %373 = vmatprep.subr.bf16.mxu0 0
    %374 = vmatpush1.bf16.msra.mxu0 0
    %375 = vmatprep.subr.bf16.mxu0 0
    %376 = vmatpush1.bf16.msra.mxu0 0
    %377 = vmatprep.subr.bf16.mxu0 0
    %378 = vmatpush1.bf16.msra.mxu0 0
    %379 = vmatprep.subr.bf16.mxu0 0
    %380 = vmatpush1.bf16.msra.mxu0 0
    %381 = vmatprep.subr.bf16.mxu0 0
    %382 = vmatpush1.bf16.msra.mxu0 0
    %383 = vmatprep.subr.bf16.mxu0 0
    %384 = vmatpush1.bf16.msra.mxu0 0
    %385 = vmatprep.subr.bf16.mxu0 0
    %386 = vmatpush1.bf16.msra.mxu0 0
    %387 = vmatprep.subr.bf16.mxu0 0
    %388 = vmatpush1.bf16.msra.mxu0 0
    %389 = vmatprep.subr.bf16.mxu0 0
    %390 = vmatpush1.bf16.msra.mxu0 0
    %391 = vmatprep.subr.bf16.mxu0 0
    %392 = vmatpush1.bf16.msra.mxu0 0
    %393 = vmatprep.subr.bf16.mxu0 0
    %394 = vmatpush1.bf16.msra.mxu0 0
    %395 = vmatprep.mubr.bf16.mxu0 0
    %396 = vmatmul.mubr.bf16.gmra.mrb[0].mxu0 %v361
    %v397 = vpop.f32.mrb[0].mxu0
    %v398 = vadd.f32 0.0, %v397
    %v399 = vpop.f32.mrb[0].mxu0
    %v400 = vpop.f32.mrb[0].mxu0
    %v401 = vpop.f32.mrb[0].mxu0
    %402 = vdwg.mxu0
    %v403 = vadd.f32 %v355, %v398
    %v404 = vxor.u32 %v403, 2147483648
    %v405 = vmul.f32 %v404, 1.442695
    %v406 = vpow.pop %v405
    %v407 = vadd.f32 %v406, 1.0
    %v408 = vrcp.pop %v407
    %v409 = vmul.f32 1.0, %v408
    %v410 = vtanh.pop %v403
    %v411 = vmul.f32 %v409, %v346
    %413 = vrot.lane.b32.xlu0 %v410, 64
    %v414 = vpop.permute.xlu0 %413
    %v416 = vmul.f32 %v409, %v414
    %418 = vrot.lane.b32.xlu0 %v416, 32
    %v419 = vpop.permute.xlu0 %418
    %v421 = vadd.f32 %v411, %v419
    %v422 = vtanh.pop %v421
    %424 = vrot.lane.b32.xlu0 %v422, 64
    %v425 = vpop.permute.xlu0 %424
    %v427 = vmul.f32 %v409, %v425
    %s428 = scalar_lea.vmem [#allocation2], 5
    %v429 = vld [vmem:[%s428] sm:$0x1]
    %v430 = vunpack.c.l.bf16 %v429
    %v431 = vpack.c.bf16 %v427, %v427
    %433 = vrot.lane.b32.xlu0 %v431, 32
    %v434 = vpop.permute.xlu0 %433
    %v436 = vsel %vm59, %v434, 0
    %438 = vmatprep.subr.bf16.mxu0 0
    %439 = vmatpush1.bf16.msra.mxu0 %v55
    %440 = vmatprep.subr.bf16.mxu0 0
    %441 = vmatpush1.bf16.msra.mxu0 %v56
    %442 = vmatprep.subr.bf16.mxu0 0
    %443 = vmatpush1.bf16.msra.mxu0 0
    %444 = vmatprep.subr.bf16.mxu0 0
    %445 = vmatpush1.bf16.msra.mxu0 0
    %446 = vmatprep.subr.bf16.mxu0 0
    %447 = vmatpush1.bf16.msra.mxu0 0
    %448 = vmatprep.subr.bf16.mxu0 0
    %449 = vmatpush1.bf16.msra.mxu0 0
    %450 = vmatprep.subr.bf16.mxu0 0
    %451 = vmatpush1.bf16.msra.mxu0 0
    %452 = vmatprep.subr.bf16.mxu0 0
    %453 = vmatpush1.bf16.msra.mxu0 0
    %454 = vmatprep.subr.bf16.mxu0 0
    %455 = vmatpush1.bf16.msra.mxu0 0
    %456 = vmatprep.subr.bf16.mxu0 0
    %457 = vmatpush1.bf16.msra.mxu0 0
    %458 = vmatprep.subr.bf16.mxu0 0
    %459 = vmatpush1.bf16.msra.mxu0 0
    %460 = vmatprep.subr.bf16.mxu0 0
    %461 = vmatpush1.bf16.msra.mxu0 0
    %462 = vmatprep.subr.bf16.mxu0 0
    %463 = vmatpush1.bf16.msra.mxu0 0
    %464 = vmatprep.subr.bf16.mxu0 0
    %465 = vmatpush1.bf16.msra.mxu0 0
    %466 = vmatprep.subr.bf16.mxu0 0
    %467 = vmatpush1.bf16.msra.mxu0 0
    %468 = vmatprep.subr.bf16.mxu0 0
    %469 = vmatpush1.bf16.msra.mxu0 0
    %470 = vmatprep.mubr.bf16.mxu0 0
    %471 = vmatmul.mubr.bf16.gmra.mrb[0].mxu0 %v436
    %v472 = vpop.f32.mrb[0].mxu0
    %v473 = vadd.f32 0.0, %v472
    %v474 = vpop.f32.mrb[0].mxu0
    %v475 = vpop.f32.mrb[0].mxu0
    %v476 = vpop.f32.mrb[0].mxu0
    %477 = vdwg.mxu0
    %v478 = vadd.f32 %v430, %v473
    %v479 = vxor.u32 %v478, 2147483648
    %v480 = vmul.f32 %v479, 1.442695
    %v481 = vpow.pop %v480
    %v482 = vadd.f32 %v481, 1.0
    %v483 = vrcp.pop %v482
    %v484 = vmul.f32 1.0, %v483
    %v485 = vtanh.pop %v478
    %v486 = vmul.f32 %v484, %v421
    %488 = vrot.lane.b32.xlu0 %v485, 64
    %v489 = vpop.permute.xlu0 %488
    %v491 = vmul.f32 %v484, %v489
    %493 = vrot.lane.b32.xlu0 %v491, 32
    %v494 = vpop.permute.xlu0 %493
    %v496 = vadd.f32 %v486, %v494
    %v497 = vtanh.pop %v496
    %499 = vrot.lane.b32.xlu0 %v497, 64
    %v500 = vpop.permute.xlu0 %499
    %v502 = vmul.f32 %v484, %v500
    %s503 = scalar_lea.vmem [#allocation2], 6
    %v504 = vld [vmem:[%s503] sm:$0x1]
    %v505 = vunpack.c.l.bf16 %v504
    %v506 = vpack.c.bf16 %v502, %v502
    %508 = vrot.lane.b32.xlu0 %v506, 32
    %v509 = vpop.permute.xlu0 %508
    %v511 = vsel %vm59, %v509, 0
    %513 = vmatprep.subr.bf16.mxu0 0
    %514 = vmatpush1.bf16.msra.mxu0 %v55
    %515 = vmatprep.subr.bf16.mxu0 0
    %516 = vmatpush1.bf16.msra.mxu0 %v56
    %517 = vmatprep.subr.bf16.mxu0 0
    %518 = vmatpush1.bf16.msra.mxu0 0
    %519 = vmatprep.subr.bf16.mxu0 0
    %520 = vmatpush1.bf16.msra.mxu0 0
    %521 = vmatprep.subr.bf16.mxu0 0
    %522 = vmatpush1.bf16.msra.mxu0 0
    %523 = vmatprep.subr.bf16.mxu0 0
    %524 = vmatpush1.bf16.msra.mxu0 0
    %525 = vmatprep.subr.bf16.mxu0 0
    %526 = vmatpush1.bf16.msra.mxu0 0
    %527 = vmatprep.subr.bf16.mxu0 0
    %528 = vmatpush1.bf16.msra.mxu0 0
    %529 = vmatprep.subr.bf16.mxu0 0
    %530 = vmatpush1.bf16.msra.mxu0 0
    %531 = vmatprep.subr.bf16.mxu0 0
    %532 = vmatpush1.bf16.msra.mxu0 0
    %533 = vmatprep.subr.bf16.mxu0 0
    %534 = vmatpush1.bf16.msra.mxu0 0
    %535 = vmatprep.subr.bf16.mxu0 0
    %536 = vmatpush1.bf16.msra.mxu0 0
    %537 = vmatprep.subr.bf16.mxu0 0
    %538 = vmatpush1.bf16.msra.mxu0 0
    %539 = vmatprep.subr.bf16.mxu0 0
    %540 = vmatpush1.bf16.msra.mxu0 0
    %541 = vmatprep.subr.bf16.mxu0 0
    %542 = vmatpush1.bf16.msra.mxu0 0
    %543 = vmatprep.subr.bf16.mxu0 0
    %544 = vmatpush1.bf16.msra.mxu0 0
    %545 = vmatprep.mubr.bf16.mxu0 0
    %546 = vmatmul.mubr.bf16.gmra.mrb[0].mxu0 %v511
    %v547 = vpop.f32.mrb[0].mxu0
    %v548 = vadd.f32 0.0, %v547
    %v549 = vpop.f32.mrb[0].mxu0
    %v550 = vpop.f32.mrb[0].mxu0
    %v551 = vpop.f32.mrb[0].mxu0
    %552 = vdwg.mxu0
    %v553 = vadd.f32 %v505, %v548
    %v554 = vxor.u32 %v553, 2147483648
    %v555 = vmul.f32 %v554, 1.442695
    %v556 = vpow.pop %v555
    %v557 = vadd.f32 %v556, 1.0
    %v558 = vrcp.pop %v557
    %v559 = vmul.f32 1.0, %v558
    %v560 = vtanh.pop %v553
    %v561 = vmul.f32 %v559, %v496
    %563 = vrot.lane.b32.xlu0 %v560, 64
    %v564 = vpop.permute.xlu0 %563
    %v566 = vmul.f32 %v559, %v564
    %568 = vrot.lane.b32.xlu0 %v566, 32
    %v569 = vpop.permute.xlu0 %568
    %v571 = vadd.f32 %v561, %v569
    %v572 = vtanh.pop %v571
    %574 = vrot.lane.b32.xlu0 %v572, 64
    %v575 = vpop.permute.xlu0 %574
    %v577 = vmul.f32 %v559, %v575
    %s578 = scalar_lea.vmem [#allocation2], 7
    %v579 = vld [vmem:[%s578] sm:$0x1]
    %v580 = vunpack.c.l.bf16 %v579
    %v581 = vpack.c.bf16 %v577, %v577
    %583 = vrot.lane.b32.xlu0 %v581, 32
    %v584 = vpop.permute.xlu0 %583
    %v586 = vsel %vm59, %v584, 0
    %588 = vmatprep.subr.bf16.mxu0 0
    %589 = vmatpush1.bf16.msra.mxu0 %v55
    %590 = vmatprep.subr.bf16.mxu0 0
    %591 = vmatpush1.bf16.msra.mxu0 %v56
    %592 = vmatprep.subr.bf16.mxu0 0
    %593 = vmatpush1.bf16.msra.mxu0 0
    %594 = vmatprep.subr.bf16.mxu0 0
    %595 = vmatpush1.bf16.msra.mxu0 0
    %596 = vmatprep.subr.bf16.mxu0 0
    %597 = vmatpush1.bf16.msra.mxu0 0
    %598 = vmatprep.subr.bf16.mxu0 0
    %599 = vmatpush1.bf16.msra.mxu0 0
    %600 = vmatprep.subr.bf16.mxu0 0
    %601 = vmatpush1.bf16.msra.mxu0 0
    %602 = vmatprep.subr.bf16.mxu0 0
    %603 = vmatpush1.bf16.msra.mxu0 0
    %604 = vmatprep.subr.bf16.mxu0 0
    %605 = vmatpush1.bf16.msra.mxu0 0
    %606 = vmatprep.subr.bf16.mxu0 0
    %607 = vmatpush1.bf16.msra.mxu0 0
    %608 = vmatprep.subr.bf16.mxu0 0
    %609 = vmatpush1.bf16.msra.mxu0 0
    %610 = vmatprep.subr.bf16.mxu0 0
    %611 = vmatpush1.bf16.msra.mxu0 0
    %612 = vmatprep.subr.bf16.mxu0 0
    %613 = vmatpush1.bf16.msra.mxu0 0
    %614 = vmatprep.subr.bf16.mxu0 0
    %615 = vmatpush1.bf16.msra.mxu0 0
    %616 = vmatprep.subr.bf16.mxu0 0
    %617 = vmatpush1.bf16.msra.mxu0 0
    %618 = vmatprep.subr.bf16.mxu0 0
    %619 = vmatpush1.bf16.msra.mxu0 0
    %620 = vmatprep.mubr.bf16.mxu0 0
    %621 = vmatmul.mubr.bf16.gmra.mrb[0].mxu0 %v586
    %v622 = vpop.f32.mrb[0].mxu0
    %v623 = vadd.f32 0.0, %v622
    %v624 = vpop.f32.mrb[0].mxu0
    %v625 = vpop.f32.mrb[0].mxu0
    %v626 = vpop.f32.mrb[0].mxu0
    %627 = vdwg.mxu0
    %v628 = vadd.f32 %v580, %v623
    %v629 = vxor.u32 %v628, 2147483648
    %v630 = vmul.f32 %v629, 1.442695
    %v631 = vpow.pop %v630
    %v632 = vadd.f32 %v631, 1.0
    %v633 = vrcp.pop %v632
    %v634 = vmul.f32 1.0, %v633
    %v635 = vtanh.pop %v628
    %v636 = vmul.f32 %v634, %v571
    %638 = vrot.lane.b32.xlu0 %v635, 64
    %v639 = vpop.permute.xlu0 %638
    %v641 = vmul.f32 %v634, %v639
    %643 = vrot.lane.b32.xlu0 %v641, 32
    %v644 = vpop.permute.xlu0 %643
    %v646 = vadd.f32 %v636, %v644
    %v647 = vtanh.pop %v646
    %649 = vrot.lane.b32.xlu0 %v647, 64
    %v650 = vpop.permute.xlu0 %649
    %v652 = vmul.f32 %v634, %v650
    %v655 = vunpack.c.l.s4 1983009808
    %v656 = vunpack.c.0.s8 %v655
    %v657 = vlaneseq
    %v658 = vshrl.u32 %v657, 7
    %v659 = vsub.s32 %v656, %v658
    %v660 = vrot.slane %v652, %v659
    %661 = vrot.lane.b32.xlu0 %v660, 32
    %v662 = vpop.permute.xlu0 %661
    %vm664 = vcmask 254976
    %665 = vst.msk [vmem:[#allocation7] sm:$0x3] %vm664, %v662
    // Predicated region
    $region18: #{updn_forward.6} parent=1 // pred_check
      _
    $region19: #{updn_forward.6} parent=1 // pred_check_branch
      %667 = sbr.rel (0) target = $region21
    $region20: #{updn_forward.6} parent=1 // pred_region
      %s669 = ssub.s32 32, 32
      %670 = vsyncadd [#allocation4], %s669
      %s672 = sshll.u32 [#allocation7], 4
      %s673 = int_to_ptr.vmem [resolvable:$true] %s672
      %675 = dma.vmem_to_hbm [thread:$0]  %s673, 32, %s2, [#allocation4]
    $region21: #{updn_forward.6} parent=1 // pred_fallthru
      _
    // Predicated region
    $region22: #{updn_forward.6} parent=1 // pred_check
      _
    $region23: #{updn_forward.6} parent=1 // pred_check_branch
      %677 = sbr.rel (0) target = $region25
    $region24: #{updn_forward.6} parent=1 // pred_region
      %678 = dma.done [#allocation4], 32
    $region25: #{updn_forward.6} parent=1 // pred_fallthru
      _
    %679 = vsyncpa [#allocation3], 1
    %680 = vsyncpa [#allocation6], 1
    %681 = vsyncpa [#allocation4], 1

// kernel: updn_forward.5
$region0: #{updn_forward.5}
  #allocation0 [shape = 'u32[]', space=smem, size = 0x4, offset = 0x4, fixed_abs, tag = 'smem constant byte address 0x4 - core index']
  #allocation1 [shape = 'u32[144,128]{1,0:T(1,128)}', space=vmem, size = 0x12000, scoped, tag = 'internal scratch']
  %s0 = inlined_call_operand.hbm [shape: bf16[16,16], index: 0, kind: input, shape index: {}]
  %s1 = inlined_call_operand.hbm [shape: bf16[16,128], index: 1, kind: input, shape index: {}]
  %s2 = inlined_call_operand.hbm [shape: f32[1,128], index: 2, kind: input, shape index: {}]
  %s3 = inlined_call_operand.hbm [shape: bf16[16,128], index: 3, kind: output, shape index: {}]
  %s4 = sld [smem:[#allocation0]]
  $region34: #{updn_forward.5} parent=0
    _
  %s6 = ssub.s32 1, %s4
  %s7 = scalar_select 0, %s6, %s4
  $region1: #{updn_forward.5} parent=0
    #allocation2 [shape = 'u8[4096]{0}', space=vmem, size = 0x1000, scoped, tag = 'input window, operand 0, single buffered']
    #allocation3 [shape = 's32[1]{0}', space=sflag, size = 0x4, scoped, tag = 'scoped memory for updn_forward.5']
    #allocation4 [shape = 's32[1]{0}', space=sflag, size = 0x4, scoped, tag = 'scoped memory for updn_forward.5']
    #allocation5 [shape = 'u8[4096]{0}', space=vmem, size = 0x1000, scoped, tag = 'input window, operand 1, single buffered']
    #allocation6 [shape = 's32[1]{0}', space=sflag, size = 0x4, scoped, tag = 'scoped memory for updn_forward.5']
    #allocation7 [shape = 'u8[512]{0}', space=vmem, size = 0x400, scoped, tag = 'input window, operand 2, single buffered']
    #allocation8 [shape = 'u8[4096]{0}', space=vmem, size = 0x1000, scoped, tag = 'output window, operand 0, single buffered']
    %8 = vsyncpa [#allocation3], 0
    %9 = vsyncpa [#allocation6], 0
    %10 = vsyncpa [#allocation4], 0
    // Predicated region
    $region2: #{updn_forward.5} parent=1 // pred_check
      _
    $region3: #{updn_forward.5} parent=1 // pred_check_branch
      %12 = sbr.rel (0) target = $region5
    $region4: #{updn_forward.5} parent=1 // pred_region
      %s14 = ssub.s32 128, 128
      %15 = vsyncadd [#allocation3], %s14
      %s16 = sshll.u32 [#allocation2], 4
      %s17 = int_to_ptr.vmem [resolvable:$true] %s16
      %22 = dma.hbm_to_vmem [thread:$0]  %s0, 128, %s17, [#allocation3], 64, 64, 4
    $region5: #{updn_forward.5} parent=1 // pred_fallthru
      _
    // Predicated region
    $region6: #{updn_forward.5} parent=1 // pred_check
      _
    $region7: #{updn_forward.5} parent=1 // pred_check_branch
      %24 = sbr.rel (0) target = $region9
    $region8: #{updn_forward.5} parent=1 // pred_region
      %s26 = ssub.s32 128, 128
      %27 = vsyncadd [#allocation6], %s26
      %s28 = sshll.u32 [#allocation5], 4
      %s29 = int_to_ptr.vmem [resolvable:$true] %s28
      %34 = dma.hbm_to_vmem [thread:$0]  %s1, 128, %s29, [#allocation6], 64, 64, 4
    $region9: #{updn_forward.5} parent=1 // pred_fallthru
      _
    // Predicated region
    $region10: #{updn_forward.5} parent=1 // pred_check
      _
    $region11: #{updn_forward.5} parent=1 // pred_check_branch
      %36 = sbr.rel (0) target = $region13
    $region12: #{updn_forward.5} parent=1 // pred_region
      %s38 = ssub.s32 16, 16
      %39 = vsyncadd [#allocation6], %s38
      %s41 = sshll.u32 [#allocation7], 4
      %s42 = int_to_ptr.vmem [resolvable:$true] %s41
      %44 = dma.hbm_to_vmem [thread:$0]  %s2, 16, %s42, [#allocation6]
    $region13: #{updn_forward.5} parent=1 // pred_fallthru
      _
    // Predicated region
    $region14: #{updn_forward.5} parent=1 // pred_check
      _
    $region15: #{updn_forward.5} parent=1 // pred_check_branch
      %46 = sbr.rel (0) target = $region17
    $region16: #{updn_forward.5} parent=1 // pred_region
      %47 = dma.done [#allocation3], 128
    $region17: #{updn_forward.5} parent=1 // pred_fallthru
      _
    // Predicated region
    $region18: #{updn_forward.5} parent=1 // pred_check
      _
    $region19: #{updn_forward.5} parent=1 // pred_check_branch
      %49 = sbr.rel (0) target = $region21
    $region20: #{updn_forward.5} parent=1 // pred_region
      %50 = dma.done [#allocation6], 128
    $region21: #{updn_forward.5} parent=1 // pred_fallthru
      _
    // Predicated region
    $region22: #{updn_forward.5} parent=1 // pred_check
      _
    $region23: #{updn_forward.5} parent=1 // pred_check_branch
      %52 = sbr.rel (0) target = $region25
    $region24: #{updn_forward.5} parent=1 // pred_region
      %53 = dma.done [#allocation6], 16
    $region25: #{updn_forward.5} parent=1 // pred_fallthru
      _
    %v55 = vld [vmem:[#allocation2] sm:$0xf]
    %v56 = vld [vmem:[#allocation2 + $0x4] sm:$0xf]
    %v57 = vld [vmem:[#allocation5] sm:$0xf]
    %v58 = vld [vmem:[#allocation5 + $0x4] sm:$0xf]
    %v59 = vld [vmem:[#allocation7] sm:$0x1]
    %v61 = vlaneseq
    %v62 = vshrl.u32 %v61, 7
    %v63 = vsub.s32 0, %v62
    %v64 = vrot.slane %v59, %v63
    %v68 = vunpack.c.l.b16 %v55
    %v69 = vunpack.c.l.b16 %v56
    %v70 = vpack.c.b16 %v69, %v68
    %v73 = vunpack.c.l.b16 %v57
    %v74 = vunpack.c.l.b16 %v58
    %v75 = vpack.c.b16 %v74, %v73
    %vm77 = vcmask 130048
    %v79 = vsel %vm77, %v70, 0
    %81 = vmatprep.subr.bf16.mxu0 0
    %82 = vmatpush1.bf16.msra.mxu0 %v75
    %83 = vmatprep.subr.bf16.mxu0 0
    %84 = vmatpush1.bf16.msra.mxu0 0
    %85 = vmatprep.subr.bf16.mxu0 0
    %86 = vmatpush1.bf16.msra.mxu0 0
    %87 = vmatprep.subr.bf16.mxu0 0
    %88 = vmatpush1.bf16.msra.mxu0 0
    %89 = vmatprep.subr.bf16.mxu0 0
    %90 = vmatpush1.bf16.msra.mxu0 0
    %91 = vmatprep.subr.bf16.mxu0 0
    %92 = vmatpush1.bf16.msra.mxu0 0
    %93 = vmatprep.subr.bf16.mxu0 0
    %94 = vmatpush1.bf16.msra.mxu0 0
    %95 = vmatprep.subr.bf16.mxu0 0
    %96 = vmatpush1.bf16.msra.mxu0 0
    %97 = vmatprep.subr.bf16.mxu0 0
    %98 = vmatpush1.bf16.msra.mxu0 0
    %99 = vmatprep.subr.bf16.mxu0 0
    %100 = vmatpush1.bf16.msra.mxu0 0
    %101 = vmatprep.subr.bf16.mxu0 0
    %102 = vmatpush1.bf16.msra.mxu0 0
    %103 = vmatprep.subr.bf16.mxu0 0
    %104 = vmatpush1.bf16.msra.mxu0 0
    %105 = vmatprep.subr.bf16.mxu0 0
    %106 = vmatpush1.bf16.msra.mxu0 0
    %107 = vmatprep.subr.bf16.mxu0 0
    %108 = vmatpush1.bf16.msra.mxu0 0
    %109 = vmatprep.subr.bf16.mxu0 0
    %110 = vmatpush1.bf16.msra.mxu0 0
    %111 = vmatprep.subr.bf16.mxu0 0
    %112 = vmatpush1.bf16.msra.mxu0 0
    %113 = vmatprep.mubr.bf16.mxu0 0
    %114 = vmatmul.mubr.bf16.gmra.mrb[0].mxu0 %v79
    %v115 = vpop.f32.mrb[0].mxu0
    %v116 = vadd.f32 %v64, %v115
    %v117 = vpop.f32.mrb[0].mxu0
    %v118 = vpop.f32.mrb[0].mxu0
    %v119 = vadd.f32 %v64, %v118
    %v120 = vpop.f32.mrb[0].mxu0
    %121 = vdwg.mxu0
    %v122 = vpack.c.bf16 %v119, %v116
    %v124 = vunpack.c.l.b16 %v122
    %v125 = vunpack.c.h.b16 %v122
    %v126 = vpack.c.b16 %v124, %v124
    %v127 = vpack.c.b16 %v125, %v125
    %130 = vst [vmem:[#allocation8] sm:$0xf] %v126
    %131 = vst [vmem:[#allocation8 + $0x4] sm:$0xf] %v127
    // Predicated region
    $region26: #{updn_forward.5} parent=1 // pred_check
      _
    $region27: #{updn_forward.5} parent=1 // pred_check_branch
      %133 = sbr.rel (0) target = $region29
    $region28: #{updn_forward.5} parent=1 // pred_region
      %s135 = ssub.s32 128, 128
      %136 = vsyncadd [#allocation4], %s135
      %s137 = sshll.u32 [#allocation8], 4
      %s138 = int_to_ptr.vmem [resolvable:$true] %s137
      %143 = dma.vmem_to_hbm [thread:$0]  %s138, 128, %s3, [#allocation4], 64, 64, 4
    $region29: #{updn_forward.5} parent=1 // pred_fallthru
      _
    // Predicated region
    $region30: #{updn_forward.5} parent=1 // pred_check
      _
    $region31: #{updn_forward.5} parent=1 // pred_check_branch
      %145 = sbr.rel (0) target = $region33
    $region32: #{updn_forward.5} parent=1 // pred_region
      %146 = dma.done [#allocation4], 128
    $region33: #{updn_forward.5} parent=1 // pred_fallthru
      _
    %147 = vsyncpa [#allocation3], 1
    %148 = vsyncpa [#allocation6], 1
    %149 = vsyncpa [#allocation4], 1

// kernel: updn_forward.8
$region0: #{updn_forward.8}
  #allocation0 [shape = 'u32[]', space=smem, size = 0x4, offset = 0x4, fixed_abs, tag = 'smem constant byte address 0x4 - core index']
  #allocation1 [shape = 'u32[144,128]{1,0:T(1,128)}', space=vmem, size = 0x12000, scoped, tag = 'internal scratch']
  %s0 = inlined_call_operand.hbm [shape: f32[2,32], index: 0, kind: input, shape index: {}]
  %s1 = inlined_call_operand.hbm [shape: bf16[32,64], index: 1, kind: input, shape index: {}]
  %s2 = inlined_call_operand.hbm [shape: f32[1,64], index: 2, kind: input, shape index: {}]
  %s3 = inlined_call_operand.hbm [shape: f32[2,64], index: 3, kind: output, shape index: {}]
  %s4 = sld [smem:[#allocation0]]
  $region34: #{updn_forward.8} parent=0
    _
  %s6 = ssub.s32 1, %s4
  %s7 = scalar_select 0, %s6, %s4
  $region1: #{updn_forward.8} parent=0
    #allocation2 [shape = 'u8[1024]{0}', space=vmem, size = 0x400, scoped, tag = 'input window, operand 0, single buffered']
    #allocation3 [shape = 's32[1]{0}', space=sflag, size = 0x4, scoped, tag = 'scoped memory for updn_forward.8']
    #allocation4 [shape = 's32[1]{0}', space=sflag, size = 0x4, scoped, tag = 'scoped memory for updn_forward.8']
    #allocation5 [shape = 'u8[8192]{0}', space=vmem, size = 0x2000, scoped, tag = 'input window, operand 1, single buffered']
    #allocation6 [shape = 's32[1]{0}', space=sflag, size = 0x4, scoped, tag = 'scoped memory for updn_forward.8']
    #allocation7 [shape = 'u8[512]{0}', space=vmem, size = 0x400, scoped, tag = 'input window, operand 2, single buffered']
    #allocation8 [shape = 'u8[1024]{0}', space=vmem, size = 0x400, scoped, tag = 'output window, operand 0, single buffered']
    %8 = vsyncpa [#allocation3], 0
    %9 = vsyncpa [#allocation6], 0
    %10 = vsyncpa [#allocation4], 0
    // Predicated region
    $region2: #{updn_forward.8} parent=1 // pred_check
      _
    $region3: #{updn_forward.8} parent=1 // pred_check_branch
      %12 = sbr.rel (0) target = $region5
    $region4: #{updn_forward.8} parent=1 // pred_region
      %s14 = ssub.s32 32, 32
      %15 = vsyncadd [#allocation3], %s14
      %s17 = sshll.u32 [#allocation2], 4
      %s18 = int_to_ptr.vmem [resolvable:$true] %s17
      %20 = dma.hbm_to_vmem [thread:$0]  %s0, 32, %s18, [#allocation3]
    $region5: #{updn_forward.8} parent=1 // pred_fallthru
      _
    // Predicated region
    $region6: #{updn_forward.8} parent=1 // pred_check
      _
    $region7: #{updn_forward.8} parent=1 // pred_check_branch
      %22 = sbr.rel (0) target = $region9
    $region8: #{updn_forward.8} parent=1 // pred_region
      %s24 = ssub.s32 256, 256
      %25 = vsyncadd [#allocation6], %s24
      %s26 = sshll.u32 [#allocation5], 4
      %s27 = int_to_ptr.vmem [resolvable:$true] %s26
      %32 = dma.hbm_to_vmem [thread:$0]  %s1, 256, %s27, [#allocation6], 64, 64, 4
    $region9: #{updn_forward.8} parent=1 // pred_fallthru
      _
    // Predicated region
    $region10: #{updn_forward.8} parent=1 // pred_check
      _
    $region11: #{updn_forward.8} parent=1 // pred_check_branch
      %34 = sbr.rel (0) target = $region13
    $region12: #{updn_forward.8} parent=1 // pred_region
      %s36 = ssub.s32 16, 16
      %37 = vsyncadd [#allocation6], %s36
      %s39 = sshll.u32 [#allocation7], 4
      %s40 = int_to_ptr.vmem [resolvable:$true] %s39
      %42 = dma.hbm_to_vmem [thread:$0]  %s2, 16, %s40, [#allocation6]
    $region13: #{updn_forward.8} parent=1 // pred_fallthru
      _
    // Predicated region
    $region14: #{updn_forward.8} parent=1 // pred_check
      _
    $region15: #{updn_forward.8} parent=1 // pred_check_branch
      %44 = sbr.rel (0) target = $region17
    $region16: #{updn_forward.8} parent=1 // pred_region
      %45 = dma.done [#allocation3], 32
    $region17: #{updn_forward.8} parent=1 // pred_fallthru
      _
    // Predicated region
    $region18: #{updn_forward.8} parent=1 // pred_check
      _
    $region19: #{updn_forward.8} parent=1 // pred_check_branch
      %47 = sbr.rel (0) target = $region21
    $region20: #{updn_forward.8} parent=1 // pred_region
      %48 = dma.done [#allocation6], 256
    $region21: #{updn_forward.8} parent=1 // pred_fallthru
      _
    // Predicated region
    $region22: #{updn_forward.8} parent=1 // pred_check
      _
    $region23: #{updn_forward.8} parent=1 // pred_check_branch
      %50 = sbr.rel (0) target = $region25
    $region24: #{updn_forward.8} parent=1 // pred_region
      %51 = dma.done [#allocation6], 16
    $region25: #{updn_forward.8} parent=1 // pred_fallthru
      _
    %v53 = vld [vmem:[#allocation2] sm:$0x3]
    %v54 = vpack.c.bf16 %v53, %v53
    %v55 = vld [vmem:[#allocation5] sm:$0xf]
    %v56 = vld [vmem:[#allocation5 + $0x4] sm:$0xf]
    %v57 = vld [vmem:[#allocation5 + $0x8] sm:$0xf]
    %v58 = vld [vmem:[#allocation5 + $0xc] sm:$0xf]
    %v59 = vld [vmem:[#allocation7] sm:$0x1]
    %v61 = vlaneseq
    %v62 = vshrl.u32 %v61, 7
    %v63 = vsub.s32 0, %v62
    %v64 = vrot.slane %v59, %v63
    %v70 = vunpack.c.l.b16 %v55
    %v71 = vunpack.c.l.b16 %v56
    %v72 = vunpack.c.l.b16 %v57
    %v73 = vunpack.c.l.b16 %v58
    %v74 = vpack.c.b16 %v71, %v70
    %v75 = vpack.c.b16 %v73, %v72
    %vm78 = vcmask 261120
    %v80 = vsel %vm78, %v54, 0
    %82 = vmatprep.subr.bf16.mxu0 0
    %83 = vmatpush1.bf16.msra.mxu0 %v74
    %84 = vmatprep.subr.bf16.mxu0 0
    %85 = vmatpush1.bf16.msra.mxu0 %v75
    %86 = vmatprep.subr.bf16.mxu0 0
    %87 = vmatpush1.bf16.msra.mxu0 0
    %88 = vmatprep.subr.bf16.mxu0 0
    %89 = vmatpush1.bf16.msra.mxu0 0
    %90 = vmatprep.subr.bf16.mxu0 0
    %91 = vmatpush1.bf16.msra.mxu0 0
    %92 = vmatprep.subr.bf16.mxu0 0
    %93 = vmatpush1.bf16.msra.mxu0 0
    %94 = vmatprep.subr.bf16.mxu0 0
    %95 = vmatpush1.bf16.msra.mxu0 0
    %96 = vmatprep.subr.bf16.mxu0 0
    %97 = vmatpush1.bf16.msra.mxu0 0
    %98 = vmatprep.subr.bf16.mxu0 0
    %99 = vmatpush1.bf16.msra.mxu0 0
    %100 = vmatprep.subr.bf16.mxu0 0
    %101 = vmatpush1.bf16.msra.mxu0 0
    %102 = vmatprep.subr.bf16.mxu0 0
    %103 = vmatpush1.bf16.msra.mxu0 0
    %104 = vmatprep.subr.bf16.mxu0 0
    %105 = vmatpush1.bf16.msra.mxu0 0
    %106 = vmatprep.subr.bf16.mxu0 0
    %107 = vmatpush1.bf16.msra.mxu0 0
    %108 = vmatprep.subr.bf16.mxu0 0
    %109 = vmatpush1.bf16.msra.mxu0 0
    %110 = vmatprep.subr.bf16.mxu0 0
    %111 = vmatpush1.bf16.msra.mxu0 0
    %112 = vmatprep.subr.bf16.mxu0 0
    %113 = vmatpush1.bf16.msra.mxu0 0
    %114 = vmatprep.mubr.bf16.mxu0 0
    %115 = vmatmul.mubr.bf16.gmra.mrb[0].mxu0 %v80
    %v116 = vpop.f32.mrb[0].mxu0
    %v117 = vadd.f32 %v64, %v116
    %v118 = vpop.f32.mrb[0].mxu0
    %v119 = vpop.f32.mrb[0].mxu0
    %v120 = vpop.f32.mrb[0].mxu0
    %121 = vdwg.mxu0
    %vm122 = vcmask 517120
    %123 = vst.msk [vmem:[#allocation8] sm:$0x3] %vm122, %v117
    // Predicated region
    $region26: #{updn_forward.8} parent=1 // pred_check
      _
    $region27: #{updn_forward.8} parent=1 // pred_check_branch
      %125 = sbr.rel (0) target = $region29
    $region28: #{updn_forward.8} parent=1 // pred_region
      %s127 = ssub.s32 32, 32
      %128 = vsyncadd [#allocation4], %s127
      %s130 = sshll.u32 [#allocation8], 4
      %s131 = int_to_ptr.vmem [resolvable:$true] %s130
      %133 = dma.vmem_to_hbm [thread:$0]  %s131, 32, %s3, [#allocation4]
    $region29: #{updn_forward.8} parent=1 // pred_fallthru
      _
    // Predicated region
    $region30: #{updn_forward.8} parent=1 // pred_check
      _
    $region31: #{updn_forward.8} parent=1 // pred_check_branch
      %135 = sbr.rel (0) target = $region33
    $region32: #{updn_forward.8} parent=1 // pred_region
      %136 = dma.done [#allocation4], 32
    $region33: #{updn_forward.8} parent=1 // pred_fallthru
      _
    %137 = vsyncpa [#allocation3], 1
    %138 = vsyncpa [#allocation6], 1
    %139 = vsyncpa [#allocation4], 1

// kernel: updn_forward.7
$region0: #{updn_forward.7}
  #allocation0 [shape = 'u32[]', space=smem, size = 0x4, offset = 0x4, fixed_abs, tag = 'smem constant byte address 0x4 - core index']
  #allocation1 [shape = 'u32[144,128]{1,0:T(1,128)}', space=vmem, size = 0x12000, scoped, tag = 'internal scratch']
  #allocation2 [shape = 'f32[1,1]{1,0:T(1,128)S(6)}', space=smem, size = 0x200, scoped, tag = 'scoped memory for updn_forward.7']
  %s0 = inlined_call_operand.hbm [shape: f32[2,32], index: 0, kind: input, shape index: {}]
  %s1 = inlined_call_operand.hbm [shape: f32[16,24], index: 1, kind: input, shape index: {}]
  %s2 = inlined_call_operand.hbm [shape: bf16[24,32], index: 2, kind: input, shape index: {}]
  %s3 = inlined_call_operand.hbm [shape: f32[1,32], index: 3, kind: input, shape index: {}]
  %s4 = inlined_call_operand.hbm [shape: bf16[32,32], index: 4, kind: input, shape index: {}]
  %s5 = inlined_call_operand.hbm [shape: f32[1,32], index: 5, kind: input, shape index: {}]
  %s6 = inlined_call_operand.hbm [shape: bf16[32,32], index: 6, kind: input, shape index: {}]
  %s7 = inlined_call_operand.hbm [shape: f32[1,32], index: 7, kind: input, shape index: {}]
  %s8 = inlined_call_operand.hbm [shape: bf16[32,32], index: 8, kind: input, shape index: {}]
  %s9 = inlined_call_operand.hbm [shape: bf16[32,32], index: 9, kind: input, shape index: {}]
  %s10 = inlined_call_operand.hbm [shape: f32[1,32], index: 10, kind: input, shape index: {}]
  %s11 = inlined_call_operand.hbm [shape: f32[1,32], index: 11, kind: input, shape index: {}]
  %s12 = inlined_call_operand.<no memory space> [shape: f32[1,1], index: 12, kind: input, shape index: {}]
  %s13 = inlined_call_operand.hbm [shape: bf16[32,32], index: 13, kind: input, shape index: {}]
  %s14 = inlined_call_operand.hbm [shape: f32[1,32], index: 14, kind: input, shape index: {}]
  %s15 = inlined_call_operand.hbm [shape: bf16[32,32], index: 15, kind: input, shape index: {}]
  %s16 = inlined_call_operand.hbm [shape: f32[1,32], index: 16, kind: input, shape index: {}]
  %s17 = inlined_call_operand.hbm [shape: f32[16,32], index: 17, kind: output, shape index: {0}]
  %s18 = inlined_call_operand.hbm [shape: f32[2,32], index: 18, kind: output, shape index: {1}]
  %19 = xla_tuple %s17, %s18
  %s20 = sld [smem:[#allocation0]]
  $region150: #{updn_forward.7} parent=0
    _
  %s22 = ssub.s32 1, %s20
  %s23 = scalar_select 0, %s22, %s20
  %24 = sst [smem:[#allocation2]] %s12
  $region1: #{updn_forward.7} parent=0
    #allocation3 [shape = 'u8[1024]{0}', space=vmem, size = 0x400, scoped, tag = 'input window, operand 0, single buffered']
    #allocation4 [shape = 's32[1]{0}', space=sflag, size = 0x4, scoped, tag = 'scoped memory for updn_forward.7']
    #allocation5 [shape = 's32[1]{0}', space=sflag, size = 0x4, scoped, tag = 'scoped memory for updn_forward.7']
    #allocation6 [shape = 'u8[8192]{0}', space=vmem, size = 0x2000, scoped, tag = 'input window, operand 1, single buffered']
    #allocation7 [shape = 's32[1]{0}', space=sflag, size = 0x4, scoped, tag = 'scoped memory for updn_forward.7']
    #allocation8 [shape = 'u8[6144]{0}', space=vmem, size = 0x1800, scoped, tag = 'input window, operand 2, single buffered']
    #allocation9 [shape = 'u8[512]{0}', space=vmem, size = 0x400, scoped, tag = 'input window, operand 3, single buffered']
    #allocation10 [shape = 's32[1]{0}', space=sflag, size = 0x4, scoped, tag = 'scoped memory for updn_forward.7']
    #allocation11 [shape = 'u8[8192]{0}', space=vmem, size = 0x2000, scoped, tag = 'input window, operand 4, single buffered']
    #allocation12 [shape = 'u8[512]{0}', space=vmem, size = 0x400, scoped, tag = 'input window, operand 5, single buffered']
    #allocation13 [shape = 's32[1]{0}', space=sflag, size = 0x4, scoped, tag = 'scoped memory for updn_forward.7']
    #allocation14 [shape = 'u8[8192]{0}', space=vmem, size = 0x2000, scoped, tag = 'input window, operand 6, single buffered']
    #allocation15 [shape = 'u8[512]{0}', space=vmem, size = 0x400, scoped, tag = 'input window, operand 7, single buffered']
    #allocation16 [shape = 's32[1]{0}', space=sflag, size = 0x4, scoped, tag = 'scoped memory for updn_forward.7']
    #allocation17 [shape = 'u8[8192]{0}', space=vmem, size = 0x2000, scoped, tag = 'input window, operand 8, single buffered']
    #allocation18 [shape = 'u8[8192]{0}', space=vmem, size = 0x2000, scoped, tag = 'input window, operand 9, single buffered']
    #allocation19 [shape = 's32[1]{0}', space=sflag, size = 0x4, scoped, tag = 'scoped memory for updn_forward.7']
    #allocation20 [shape = 'u8[512]{0}', space=vmem, size = 0x400, scoped, tag = 'input window, operand 10, single buffered']
    #allocation21 [shape = 'u8[512]{0}', space=vmem, size = 0x400, scoped, tag = 'input window, operand 11, single buffered']
    #allocation22 [shape = 's32[1]{0}', space=sflag, size = 0x4, scoped, tag = 'scoped memory for updn_forward.7']
    #allocation23 [shape = 'u8[8192]{0}', space=vmem, size = 0x2000, scoped, tag = 'input window, operand 13, single buffered']
    #allocation24 [shape = 'u8[512]{0}', space=vmem, size = 0x400, scoped, tag = 'input window, operand 14, single buffered']
    #allocation25 [shape = 's32[1]{0}', space=sflag, size = 0x4, scoped, tag = 'scoped memory for updn_forward.7']
    #allocation26 [shape = 'u8[8192]{0}', space=vmem, size = 0x2000, scoped, tag = 'input window, operand 15, single buffered']
    #allocation27 [shape = 'u8[512]{0}', space=vmem, size = 0x400, scoped, tag = 'input window, operand 16, single buffered']
    #allocation28 [shape = 's32[1]{0}', space=sflag, size = 0x4, scoped, tag = 'scoped memory for updn_forward.7']
    #allocation29 [shape = 'u8[8192]{0}', space=vmem, size = 0x2000, scoped, tag = 'output window, operand 0, single buffered']
    #allocation30 [shape = 'u8[1024]{0}', space=vmem, size = 0x400, scoped, tag = 'output window, operand 1, single buffered']
    #allocation31 [shape = 's32[1]{0}', space=sflag, size = 0x4, scoped, tag = 'scoped memory for updn_forward.7']
    %25 = vsyncpa [#allocation4], 0
    %26 = vsyncpa [#allocation7], 0
    %27 = vsyncpa [#allocation10], 0
    %28 = vsyncpa [#allocation13], 0
    %29 = vsyncpa [#allocation16], 0
    %30 = vsyncpa [#allocation19], 0
    %31 = vsyncpa [#allocation22], 0
    %32 = vsyncpa [#allocation25], 0
    %33 = vsyncpa [#allocation28], 0
    %34 = vsyncpa [#allocation5], 0
    %35 = vsyncpa [#allocation31], 0
    // Predicated region
    $region2: #{updn_forward.7} parent=1 // pred_check
      _
    $region3: #{updn_forward.7} parent=1 // pred_check_branch
      %37 = sbr.rel (0) target = $region5
    $region4: #{updn_forward.7} parent=1 // pred_region
      %s39 = ssub.s32 32, 32
      %40 = vsyncadd [#allocation4], %s39
      %s42 = sshll.u32 [#allocation3], 4
      %s43 = int_to_ptr.vmem [resolvable:$true] %s42
      %45 = dma.hbm_to_vmem [thread:$0]  %s0, 32, %s43, [#allocation4]
    $region5: #{updn_forward.7} parent=1 // pred_fallthru
      _
    // Predicated region
    $region6: #{updn_forward.7} parent=1 // pred_check
      _
    $region7: #{updn_forward.7} parent=1 // pred_check_branch
      %47 = sbr.rel (0) target = $region9
    $region8: #{updn_forward.7} parent=1 // pred_region
      %s49 = ssub.s32 256, 256
      %50 = vsyncadd [#allocation7], %s49
      %s51 = sshll.u32 [#allocation6], 4
      %s52 = int_to_ptr.vmem [resolvable:$true] %s51
      %57 = dma.hbm_to_vmem [thread:$0]  %s1, 256, %s52, [#allocation7], 128, 128, 8
    $region9: #{updn_forward.7} parent=1 // pred_fallthru
      _
    // Predicated region
    $region10: #{updn_forward.7} parent=1 // pred_check
      _
    $region11: #{updn_forward.7} parent=1 // pred_check_branch
      %59 = sbr.rel (0) target = $region13
    $region12: #{updn_forward.7} parent=1 // pred_region
      %s61 = ssub.s32 192, 192
      %62 = vsyncadd [#allocation7], %s61
      %s63 = sshll.u32 [#allocation8], 4
      %s64 = int_to_ptr.vmem [resolvable:$true] %s63
      %69 = dma.hbm_to_vmem [thread:$0]  %s2, 192, %s64, [#allocation7], 64, 64, 4
    $region13: #{updn_forward.7} parent=1 // pred_fallthru
      _
    // Predicated region
    $region14: #{updn_forward.7} parent=1 // pred_check
      _
    $region15: #{updn_forward.7} parent=1 // pred_check_branch
      %71 = sbr.rel (0) target = $region17
    $region16: #{updn_forward.7} parent=1 // pred_region
      %s73 = ssub.s32 16, 16
      %74 = vsyncadd [#allocation10], %s73
      %s76 = sshll.u32 [#allocation9], 4
      %s77 = int_to_ptr.vmem [resolvable:$true] %s76
      %79 = dma.hbm_to_vmem [thread:$0]  %s3, 16, %s77, [#allocation10]
    $region17: #{updn_forward.7} parent=1 // pred_fallthru
      _
    // Predicated region
    $region18: #{updn_forward.7} parent=1 // pred_check
      _
    $region19: #{updn_forward.7} parent=1 // pred_check_branch
      %81 = sbr.rel (0) target = $region21
    $region20: #{updn_forward.7} parent=1 // pred_region
      %s83 = ssub.s32 256, 256
      %84 = vsyncadd [#allocation10], %s83
      %s85 = sshll.u32 [#allocation11], 4
      %s86 = int_to_ptr.vmem [resolvable:$true] %s85
      %91 = dma.hbm_to_vmem [thread:$0]  %s4, 256, %s86, [#allocation10], 64, 64, 4
    $region21: #{updn_forward.7} parent=1 // pred_fallthru
      _
    // Predicated region
    $region22: #{updn_forward.7} parent=1 // pred_check
      _
    $region23: #{updn_forward.7} parent=1 // pred_check_branch
      %93 = sbr.rel (0) target = $region25
    $region24: #{updn_forward.7} parent=1 // pred_region
      %s95 = ssub.s32 16, 16
      %96 = vsyncadd [#allocation13], %s95
      %s98 = sshll.u32 [#allocation12], 4
      %s99 = int_to_ptr.vmem [resolvable:$true] %s98
      %101 = dma.hbm_to_vmem [thread:$0]  %s5, 16, %s99, [#allocation13]
    $region25: #{updn_forward.7} parent=1 // pred_fallthru
      _
    // Predicated region
    $region26: #{updn_forward.7} parent=1 // pred_check
      _
    $region27: #{updn_forward.7} parent=1 // pred_check_branch
      %103 = sbr.rel (0) target = $region29
    $region28: #{updn_forward.7} parent=1 // pred_region
      %s105 = ssub.s32 256, 256
      %106 = vsyncadd [#allocation13], %s105
      %s107 = sshll.u32 [#allocation14], 4
      %s108 = int_to_ptr.vmem [resolvable:$true] %s107
      %113 = dma.hbm_to_vmem [thread:$0]  %s6, 256, %s108, [#allocation13], 64, 64, 4
    $region29: #{updn_forward.7} parent=1 // pred_fallthru
      _
    // Predicated region
    $region30: #{updn_forward.7} parent=1 // pred_check
      _
    $region31: #{updn_forward.7} parent=1 // pred_check_branch
      %115 = sbr.rel (0) target = $region33
    $region32: #{updn_forward.7} parent=1 // pred_region
      %s117 = ssub.s32 16, 16
      %118 = vsyncadd [#allocation16], %s117
      %s120 = sshll.u32 [#allocation15], 4
      %s121 = int_to_ptr.vmem [resolvable:$true] %s120
      %123 = dma.hbm_to_vmem [thread:$0]  %s7, 16, %s121, [#allocation16]
    $region33: #{updn_forward.7} parent=1 // pred_fallthru
      _
    // Predicated region
    $region34: #{updn_forward.7} parent=1 // pred_check
      _
    $region35: #{updn_forward.7} parent=1 // pred_check_branch
      %125 = sbr.rel (0) target = $region37
    $region36: #{updn_forward.7} parent=1 // pred_region
      %s127 = ssub.s32 256, 256
      %128 = vsyncadd [#allocation16], %s127
      %s129 = sshll.u32 [#allocation17], 4
      %s130 = int_to_ptr.vmem [resolvable:$true] %s129
      %135 = dma.hbm_to_vmem [thread:$0]  %s8, 256, %s130, [#allocation16], 64, 64, 4
    $region37: #{updn_forward.7} parent=1 // pred_fallthru
      _
    // Predicated region
    $region38: #{updn_forward.7} parent=1 // pred_check
      _
    $region39: #{updn_forward.7} parent=1 // pred_check_branch
      %137 = sbr.rel (0) target = $region41
    $region40: #{updn_forward.7} parent=1 // pred_region
      %s139 = ssub.s32 256, 256
      %140 = vsyncadd [#allocation19], %s139
      %s141 = sshll.u32 [#allocation18], 4
      %s142 = int_to_ptr.vmem [resolvable:$true] %s141
      %147 = dma.hbm_to_vmem [thread:$0]  %s9, 256, %s142, [#allocation19], 64, 64, 4
    $region41: #{updn_forward.7} parent=1 // pred_fallthru
      _
    // Predicated region
    $region42: #{updn_forward.7} parent=1 // pred_check
      _
    $region43: #{updn_forward.7} parent=1 // pred_check_branch
      %149 = sbr.rel (0) target = $region45
    $region44: #{updn_forward.7} parent=1 // pred_region
      %s151 = ssub.s32 16, 16
      %152 = vsyncadd [#allocation19], %s151
      %s154 = sshll.u32 [#allocation20], 4
      %s155 = int_to_ptr.vmem [resolvable:$true] %s154
      %157 = dma.hbm_to_vmem [thread:$0]  %s10, 16, %s155, [#allocation19]
    $region45: #{updn_forward.7} parent=1 // pred_fallthru
      _
    // Predicated region
    $region46: #{updn_forward.7} parent=1 // pred_check
      _
    $region47: #{updn_forward.7} parent=1 // pred_check_branch
      %159 = sbr.rel (0) target = $region49
    $region48: #{updn_forward.7} parent=1 // pred_region
      %s161 = ssub.s32 16, 16
      %162 = vsyncadd [#allocation22], %s161
      %s164 = sshll.u32 [#allocation21], 4
      %s165 = int_to_ptr.vmem [resolvable:$true] %s164
      %167 = dma.hbm_to_vmem [thread:$0]  %s11, 16, %s165, [#allocation22]
    $region49: #{updn_forward.7} parent=1 // pred_fallthru
      _
    // Predicated region
    $region50: #{updn_forward.7} parent=1 // pred_check
      _
    $region51: #{updn_forward.7} parent=1 // pred_check_branch
      %169 = sbr.rel (0) target = $region53
    $region52: #{updn_forward.7} parent=1 // pred_region
      _
    $region53: #{updn_forward.7} parent=1 // pred_fallthru
      _
    // Predicated region
    $region54: #{updn_forward.7} parent=1 // pred_check
      _
    $region55: #{updn_forward.7} parent=1 // pred_check_branch
      %171 = sbr.rel (0) target = $region57
    $region56: #{updn_forward.7} parent=1 // pred_region
      %s173 = ssub.s32 256, 256
      %174 = vsyncadd [#allocation22], %s173
      %s175 = sshll.u32 [#allocation23], 4
      %s176 = int_to_ptr.vmem [resolvable:$true] %s175
      %181 = dma.hbm_to_vmem [thread:$0]  %s13, 256, %s176, [#allocation22], 64, 64, 4
    $region57: #{updn_forward.7} parent=1 // pred_fallthru
      _
    // Predicated region
    $region58: #{updn_forward.7} parent=1 // pred_check
      _
    $region59: #{updn_forward.7} parent=1 // pred_check_branch
      %183 = sbr.rel (0) target = $region61
    $region60: #{updn_forward.7} parent=1 // pred_region
      %s185 = ssub.s32 16, 16
      %186 = vsyncadd [#allocation25], %s185
      %s188 = sshll.u32 [#allocation24], 4
      %s189 = int_to_ptr.vmem [resolvable:$true] %s188
      %191 = dma.hbm_to_vmem [thread:$0]  %s14, 16, %s189, [#allocation25]
    $region61: #{updn_forward.7} parent=1 // pred_fallthru
      _
    // Predicated region
    $region62: #{updn_forward.7} parent=1 // pred_check
      _
    $region63: #{updn_forward.7} parent=1 // pred_check_branch
      %193 = sbr.rel (0) target = $region65
    $region64: #{updn_forward.7} parent=1 // pred_region
      %s195 = ssub.s32 256, 256
      %196 = vsyncadd [#allocation25], %s195
      %s197 = sshll.u32 [#allocation26], 4
      %s198 = int_to_ptr.vmem [resolvable:$true] %s197
      %203 = dma.hbm_to_vmem [thread:$0]  %s15, 256, %s198, [#allocation25], 64, 64, 4
    $region65: #{updn_forward.7} parent=1 // pred_fallthru
      _
    // Predicated region
    $region66: #{updn_forward.7} parent=1 // pred_check
      _
    $region67: #{updn_forward.7} parent=1 // pred_check_branch
      %205 = sbr.rel (0) target = $region69
    $region68: #{updn_forward.7} parent=1 // pred_region
      %s207 = ssub.s32 16, 16
      %208 = vsyncadd [#allocation28], %s207
      %s210 = sshll.u32 [#allocation27], 4
      %s211 = int_to_ptr.vmem [resolvable:$true] %s210
      %213 = dma.hbm_to_vmem [thread:$0]  %s16, 16, %s211, [#allocation28]
    $region69: #{updn_forward.7} parent=1 // pred_fallthru
      _
    // Predicated region
    $region70: #{updn_forward.7} parent=1 // pred_check
      _
    $region71: #{updn_forward.7} parent=1 // pred_check_branch
      %215 = sbr.rel (0) target = $region73
    $region72: #{updn_forward.7} parent=1 // pred_region
      %216 = dma.done [#allocation4], 32
    $region73: #{updn_forward.7} parent=1 // pred_fallthru
      _
    // Predicated region
    $region74: #{updn_forward.7} parent=1 // pred_check
      _
    $region75: #{updn_forward.7} parent=1 // pred_check_branch
      %218 = sbr.rel (0) target = $region77
    $region76: #{updn_forward.7} parent=1 // pred_region
      %219 = dma.done [#allocation7], 256
    $region77: #{updn_forward.7} parent=1 // pred_fallthru
      _
    // Predicated region
    $region78: #{updn_forward.7} parent=1 // pred_check
      _
    $region79: #{updn_forward.7} parent=1 // pred_check_branch
      %221 = sbr.rel (0) target = $region81
    $region80: #{updn_forward.7} parent=1 // pred_region
      %222 = dma.done [#allocation7], 192
    $region81: #{updn_forward.7} parent=1 // pred_fallthru
      _
    // Predicated region
    $region82: #{updn_forward.7} parent=1 // pred_check
      _
    $region83: #{updn_forward.7} parent=1 // pred_check_branch
      %224 = sbr.rel (0) target = $region85
    $region84: #{updn_forward.7} parent=1 // pred_region
      %225 = dma.done [#allocation10], 16
    $region85: #{updn_forward.7} parent=1 // pred_fallthru
      _
    // Predicated region
    $region86: #{updn_forward.7} parent=1 // pred_check
      _
    $region87: #{updn_forward.7} parent=1 // pred_check_branch
      %227 = sbr.rel (0) target = $region89
    $region88: #{updn_forward.7} parent=1 // pred_region
      %228 = dma.done [#allocation10], 256
    $region89: #{updn_forward.7} parent=1 // pred_fallthru
      _
    // Predicated region
    $region90: #{updn_forward.7} parent=1 // pred_check
      _
    $region91: #{updn_forward.7} parent=1 // pred_check_branch
      %230 = sbr.rel (0) target = $region93
    $region92: #{updn_forward.7} parent=1 // pred_region
      %231 = dma.done [#allocation13], 16
    $region93: #{updn_forward.7} parent=1 // pred_fallthru
      _
    // Predicated region
    $region94: #{updn_forward.7} parent=1 // pred_check
      _
    $region95: #{updn_forward.7} parent=1 // pred_check_branch
      %233 = sbr.rel (0) target = $region97
    $region96: #{updn_forward.7} parent=1 // pred_region
      %234 = dma.done [#allocation13], 256
    $region97: #{updn_forward.7} parent=1 // pred_fallthru
      _
    // Predicated region
    $region98: #{updn_forward.7} parent=1 // pred_check
      _
    $region99: #{updn_forward.7} parent=1 // pred_check_branch
      %236 = sbr.rel (0) target = $region101
    $region100: #{updn_forward.7} parent=1 // pred_region
      %237 = dma.done [#allocation16], 16
    $region101: #{updn_forward.7} parent=1 // pred_fallthru
      _
    // Predicated region
    $region102: #{updn_forward.7} parent=1 // pred_check
      _
    $region103: #{updn_forward.7} parent=1 // pred_check_branch
      %239 = sbr.rel (0) target = $region105
    $region104: #{updn_forward.7} parent=1 // pred_region
      %240 = dma.done [#allocation16], 256
    $region105: #{updn_forward.7} parent=1 // pred_fallthru
      _
    // Predicated region
    $region106: #{updn_forward.7} parent=1 // pred_check
      _
    $region107: #{updn_forward.7} parent=1 // pred_check_branch
      %242 = sbr.rel (0) target = $region109
    $region108: #{updn_forward.7} parent=1 // pred_region
      %243 = dma.done [#allocation19], 256
    $region109: #{updn_forward.7} parent=1 // pred_fallthru
      _
    // Predicated region
    $region110: #{updn_forward.7} parent=1 // pred_check
      _
    $region111: #{updn_forward.7} parent=1 // pred_check_branch
      %245 = sbr.rel (0) target = $region113
    $region112: #{updn_forward.7} parent=1 // pred_region
      %246 = dma.done [#allocation19], 16
    $region113: #{updn_forward.7} parent=1 // pred_fallthru
      _
    // Predicated region
    $region114: #{updn_forward.7} parent=1 // pred_check
      _
    $region115: #{updn_forward.7} parent=1 // pred_check_branch
      %248 = sbr.rel (0) target = $region117
    $region116: #{updn_forward.7} parent=1 // pred_region
      %249 = dma.done [#allocation22], 16
    $region117: #{updn_forward.7} parent=1 // pred_fallthru
      _
    // Predicated region
    $region118: #{updn_forward.7} parent=1 // pred_check
      _
    $region119: #{updn_forward.7} parent=1 // pred_check_branch
      %251 = sbr.rel (0) target = $region121
    $region120: #{updn_forward.7} parent=1 // pred_region
      %252 = dma.done [#allocation22], 256
    $region121: #{updn_forward.7} parent=1 // pred_fallthru
      _
    // Predicated region
    $region122: #{updn_forward.7} parent=1 // pred_check
      _
    $region123: #{updn_forward.7} parent=1 // pred_check_branch
      %254 = sbr.rel (0) target = $region125
    $region124: #{updn_forward.7} parent=1 // pred_region
      %255 = dma.done [#allocation25], 16
    $region125: #{updn_forward.7} parent=1 // pred_fallthru
      _
    // Predicated region
    $region126: #{updn_forward.7} parent=1 // pred_check
      _
    $region127: #{updn_forward.7} parent=1 // pred_check_branch
      %257 = sbr.rel (0) target = $region129
    $region128: #{updn_forward.7} parent=1 // pred_region
      %258 = dma.done [#allocation25], 256
    $region129: #{updn_forward.7} parent=1 // pred_fallthru
      _
    // Predicated region
    $region130: #{updn_forward.7} parent=1 // pred_check
      _
    $region131: #{updn_forward.7} parent=1 // pred_check_branch
      %260 = sbr.rel (0) target = $region133
    $region132: #{updn_forward.7} parent=1 // pred_region
      %261 = dma.done [#allocation28], 16
    $region133: #{updn_forward.7} parent=1 // pred_fallthru
      _
    %v263 = vld [vmem:[#allocation3] sm:$0x3]
    %v264 = vpack.c.bf16 %v263, %v263
    %v265 = vld [vmem:[#allocation6] sm:$0xff]
    %v266 = vld [vmem:[#allocation6 + $0x8] sm:$0xff]
    %v267 = vpack.c.bf16 %v266, %v265
    %v268 = vld [vmem:[#allocation8] sm:$0xf]
    %v269 = vld [vmem:[#allocation8 + $0x4] sm:$0xf]
    %v270 = vld [vmem:[#allocation8 + $0x8] sm:$0xf]
    %v271 = vld [vmem:[#allocation9] sm:$0x1]
    %v273 = vlaneseq
    %v274 = vshrl.u32 %v273, 7
    %v275 = vsub.s32 0, %v274
    %v276 = vrot.slane %v271, %v275
    %v281 = vunpack.c.l.b16 %v268
    %v282 = vunpack.c.l.b16 %v269
    %v283 = vunpack.c.l.b16 %v270
    %v284 = vpack.c.b16 %v282, %v281
    %v285 = vpack.c.b16 %v283, %v283
    %vm287 = vcmask 195584
    %v289 = vsel %vm287, %v267, 0
    %vm291 = vcmask 1043456
    %v293 = vsel %vm291, %v285, 0
    %295 = vmatprep.subr.bf16.mxu0 0
    %296 = vmatpush1.bf16.msra.mxu0 %v284
    %297 = vmatprep.subr.bf16.mxu0 0
    %298 = vmatpush1.bf16.msra.mxu0 %v293
    %299 = vmatprep.subr.bf16.mxu0 0
    %300 = vmatpush1.bf16.msra.mxu0 0
    %301 = vmatprep.subr.bf16.mxu0 0
    %302 = vmatpush1.bf16.msra.mxu0 0
    %303 = vmatprep.subr.bf16.mxu0 0
    %304 = vmatpush1.bf16.msra.mxu0 0
    %305 = vmatprep.subr.bf16.mxu0 0
    %306 = vmatpush1.bf16.msra.mxu0 0
    %307 = vmatprep.subr.bf16.mxu0 0
    %308 = vmatpush1.bf16.msra.mxu0 0
    %309 = vmatprep.subr.bf16.mxu0 0
    %310 = vmatpush1.bf16.msra.mxu0 0
    %311 = vmatprep.subr.bf16.mxu0 0
    %312 = vmatpush1.bf16.msra.mxu0 0
    %313 = vmatprep.subr.bf16.mxu0 0
    %314 = vmatpush1.bf16.msra.mxu0 0
    %315 = vmatprep.subr.bf16.mxu0 0
    %316 = vmatpush1.bf16.msra.mxu0 0
    %317 = vmatprep.subr.bf16.mxu0 0
    %318 = vmatpush1.bf16.msra.mxu0 0
    %319 = vmatprep.subr.bf16.mxu0 0
    %320 = vmatpush1.bf16.msra.mxu0 0
    %321 = vmatprep.subr.bf16.mxu0 0
    %322 = vmatpush1.bf16.msra.mxu0 0
    %323 = vmatprep.subr.bf16.mxu0 0
    %324 = vmatpush1.bf16.msra.mxu0 0
    %325 = vmatprep.subr.bf16.mxu0 0
    %326 = vmatpush1.bf16.msra.mxu0 0
    %327 = vmatprep.mubr.bf16.mxu0 0
    %328 = vmatmul.mubr.bf16.gmra.mrb[0].mxu0 %v289
    %v329 = vpop.f32.mrb[0].mxu0
    %v330 = vadd.f32 %v276, %v329
    %v331 = vpop.f32.mrb[0].mxu0
    %v332 = vpop.f32.mrb[0].mxu0
    %v333 = vadd.f32 %v276, %v332
    %v334 = vpop.f32.mrb[0].mxu0
    %335 = vdwg.mxu0
    %vm336 = vcmask 261120
    %337 = vst.msk [vmem:[#allocation29] sm:$0xff] %vm336, %v330
    %338 = vst.msk [vmem:[#allocation29 + $0x8] sm:$0xff] %vm336, %v333
    %v339 = vpack.c.bf16 %v333, %v330
    %v340 = vld [vmem:[#allocation11] sm:$0xf]
    %v341 = vld [vmem:[#allocation11 + $0x4] sm:$0xf]
    %v342 = vld [vmem:[#allocation11 + $0x8] sm:$0xf]
    %v343 = vld [vmem:[#allocation11 + $0xc] sm:$0xf]
    %v344 = vld [vmem:[#allocation12] sm:$0x1]
    %v346 = vlaneseq
    %v347 = vshrl.u32 %v346, 7
    %v348 = vsub.s32 0, %v347
    %v349 = vrot.slane %v344, %v348
    %v355 = vunpack.c.l.b16 %v340
    %v356 = vunpack.c.l.b16 %v341
    %v357 = vunpack.c.l.b16 %v342
    %v358 = vunpack.c.l.b16 %v343
    %v359 = vpack.c.b16 %v356, %v355
    %v360 = vpack.c.b16 %v358, %v357
    %v364 = vsel %vm336, %v264, 0
    %366 = vmatprep.subr.bf16.mxu0 0
    %367 = vmatpush1.bf16.msra.mxu0 %v359
    %368 = vmatprep.subr.bf16.mxu0 0
    %369 = vmatpush1.bf16.msra.mxu0 %v360
    %370 = vmatprep.subr.bf16.mxu0 0
    %371 = vmatpush1.bf16.msra.mxu0 0
    %372 = vmatprep.subr.bf16.mxu0 0
    %373 = vmatpush1.bf16.msra.mxu0 0
    %374 = vmatprep.subr.bf16.mxu0 0
    %375 = vmatpush1.bf16.msra.mxu0 0
    %376 = vmatprep.subr.bf16.mxu0 0
    %377 = vmatpush1.bf16.msra.mxu0 0
    %378 = vmatprep.subr.bf16.mxu0 0
    %379 = vmatpush1.bf16.msra.mxu0 0
    %380 = vmatprep.subr.bf16.mxu0 0
    %381 = vmatpush1.bf16.msra.mxu0 0
    %382 = vmatprep.subr.bf16.mxu0 0
    %383 = vmatpush1.bf16.msra.mxu0 0
    %384 = vmatprep.subr.bf16.mxu0 0
    %385 = vmatpush1.bf16.msra.mxu0 0
    %386 = vmatprep.subr.bf16.mxu0 0
    %387 = vmatpush1.bf16.msra.mxu0 0
    %388 = vmatprep.subr.bf16.mxu0 0
    %389 = vmatpush1.bf16.msra.mxu0 0
    %390 = vmatprep.subr.bf16.mxu0 0
    %391 = vmatpush1.bf16.msra.mxu0 0
    %392 = vmatprep.subr.bf16.mxu0 0
    %393 = vmatpush1.bf16.msra.mxu0 0
    %394 = vmatprep.subr.bf16.mxu0 0
    %395 = vmatpush1.bf16.msra.mxu0 0
    %396 = vmatprep.subr.bf16.mxu0 0
    %397 = vmatpush1.bf16.msra.mxu0 0
    %398 = vmatprep.mubr.bf16.mxu0 0
    %399 = vmatmul.mubr.bf16.gmra.mrb[0].mxu0 %v364
    %v400 = vpop.f32.mrb[0].mxu0
    %v401 = vadd.f32 %v349, %v400
    %v402 = vpop.f32.mrb[0].mxu0
    %v403 = vpop.f32.mrb[0].mxu0
    %v404 = vpop.f32.mrb[0].mxu0
    %405 = vdwg.mxu0
    %v406 = vld [vmem:[#allocation14] sm:$0xf]
    %v407 = vld [vmem:[#allocation14 + $0x4] sm:$0xf]
    %v408 = vld [vmem:[#allocation14 + $0x8] sm:$0xf]
    %v409 = vld [vmem:[#allocation14 + $0xc] sm:$0xf]
    %v410 = vld [vmem:[#allocation15] sm:$0x1]
    %v412 = vlaneseq
    %v413 = vshrl.u32 %v412, 7
    %v414 = vsub.s32 0, %v413
    %v415 = vrot.slane %v410, %v414
    %v421 = vunpack.c.l.b16 %v406
    %v422 = vunpack.c.l.b16 %v407
    %v423 = vunpack.c.l.b16 %v408
    %v424 = vunpack.c.l.b16 %v409
    %v425 = vpack.c.b16 %v422, %v421
    %v426 = vpack.c.b16 %v424, %v423
    %v430 = vsel %vm336, %v339, 0
    %432 = vmatprep.subr.bf16.mxu0 0
    %433 = vmatpush1.bf16.msra.mxu0 %v425
    %434 = vmatprep.subr.bf16.mxu0 0
    %435 = vmatpush1.bf16.msra.mxu0 %v426
    %436 = vmatprep.subr.bf16.mxu0 0
    %437 = vmatpush1.bf16.msra.mxu0 0
    %438 = vmatprep.subr.bf16.mxu0 0
    %439 = vmatpush1.bf16.msra.mxu0 0
    %440 = vmatprep.subr.bf16.mxu0 0
    %441 = vmatpush1.bf16.msra.mxu0 0
    %442 = vmatprep.subr.bf16.mxu0 0
    %443 = vmatpush1.bf16.msra.mxu0 0
    %444 = vmatprep.subr.bf16.mxu0 0
    %445 = vmatpush1.bf16.msra.mxu0 0
    %446 = vmatprep.subr.bf16.mxu0 0
    %447 = vmatpush1.bf16.msra.mxu0 0
    %448 = vmatprep.subr.bf16.mxu0 0
    %449 = vmatpush1.bf16.msra.mxu0 0
    %450 = vmatprep.subr.bf16.mxu0 0
    %451 = vmatpush1.bf16.msra.mxu0 0
    %452 = vmatprep.subr.bf16.mxu0 0
    %453 = vmatpush1.bf16.msra.mxu0 0
    %454 = vmatprep.subr.bf16.mxu0 0
    %455 = vmatpush1.bf16.msra.mxu0 0
    %456 = vmatprep.subr.bf16.mxu0 0
    %457 = vmatpush1.bf16.msra.mxu0 0
    %458 = vmatprep.subr.bf16.mxu0 0
    %459 = vmatpush1.bf16.msra.mxu0 0
    %460 = vmatprep.subr.bf16.mxu0 0
    %461 = vmatpush1.bf16.msra.mxu0 0
    %462 = vmatprep.subr.bf16.mxu0 0
    %463 = vmatpush1.bf16.msra.mxu0 0
    %464 = vmatprep.mubr.bf16.mxu0 0
    %465 = vmatmul.mubr.bf16.gmra.mrb[0].mxu0 %v430
    %v466 = vpop.f32.mrb[0].mxu0
    %v467 = vadd.f32 %v415, %v466
    %v468 = vpop.f32.mrb[0].mxu0
    %v469 = vpop.f32.mrb[0].mxu0
    %v470 = vadd.f32 %v415, %v469
    %v471 = vpop.f32.mrb[0].mxu0
    %472 = vdwg.mxu0
    %v473 = vpack.c.bf16 %v470, %v467
    %v474 = vld [vmem:[#allocation17] sm:$0xf]
    %v475 = vld [vmem:[#allocation17 + $0x4] sm:$0xf]
    %v476 = vld [vmem:[#allocation17 + $0x8] sm:$0xf]
    %v477 = vld [vmem:[#allocation17 + $0xc] sm:$0xf]
    %v482 = vunpack.c.l.b16 %v474
    %v483 = vunpack.c.l.b16 %v475
    %v484 = vunpack.c.l.b16 %v476
    %v485 = vunpack.c.l.b16 %v477
    %v486 = vpack.c.b16 %v483, %v482
    %v487 = vpack.c.b16 %v485, %v484
    %v491 = vsel %vm336, %v473, 0
    %493 = vmatprep.subr.bf16.mxu0 0
    %494 = vmatpush1.bf16.msra.mxu0 %v486
    %495 = vmatprep.subr.bf16.mxu0 0
    %496 = vmatpush1.bf16.msra.mxu0 %v487
    %497 = vmatprep.subr.bf16.mxu0 0
    %498 = vmatpush1.bf16.msra.mxu0 0
    %499 = vmatprep.subr.bf16.mxu0 0
    %500 = vmatpush1.bf16.msra.mxu0 0
    %501 = vmatprep.subr.bf16.mxu0 0
    %502 = vmatpush1.bf16.msra.mxu0 0
    %503 = vmatprep.subr.bf16.mxu0 0
    %504 = vmatpush1.bf16.msra.mxu0 0
    %505 = vmatprep.subr.bf16.mxu0 0
    %506 = vmatpush1.bf16.msra.mxu0 0
    %507 = vmatprep.subr.bf16.mxu0 0
    %508 = vmatpush1.bf16.msra.mxu0 0
    %509 = vmatprep.subr.bf16.mxu0 0
    %510 = vmatpush1.bf16.msra.mxu0 0
    %511 = vmatprep.subr.bf16.mxu0 0
    %512 = vmatpush1.bf16.msra.mxu0 0
    %513 = vmatprep.subr.bf16.mxu0 0
    %514 = vmatpush1.bf16.msra.mxu0 0
    %515 = vmatprep.subr.bf16.mxu0 0
    %516 = vmatpush1.bf16.msra.mxu0 0
    %517 = vmatprep.subr.bf16.mxu0 0
    %518 = vmatpush1.bf16.msra.mxu0 0
    %519 = vmatprep.subr.bf16.mxu0 0
    %520 = vmatpush1.bf16.msra.mxu0 0
    %521 = vmatprep.subr.bf16.mxu0 0
    %522 = vmatpush1.bf16.msra.mxu0 0
    %523 = vmatprep.subr.bf16.mxu0 0
    %524 = vmatpush1.bf16.msra.mxu0 0
    %525 = vmatprep.mubr.bf16.mxu0 0
    %526 = vmatmul.mubr.bf16.gmra.mrb[0].mxu0 %v491
    %v527 = vpop.f32.mrb[0].mxu0
    %v528 = vadd.f32 0.0, %v527
    %v529 = vpop.f32.mrb[0].mxu0
    %v530 = vpop.f32.mrb[0].mxu0
    %v531 = vadd.f32 0.0, %v530
    %v532 = vpop.f32.mrb[0].mxu0
    %533 = vdwg.mxu0
    %v534 = vpack.c.bf16 %v401, %v401
    %v535 = vld [vmem:[#allocation18] sm:$0xf]
    %v536 = vld [vmem:[#allocation18 + $0x4] sm:$0xf]
    %v537 = vld [vmem:[#allocation18 + $0x8] sm:$0xf]
    %v538 = vld [vmem:[#allocation18 + $0xc] sm:$0xf]
    %v543 = vunpack.c.l.b16 %v535
    %v544 = vunpack.c.l.b16 %v536
    %v545 = vunpack.c.l.b16 %v537
    %v546 = vunpack.c.l.b16 %v538
    %v547 = vpack.c.b16 %v544, %v543
    %v548 = vpack.c.b16 %v546, %v545
    %v552 = vsel %vm336, %v534, 0
    %554 = vmatprep.subr.bf16.mxu0 0
    %555 = vmatpush1.bf16.msra.mxu0 %v547
    %556 = vmatprep.subr.bf16.mxu0 0
    %557 = vmatpush1.bf16.msra.mxu0 %v548
    %558 = vmatprep.subr.bf16.mxu0 0
    %559 = vmatpush1.bf16.msra.mxu0 0
    %560 = vmatprep.subr.bf16.mxu0 0
    %561 = vmatpush1.bf16.msra.mxu0 0
    %562 = vmatprep.subr.bf16.mxu0 0
    %563 = vmatpush1.bf16.msra.mxu0 0
    %564 = vmatprep.subr.bf16.mxu0 0
    %565 = vmatpush1.bf16.msra.mxu0 0
    %566 = vmatprep.subr.bf16.mxu0 0
    %567 = vmatpush1.bf16.msra.mxu0 0
    %568 = vmatprep.subr.bf16.mxu0 0
    %569 = vmatpush1.bf16.msra.mxu0 0
    %570 = vmatprep.subr.bf16.mxu0 0
    %571 = vmatpush1.bf16.msra.mxu0 0
    %572 = vmatprep.subr.bf16.mxu0 0
    %573 = vmatpush1.bf16.msra.mxu0 0
    %574 = vmatprep.subr.bf16.mxu0 0
    %575 = vmatpush1.bf16.msra.mxu0 0
    %576 = vmatprep.subr.bf16.mxu0 0
    %577 = vmatpush1.bf16.msra.mxu0 0
    %578 = vmatprep.subr.bf16.mxu0 0
    %579 = vmatpush1.bf16.msra.mxu0 0
    %580 = vmatprep.subr.bf16.mxu0 0
    %581 = vmatpush1.bf16.msra.mxu0 0
    %582 = vmatprep.subr.bf16.mxu0 0
    %583 = vmatpush1.bf16.msra.mxu0 0
    %584 = vmatprep.subr.bf16.mxu0 0
    %585 = vmatpush1.bf16.msra.mxu0 0
    %586 = vmatprep.mubr.bf16.mxu0 0
    %587 = vmatmul.mubr.bf16.gmra.mrb[0].mxu0 %v552
    %v588 = vpop.f32.mrb[0].mxu0
    %v589 = vadd.f32 0.0, %v588
    %v590 = vpop.f32.mrb[0].mxu0
    %v591 = vpop.f32.mrb[0].mxu0
    %v592 = vpop.f32.mrb[0].mxu0
    %593 = vdwg.mxu0
    %v596 = vunpack.c.l.s4 1966171168
    %v597 = vunpack.c.0.s8 %v596
    %v598 = vlaneseq
    %v599 = vshrl.u32 %v598, 7
    %v600 = vsub.s32 %v597, %v599
    %v601 = vrot.slane %v589, %v600
    %v602 = vcombine.high %v601, %v601
    %v604 = vunpack.c.l.s4 1966171168
    %v605 = vunpack.c.0.s8 %v604
    %v606 = vlaneseq
    %v607 = vshrl.u32 %v606, 7
    %v608 = vsub.s32 %v605, %v607
    %v609 = vrot.slane %v601, %v608
    %v611 = vunpack.c.l.s4 1966171168
    %v612 = vunpack.c.0.s8 %v611
    %v613 = vlaneseq
    %v614 = vshrl.u32 %v613, 7
    %v615 = vsub.s32 %v612, %v614
    %v616 = vrot.slane %v602, %v615
    %v617 = vlaneseq
    %v618 = vshrl.u32 %v617, 7
    %v619 = vsub.s32 0, %v618
    %v620 = vrot.slane %v609, %v619
    %v621 = vlaneseq
    %v622 = vshrl.u32 %v621, 7
    %v623 = vsub.s32 0, %v622
    %v624 = vrot.slane %v616, %v623
    %v627 = vadd.f32 %v528, %v620
    %v628 = vadd.f32 %v531, %v624
    %v629 = vld [vmem:[#allocation20] sm:$0x1]
    %v631 = vlaneseq
    %v632 = vshrl.u32 %v631, 7
    %v633 = vsub.s32 0, %v632
    %v634 = vrot.slane %v629, %v633
    %v636 = vadd.f32 %v627, %v634
    %v637 = vadd.f32 %v628, %v634
    %v638 = vmax.f32 %v636, 0.0
    %v639 = vmax.f32 %v637, 0.0
    %v640 = vld [vmem:[#allocation21] sm:$0x1]
    %v642 = vlaneseq
    %v643 = vshrl.u32 %v642, 7
    %v644 = vsub.s32 0, %v643
    %v645 = vrot.slane %v640, %v644
    %v647 = vmul.f32 %v638, %v645
    %v648 = vmul.f32 %v639, %v645
    %v649 = vsel %vm336, %v647, 0.0
    %650 = vadd.xlane.f32.xlu0 %v649
    %v651 = vpop.xlane.xlu0 %650
    %v652 = vsel %vm336, %v648, 0.0
    %653 = vadd.xlane.f32.xlu0 %v652
    %v654 = vpop.xlane.xlu0 %653
    %s655 = sld [smem:[#allocation2]]
    %v656 = vstv %s655
    %v657 = vadd.f32 %v651, %v656
    %v658 = vadd.f32 %v654, %v656
    %v661 = vlaneseq
    %v662 = vand.u32 %v661, 127
    %v663 = vlaneseq
    %v664 = vshrl.u32 %v663, 7
    %v665 = vsub.s32 %v662, %v664
    %v666 = vrot.slane %v657, %v665
    %v667 = vlaneseq
    %v668 = vshrl.u32 %v667, 7
    %v669 = vsub.s32 %v662, %v668
    %v670 = vrot.slane %v658, %v669
    %vm671 = vcmask 1041409
    %v672 = vsel %vm671, %v670, %v666
    %vm674 = vcmask 58368
    %v675 = vsel %vm674, %v672, -inf
    %676 = vmax.xlane.f32.xlu0 %v675
    %v677 = vpop.xlane.xlu0 %676
    %v679 = vlaneseq
    %v680 = vshrl.u32 %v679, 7
    %v681 = vsub.s32 0, %v680
    %v682 = vrot.slane %v677, %v681
    %v683 = vlaneseq
    %v684 = vshrl.u32 %v683, 7
    %v685 = vsub.s32 1, %v684
    %v686 = vrot.slane %v677, %v685
    %v689 = vsub.f32 %v657, %v682
    %v690 = vsub.f32 %v658, %v686
    %v691 = vmul.f32 %v689, 1.442695
    %v692 = vpow.pop %v691
    %v693 = vmul.f32 %v690, 1.442695
    %v694 = vpow.pop %v693
    %697 = vset.pattern.permute.xlu0 0
    %698 = vperm.xlu0 %697, %v692
    %v699 = vpop.permute.xlu0 %698
    %700 = vset.pattern.permute.xlu0 0
    %701 = vperm.xlu0 %700, %v694
    %v702 = vpop.permute.xlu0 %701
    %v703 = vlaneseq
    %v704 = vshrl.u32 %v703, 7
    %v705 = vsub.s32 %v662, %v704
    %v706 = vrot.slane %v699, %v705
    %v707 = vlaneseq
    %v708 = vshrl.u32 %v707, 7
    %v709 = vsub.s32 %v662, %v708
    %v710 = vrot.slane %v702, %v709
    %v711 = vsel %vm671, %v710, %v706
    %v713 = vsel %vm674, %v711, 0.0
    %714 = vadd.xlane.f32.xlu0 %v713
    %v715 = vpop.xlane.xlu0 %714
    %v717 = vlaneseq
    %v718 = vshrl.u32 %v717, 7
    %v719 = vsub.s32 0, %v718
    %v720 = vrot.slane %v715, %v719
    %v721 = vlaneseq
    %v722 = vshrl.u32 %v721, 7
    %v723 = vsub.s32 1, %v722
    %v724 = vrot.slane %v715, %v723
    %v727 = vrcp.pop %v720
    %v728 = vmul.f32 %v692, %v727
    %v729 = vrcp.pop %v724
    %v730 = vmul.f32 %v694, %v729
    %732 = vset.pattern.permute.xlu0 0
    %733 = vperm.xlu0 %732, %v728
    %v734 = vpop.permute.xlu0 %733
    %737 = vset.pattern.permute.xlu0 0
    %738 = vperm.xlu0 %737, %v730
    %v739 = vpop.permute.xlu0 %738
    %v741 = vmul.f32 %v734, %v330
    %v742 = vmul.f32 %v739, %v333
    %v743 = vsel %vm336, %v741, 0.0
    %v744 = vrot.slane %v743, 4
    %v745 = vadd.f32 %v743, %v744
    %v746 = vrot.slane %v745, 2
    %v747 = vadd.f32 %v745, %v746
    %v748 = vrot.slane %v747, 1
    %v749 = vadd.f32 %v747, %v748
    %v750 = vsel %vm336, %v742, 0.0
    %v751 = vrot.slane %v750, 4
    %v752 = vadd.f32 %v750, %v751
    %v753 = vrot.slane %v752, 2
    %v754 = vadd.f32 %v752, %v753
    %v755 = vrot.slane %v754, 1
    %v756 = vadd.f32 %v754, %v755
    %v757 = vld [vmem:[#allocation23] sm:$0xf]
    %v758 = vld [vmem:[#allocation23 + $0x4] sm:$0xf]
    %v759 = vld [vmem:[#allocation23 + $0x8] sm:$0xf]
    %v760 = vld [vmem:[#allocation23 + $0xc] sm:$0xf]
    %v761 = vld [vmem:[#allocation24] sm:$0x1]
    %v763 = vlaneseq
    %v764 = vshrl.u32 %v763, 7
    %v765 = vsub.s32 0, %v764
    %v766 = vrot.slane %v761, %v765
    %v772 = vunpack.c.l.b16 %v757
    %v773 = vunpack.c.l.b16 %v758
    %v774 = vunpack.c.l.b16 %v759
    %v775 = vunpack.c.l.b16 %v760
    %v776 = vpack.c.b16 %v773, %v772
    %v777 = vpack.c.b16 %v775, %v774
    %780 = vmatprep.subr.bf16.mxu0 0
    %781 = vmatpush1.bf16.msra.mxu0 %v776
    %782 = vmatprep.subr.bf16.mxu0 0
    %783 = vmatpush1.bf16.msra.mxu0 %v777
    %784 = vmatprep.subr.bf16.mxu0 0
    %785 = vmatpush1.bf16.msra.mxu0 0
    %786 = vmatprep.subr.bf16.mxu0 0
    %787 = vmatpush1.bf16.msra.mxu0 0
    %788 = vmatprep.subr.bf16.mxu0 0
    %789 = vmatpush1.bf16.msra.mxu0 0
    %790 = vmatprep.subr.bf16.mxu0 0
    %791 = vmatpush1.bf16.msra.mxu0 0
    %792 = vmatprep.subr.bf16.mxu0 0
    %793 = vmatpush1.bf16.msra.mxu0 0
    %794 = vmatprep.subr.bf16.mxu0 0
    %795 = vmatpush1.bf16.msra.mxu0 0
    %796 = vmatprep.subr.bf16.mxu0 0
    %797 = vmatpush1.bf16.msra.mxu0 0
    %798 = vmatprep.subr.bf16.mxu0 0
    %799 = vmatpush1.bf16.msra.mxu0 0
    %800 = vmatprep.subr.bf16.mxu0 0
    %801 = vmatpush1.bf16.msra.mxu0 0
    %802 = vmatprep.subr.bf16.mxu0 0
    %803 = vmatpush1.bf16.msra.mxu0 0
    %804 = vmatprep.subr.bf16.mxu0 0
    %805 = vmatpush1.bf16.msra.mxu0 0
    %806 = vmatprep.subr.bf16.mxu0 0
    %807 = vmatpush1.bf16.msra.mxu0 0
    %808 = vmatprep.subr.bf16.mxu0 0
    %809 = vmatpush1.bf16.msra.mxu0 0
    %810 = vmatprep.subr.bf16.mxu0 0
    %811 = vmatpush1.bf16.msra.mxu0 0
    %812 = vmatprep.mubr.bf16.mxu0 0
    %813 = vmatmul.mubr.bf16.gmra.mrb[0].mxu0 %v364
    %v814 = vpop.f32.mrb[0].mxu0
    %v815 = vadd.f32 %v766, %v814
    %v816 = vpop.f32.mrb[0].mxu0
    %v817 = vpop.f32.mrb[0].mxu0
    %v818 = vpop.f32.mrb[0].mxu0
    %819 = vdwg.mxu0
    %v820 = vmax.f32 %v815, 0.0
    %v821 = vpack.c.bf16 %v749, %v749
    %v822 = vpack.c.bf16 %v756, %v756
    %v823 = vld [vmem:[#allocation26] sm:$0xf]
    %v824 = vld [vmem:[#allocation26 + $0x4] sm:$0xf]
    %v825 = vld [vmem:[#allocation26 + $0x8] sm:$0xf]
    %v826 = vld [vmem:[#allocation26 + $0xc] sm:$0xf]
    %v827 = vld [vmem:[#allocation27] sm:$0x1]
    %v829 = vlaneseq
    %v830 = vshrl.u32 %v829, 7
    %v831 = vsub.s32 0, %v830
    %v832 = vrot.slane %v827, %v831
    %v836 = vunpack.c.l.b16 %v821
    %v837 = vunpack.c.l.b16 %v822
    %v838 = vsel %vm671, %v837, %v836
    %v839 = vpack.c.b16 %v838, %v838
    %v844 = vunpack.c.l.b16 %v823
    %v845 = vunpack.c.l.b16 %v824
    %v846 = vunpack.c.l.b16 %v825
    %v847 = vunpack.c.l.b16 %v826
    %v848 = vpack.c.b16 %v845, %v844
    %v849 = vpack.c.b16 %v847, %v846
    %v853 = vsel %vm336, %v839, 0
    %855 = vmatprep.subr.bf16.mxu0 0
    %856 = vmatpush1.bf16.msra.mxu0 %v848
    %857 = vmatprep.subr.bf16.mxu0 0
    %858 = vmatpush1.bf16.msra.mxu0 %v849
    %859 = vmatprep.subr.bf16.mxu0 0
    %860 = vmatpush1.bf16.msra.mxu0 0
    %861 = vmatprep.subr.bf16.mxu0 0
    %862 = vmatpush1.bf16.msra.mxu0 0
    %863 = vmatprep.subr.bf16.mxu0 0
    %864 = vmatpush1.bf16.msra.mxu0 0
    %865 = vmatprep.subr.bf16.mxu0 0
    %866 = vmatpush1.bf16.msra.mxu0 0
    %867 = vmatprep.subr.bf16.mxu0 0
    %868 = vmatpush1.bf16.msra.mxu0 0
    %869 = vmatprep.subr.bf16.mxu0 0
    %870 = vmatpush1.bf16.msra.mxu0 0
    %871 = vmatprep.subr.bf16.mxu0 0
    %872 = vmatpush1.bf16.msra.mxu0 0
    %873 = vmatprep.subr.bf16.mxu0 0
    %874 = vmatpush1.bf16.msra.mxu0 0
    %875 = vmatprep.subr.bf16.mxu0 0
    %876 = vmatpush1.bf16.msra.mxu0 0
    %877 = vmatprep.subr.bf16.mxu0 0
    %878 = vmatpush1.bf16.msra.mxu0 0
    %879 = vmatprep.subr.bf16.mxu0 0
    %880 = vmatpush1.bf16.msra.mxu0 0
    %881 = vmatprep.subr.bf16.mxu0 0
    %882 = vmatpush1.bf16.msra.mxu0 0
    %883 = vmatprep.subr.bf16.mxu0 0
    %884 = vmatpush1.bf16.msra.mxu0 0
    %885 = vmatprep.subr.bf16.mxu0 0
    %886 = vmatpush1.bf16.msra.mxu0 0
    %887 = vmatprep.mubr.bf16.mxu0 0
    %888 = vmatmul.mubr.bf16.gmra.mrb[0].mxu0 %v853
    %v889 = vpop.f32.mrb[0].mxu0
    %v890 = vadd.f32 %v832, %v889
    %v891 = vpop.f32.mrb[0].mxu0
    %v892 = vpop.f32.mrb[0].mxu0
    %v893 = vpop.f32.mrb[0].mxu0
    %894 = vdwg.mxu0
    %v895 = vmax.f32 %v890, 0.0
    %v896 = vmul.f32 %v820, %v895
    %vm897 = vcmask 254976
    %898 = vst.msk [vmem:[#allocation30] sm:$0x3] %vm897, %v896
    // Predicated region
    $region134: #{updn_forward.7} parent=1 // pred_check
      _
    $region135: #{updn_forward.7} parent=1 // pred_check_branch
      %900 = sbr.rel (0) target = $region137
    $region136: #{updn_forward.7} parent=1 // pred_region
      %s902 = ssub.s32 256, 256
      %903 = vsyncadd [#allocation5], %s902
      %s904 = sshll.u32 [#allocation29], 4
      %s905 = int_to_ptr.vmem [resolvable:$true] %s904
      %910 = dma.vmem_to_hbm [thread:$0]  %s905, 256, %s17, [#allocation5], 128, 128, 8
    $region137: #{updn_forward.7} parent=1 // pred_fallthru
      _
    // Predicated region
    $region138: #{updn_forward.7} parent=1 // pred_check
      _
    $region139: #{updn_forward.7} parent=1 // pred_check_branch
      %912 = sbr.rel (0) target = $region141
    $region140: #{updn_forward.7} parent=1 // pred_region
      %s914 = ssub.s32 32, 32
      %915 = vsyncadd [#allocation31], %s914
      %s917 = sshll.u32 [#allocation30], 4
      %s918 = int_to_ptr.vmem [resolvable:$true] %s917
      %920 = dma.vmem_to_hbm [thread:$0]  %s918, 32, %s18, [#allocation31]
    $region141: #{updn_forward.7} parent=1 // pred_fallthru
      _
    // Predicated region
    $region142: #{updn_forward.7} parent=1 // pred_check
      _
    $region143: #{updn_forward.7} parent=1 // pred_check_branch
      %922 = sbr.rel (0) target = $region145
    $region144: #{updn_forward.7} parent=1 // pred_region
      %923 = dma.done [#allocation5], 256
    $region145: #{updn_forward.7} parent=1 // pred_fallthru
      _
    // Predicated region
    $region146: #{updn_forward.7} parent=1 // pred_check
      _
    $region147: #{updn_forward.7} parent=1 // pred_check_branch
      %925 = sbr.rel (0) target = $region149
    $region148: #{updn_forward.7} parent=1 // pred_region
      %926 = dma.done [#allocation31], 32
    $region149: #{updn_forward.7} parent=1 // pred_fallthru
      _
    %927 = vsyncpa [#allocation4], 1
    %928 = vsyncpa [#allocation7], 1
    %929 = vsyncpa [#allocation10], 1
    %930 = vsyncpa [#allocation13], 1
    %931 = vsyncpa [#allocation16], 1
    %932 = vsyncpa [#allocation19], 1
    %933 = vsyncpa [#allocation22], 1
    %934 = vsyncpa [#allocation25], 1
    %935 = vsyncpa [#allocation28], 1
    %936 = vsyncpa [#allocation5], 1
    %937 = vsyncpa [#allocation31], 1

// kernel: updn_forward.9
$region0: #{updn_forward.9}
  #allocation0 [shape = 'u32[]', space=smem, size = 0x4, offset = 0x4, fixed_abs, tag = 'smem constant byte address 0x4 - core index']
  #allocation1 [shape = 'u32[144,128]{1,0:T(1,128)}', space=vmem, size = 0x12000, scoped, tag = 'internal scratch']
  %s0 = inlined_call_operand.hbm [shape: f32[2,64], index: 0, kind: input, shape index: {}]
  %s1 = inlined_call_operand.hbm [shape: bf16[64,128], index: 1, kind: input, shape index: {}]
  %s2 = inlined_call_operand.hbm [shape: f32[1,128], index: 2, kind: input, shape index: {}]
  %s3 = inlined_call_operand.hbm [shape: f32[2,128], index: 3, kind: output, shape index: {}]
  %s4 = sld [smem:[#allocation0]]
  $region34: #{updn_forward.9} parent=0
    _
  %s6 = ssub.s32 1, %s4
  %s7 = scalar_select 0, %s6, %s4
  $region1: #{updn_forward.9} parent=0
    #allocation2 [shape = 'u8[1024]{0}', space=vmem, size = 0x400, scoped, tag = 'input window, operand 0, single buffered']
    #allocation3 [shape = 's32[1]{0}', space=sflag, size = 0x4, scoped, tag = 'scoped memory for updn_forward.9']
    #allocation4 [shape = 's32[1]{0}', space=sflag, size = 0x4, scoped, tag = 'scoped memory for updn_forward.9']
    #allocation5 [shape = 'u8[16384]{0}', space=vmem, size = 0x4000, scoped, tag = 'input window, operand 1, single buffered']
    #allocation6 [shape = 's32[1]{0}', space=sflag, size = 0x4, scoped, tag = 'scoped memory for updn_forward.9']
    #allocation7 [shape = 'u8[512]{0}', space=vmem, size = 0x400, scoped, tag = 'input window, operand 2, single buffered']
    #allocation8 [shape = 'u8[1024]{0}', space=vmem, size = 0x400, scoped, tag = 'output window, operand 0, single buffered']
    %8 = vsyncpa [#allocation3], 0
    %9 = vsyncpa [#allocation6], 0
    %10 = vsyncpa [#allocation4], 0
    // Predicated region
    $region2: #{updn_forward.9} parent=1 // pred_check
      _
    $region3: #{updn_forward.9} parent=1 // pred_check_branch
      %12 = sbr.rel (0) target = $region5
    $region4: #{updn_forward.9} parent=1 // pred_region
      %s14 = ssub.s32 32, 32
      %15 = vsyncadd [#allocation3], %s14
      %s17 = sshll.u32 [#allocation2], 4
      %s18 = int_to_ptr.vmem [resolvable:$true] %s17
      %20 = dma.hbm_to_vmem [thread:$0]  %s0, 32, %s18, [#allocation3]
    $region5: #{updn_forward.9} parent=1 // pred_fallthru
      _
    // Predicated region
    $region6: #{updn_forward.9} parent=1 // pred_check
      _
    $region7: #{updn_forward.9} parent=1 // pred_check_branch
      %22 = sbr.rel (0) target = $region9
    $region8: #{updn_forward.9} parent=1 // pred_region
      %s24 = ssub.s32 512, 512
      %25 = vsyncadd [#allocation6], %s24
      %s26 = sshll.u32 [#allocation5], 4
      %s27 = int_to_ptr.vmem [resolvable:$true] %s26
      %32 = dma.hbm_to_vmem [thread:$0]  %s1, 512, %s27, [#allocation6], 64, 64, 4
    $region9: #{updn_forward.9} parent=1 // pred_fallthru
      _
    // Predicated region
    $region10: #{updn_forward.9} parent=1 // pred_check
      _
    $region11: #{updn_forward.9} parent=1 // pred_check_branch
      %34 = sbr.rel (0) target = $region13
    $region12: #{updn_forward.9} parent=1 // pred_region
      %s36 = ssub.s32 16, 16
      %37 = vsyncadd [#allocation6], %s36
      %s39 = sshll.u32 [#allocation7], 4
      %s40 = int_to_ptr.vmem [resolvable:$true] %s39
      %42 = dma.hbm_to_vmem [thread:$0]  %s2, 16, %s40, [#allocation6]
    $region13: #{updn_forward.9} parent=1 // pred_fallthru
      _
    // Predicated region
    $region14: #{updn_forward.9} parent=1 // pred_check
      _
    $region15: #{updn_forward.9} parent=1 // pred_check_branch
      %44 = sbr.rel (0) target = $region17
    $region16: #{updn_forward.9} parent=1 // pred_region
      %45 = dma.done [#allocation3], 32
    $region17: #{updn_forward.9} parent=1 // pred_fallthru
      _
    // Predicated region
    $region18: #{updn_forward.9} parent=1 // pred_check
      _
    $region19: #{updn_forward.9} parent=1 // pred_check_branch
      %47 = sbr.rel (0) target = $region21
    $region20: #{updn_forward.9} parent=1 // pred_region
      %48 = dma.done [#allocation6], 512
    $region21: #{updn_forward.9} parent=1 // pred_fallthru
      _
    // Predicated region
    $region22: #{updn_forward.9} parent=1 // pred_check
      _
    $region23: #{updn_forward.9} parent=1 // pred_check_branch
      %50 = sbr.rel (0) target = $region25
    $region24: #{updn_forward.9} parent=1 // pred_region
      %51 = dma.done [#allocation6], 16
    $region25: #{updn_forward.9} parent=1 // pred_fallthru
      _
    %v53 = vld [vmem:[#allocation2] sm:$0x3]
    %v54 = vmax.f32 %v53, 0.0
    %v55 = vpack.c.bf16 %v54, %v54
    %v56 = vld [vmem:[#allocation5] sm:$0xf]
    %v57 = vld [vmem:[#allocation5 + $0x4] sm:$0xf]
    %v58 = vld [vmem:[#allocation5 + $0x8] sm:$0xf]
    %v59 = vld [vmem:[#allocation5 + $0xc] sm:$0xf]
    %v60 = vld [vmem:[#allocation5 + $0x10] sm:$0xf]
    %v61 = vld [vmem:[#allocation5 + $0x14] sm:$0xf]
    %v62 = vld [vmem:[#allocation5 + $0x18] sm:$0xf]
    %v63 = vld [vmem:[#allocation5 + $0x1c] sm:$0xf]
    %v64 = vld [vmem:[#allocation7] sm:$0x1]
    %v66 = vlaneseq
    %v67 = vshrl.u32 %v66, 7
    %v68 = vsub.s32 0, %v67
    %v69 = vrot.slane %v64, %v68
    %v79 = vunpack.c.l.b16 %v56
    %v80 = vunpack.c.l.b16 %v57
    %v81 = vunpack.c.l.b16 %v58
    %v82 = vunpack.c.l.b16 %v59
    %v83 = vunpack.c.l.b16 %v60
    %v84 = vunpack.c.l.b16 %v61
    %v85 = vunpack.c.l.b16 %v62
    %v86 = vunpack.c.l.b16 %v63
    %v87 = vpack.c.b16 %v80, %v79
    %v88 = vpack.c.b16 %v82, %v81
    %v89 = vpack.c.b16 %v84, %v83
    %v90 = vpack.c.b16 %v86, %v85
    %vm95 = vcmask 523264
    %v97 = vsel %vm95, %v55, 0
    %99 = vmatprep.subr.bf16.mxu0 0
    %100 = vmatpush1.bf16.msra.mxu0 %v87
    %101 = vmatprep.subr.bf16.mxu0 0
    %102 = vmatpush1.bf16.msra.mxu0 %v88
    %103 = vmatprep.subr.bf16.mxu0 0
    %104 = vmatpush1.bf16.msra.mxu0 %v89
    %105 = vmatprep.subr.bf16.mxu0 0
    %106 = vmatpush1.bf16.msra.mxu0 %v90
    %107 = vmatprep.subr.bf16.mxu0 0
    %108 = vmatpush1.bf16.msra.mxu0 0
    %109 = vmatprep.subr.bf16.mxu0 0
    %110 = vmatpush1.bf16.msra.mxu0 0
    %111 = vmatprep.subr.bf16.mxu0 0
    %112 = vmatpush1.bf16.msra.mxu0 0
    %113 = vmatprep.subr.bf16.mxu0 0
    %114 = vmatpush1.bf16.msra.mxu0 0
    %115 = vmatprep.subr.bf16.mxu0 0
    %116 = vmatpush1.bf16.msra.mxu0 0
    %117 = vmatprep.subr.bf16.mxu0 0
    %118 = vmatpush1.bf16.msra.mxu0 0
    %119 = vmatprep.subr.bf16.mxu0 0
    %120 = vmatpush1.bf16.msra.mxu0 0
    %121 = vmatprep.subr.bf16.mxu0 0
    %122 = vmatpush1.bf16.msra.mxu0 0
    %123 = vmatprep.subr.bf16.mxu0 0
    %124 = vmatpush1.bf16.msra.mxu0 0
    %125 = vmatprep.subr.bf16.mxu0 0
    %126 = vmatpush1.bf16.msra.mxu0 0
    %127 = vmatprep.subr.bf16.mxu0 0
    %128 = vmatpush1.bf16.msra.mxu0 0
    %129 = vmatprep.subr.bf16.mxu0 0
    %130 = vmatpush1.bf16.msra.mxu0 0
    %131 = vmatprep.mubr.bf16.mxu0 0
    %132 = vmatmul.mubr.bf16.gmra.mrb[0].mxu0 %v97
    %v133 = vpop.f32.mrb[0].mxu0
    %v134 = vadd.f32 %v69, %v133
    %v135 = vpop.f32.mrb[0].mxu0
    %v136 = vpop.f32.mrb[0].mxu0
    %v137 = vpop.f32.mrb[0].mxu0
    %138 = vdwg.mxu0
    %139 = vst [vmem:[#allocation8] sm:$0x3] %v134
    // Predicated region
    $region26: #{updn_forward.9} parent=1 // pred_check
      _
    $region27: #{updn_forward.9} parent=1 // pred_check_branch
      %141 = sbr.rel (0) target = $region29
    $region28: #{updn_forward.9} parent=1 // pred_region
      %s143 = ssub.s32 32, 32
      %144 = vsyncadd [#allocation4], %s143
      %s146 = sshll.u32 [#allocation8], 4
      %s147 = int_to_ptr.vmem [resolvable:$true] %s146
      %149 = dma.vmem_to_hbm [thread:$0]  %s147, 32, %s3, [#allocation4]
    $region29: #{updn_forward.9} parent=1 // pred_fallthru
      _
    // Predicated region
    $region30: #{updn_forward.9} parent=1 // pred_check
      _
    $region31: #{updn_forward.9} parent=1 // pred_check_branch
      %151 = sbr.rel (0) target = $region33
    $region32: #{updn_forward.9} parent=1 // pred_region
      %152 = dma.done [#allocation4], 32
    $region33: #{updn_forward.9} parent=1 // pred_fallthru
      _
    %153 = vsyncpa [#allocation3], 1
    %154 = vsyncpa [#allocation6], 1
    %155 = vsyncpa [#allocation4], 1

</llo_original>
